<compile_context>
chip_gen: v5e
topology: v5e:2x2
jax: 0.10.0
libtpu: 0.0.40
codegen_flags: <defaults>
</compile_context>

<pallas_src>
import math

import jax
import jax.numpy as jnp
from jax.experimental import pallas as pl
from jax.experimental.pallas import tpu as pltpu

NEG_INF = -1e9  # additive mask value (exp(.) underflows to exactly 0 in f32)

# Set to jnp.bfloat16 on v5e/v6e for ~2x MXU throughput / half the matmul
# operand traffic (accumulation stays f32). Kept f32 here to match the
# PyTorch reference numerics exactly.
MATMUL_DTYPE = jnp.float32

_ROW_TILE = 256  # rows per grid step for the tiled linears (multiple of 8)

_VMEM = pl.BlockSpec(memory_space=pltpu.MemorySpace.VMEM)


# --------------------------------------------------------------------------
# Pallas kernels
# --------------------------------------------------------------------------
def _linear_kernel(x_ref, w_ref, b_ref, o_ref):
    o_ref[...] = (
        jnp.dot(x_ref[...].astype(MATMUL_DTYPE), w_ref[...].astype(MATMUL_DTYPE),
                preferred_element_type=jnp.float32)
        + b_ref[...]
    )


def _linear_relu_kernel(x_ref, w_ref, b_ref, o_ref):
    y = (
        jnp.dot(x_ref[...].astype(MATMUL_DTYPE), w_ref[...].astype(MATMUL_DTYPE),
                preferred_element_type=jnp.float32)
        + b_ref[...]
    )
    o_ref[...] = jnp.maximum(y, 0.0)


def _linear_res_ln_kernel(x_ref, w_ref, b_ref, res_ref, g_ref, be_ref, o_ref):
    # LN(res + (x @ w + b))   -- fused projection + residual + layernorm
    y = (
        jnp.dot(x_ref[...].astype(MATMUL_DTYPE), w_ref[...].astype(MATMUL_DTYPE),
                preferred_element_type=jnp.float32)
        + b_ref[...]
    )
    h = res_ref[...] + y
    mu = jnp.mean(h, axis=-1, keepdims=True)
    var = jnp.mean((h - mu) * (h - mu), axis=-1, keepdims=True)
    o_ref[...] = (h - mu) * jax.lax.rsqrt(var + 1e-5) * g_ref[...] + be_ref[...]


def _ln_linear_kernel(x_ref, g_ref, be_ref, w_ref, b_ref, o_ref):
    # (LN(x)) @ w + b   -- fused final norm + vocab projection (lane-dense out)
    x = x_ref[...]
    mu = jnp.mean(x, axis=-1, keepdims=True)
    var = jnp.mean((x - mu) * (x - mu), axis=-1, keepdims=True)
    xn = (x - mu) * jax.lax.rsqrt(var + 1e-5) * g_ref[...] + be_ref[...]
    o_ref[...] = (
        jnp.dot(xn.astype(MATMUL_DTYPE), w_ref[...].astype(MATMUL_DTYPE),
                preferred_element_type=jnp.float32)
        + b_ref[...]
    )


def _attn_masked_kernel(q_ref, k_ref, v_ref, tm_ref, kpm_ref, o_ref):
    # q: (BH, T, dh), k/v: (BH, S, dh), tm: (T, S), kpm: (BH, S)
    # All heads processed in a single invocation; masks broadcast in-kernel.
    scale = 1.0 / math.sqrt(q_ref.shape[-1])
    q = q_ref[...] * scale
    s = jnp.einsum("bqd,bkd->bqk", q, k_ref[...],
                   preferred_element_type=jnp.float32)
    s = s + tm_ref[...][None, :, :] + kpm_ref[...][:, None, :]
    s = s - jnp.max(s, axis=-1, keepdims=True)
    p = jnp.exp(s)
    p = p * pl.reciprocal(jnp.sum(p, axis=-1, keepdims=True), approx=True)
    o_ref[...] = jnp.einsum("bqk,bkd->bqd", p, v_ref[...],
                            preferred_element_type=jnp.float32)


def _attn_kernel(q_ref, k_ref, v_ref, o_ref):
    # Unmasked (cross-attention) variant: no mask DMA, no mask add at all.
    scale = 1.0 / math.sqrt(q_ref.shape[-1])
    q = q_ref[...] * scale
    s = jnp.einsum("bqd,bkd->bqk", q, k_ref[...],
                   preferred_element_type=jnp.float32)
    s = s - jnp.max(s, axis=-1, keepdims=True)
    p = jnp.exp(s)
    p = p * pl.reciprocal(jnp.sum(p, axis=-1, keepdims=True), approx=True)
    o_ref[...] = jnp.einsum("bqk,bkd->bqd", p, v_ref[...],
                            preferred_element_type=jnp.float32)


# --------------------------------------------------------------------------
# Row-tiled pallas_call helper for the per-token (rows x features) kernels.
# Row-tiled args get a (tile, cols) block; shared args (weights, biases,
# gamma/beta) are passed whole with a constant index_map (stay resident).
# --------------------------------------------------------------------------
def _call_rows(kernel, args, row_flags, out_cols, tile=_ROW_TILE):
    n = args[0].shape[0]
    t = n if n <= tile else tile
    in_specs = [
        pl.BlockSpec((t, a.shape[1]), lambda i: (i, 0)) if is_row
        else pl.BlockSpec(a.shape, lambda i: (0, 0))
        for a, is_row in zip(args, row_flags)
    ]
    return pl.pallas_call(
        kernel,
        out_shape=jax.ShapeDtypeStruct((n, out_cols), jnp.float32),
        grid=(pl.cdiv(n, t),),
        in_specs=in_specs,
        out_specs=pl.BlockSpec((t, out_cols), lambda i: (i, 0)),
        compiler_params=pltpu.CompilerParams(
            dimension_semantics=("parallel",)),  # shards across TCs on v7x
    )(*args)


# --------------------------------------------------------------------------
# Model (layout glue in plain JAX, compute in the Pallas kernels above)
# --------------------------------------------------------------------------
def make_pe(max_len, emb_dim):
    position = jnp.arange(max_len, dtype=jnp.float32)[:, None]
    div_term = jnp.exp(
        jnp.arange(0, emb_dim, 2, dtype=jnp.float32) * (-math.log(10000.0) / emb_dim)
    )
    pe = jnp.zeros((max_len, emb_dim), jnp.float32)
    pe = pe.at[:, 0::2].set(jnp.sin(position * div_term))
    pe = pe.at[:, 1::2].set(jnp.cos(position * div_term))
    return pe[:, None, :]  # (max_len, 1, emb_dim)


def _to_heads(x2d, seq, batch, heads, dh):
    # (seq*batch, E) -> (batch*heads, seq, dh); matches torch's view/transpose.
    # TODO(synk): could be folded into the projection kernel's out BlockSpec
    # to avoid the XLA transpose, at the cost of a per-(T or B) grid.
    return x2d.reshape(seq, batch * heads, dh).transpose(1, 0, 2)


def decoder_layer_fwd(x, mem, p, heads, tgt_mask, kpm_bh):
    """Post-norm TransformerDecoderLayer (relu FF, eval-mode dropout)."""
    t, b, e = x.shape
    s = mem.shape[0]
    dh = e // heads
    n = t * b
    x_flat = x.reshape(n, e)

    # ---- self attention: fused QKV matmul -> single batched attention ----
    qkv = _call_rows(_linear_kernel,
                     [x_flat, p["sa_qkv_w"], p["sa_qkv_b"].reshape(1, -1)],
                     [True, False, False], 3 * e)
    q = _to_heads(qkv[:, :e], t, b, heads, dh)
    k = _to_heads(qkv[:, e:2 * e], t, b, heads, dh)
    v = _to_heads(qkv[:, 2 * e:], t, b, heads, dh)
    o = pl.pallas_call(
        _attn_masked_kernel,
        out_shape=jax.ShapeDtypeStruct((b * heads, t, dh), jnp.float32),
        in_specs=[_VMEM] * 5,
        out_specs=_VMEM,
    )(q, k, v, tgt_mask, kpm_bh)
    o = o.transpose(1, 0, 2).reshape(n, e)
    # out-proj + residual + layernorm fused
    x_flat = _call_rows(
        _linear_res_ln_kernel,
        [o, p["sa_out_w"], p["sa_out_b"].reshape(1, e), x_flat,
         p["n1_g"].reshape(1, e), p["n1_b"].reshape(1, e)],
        [True, False, False, True, False, False], e)

    # ---- cross attention: fused KV matmul, no mask ----
    q = _call_rows(_linear_kernel,
                   [x_flat, p["ca_q_w"], p["ca_q_b"].reshape(1, e)],
                   [True, False, False], e)
    kv = _call_rows(_linear_kernel,
                    [mem.reshape(s * b, e), p["ca_kv_w"],
                     p["ca_kv_b"].reshape(1, -1)],
                    [True, False, False], 2 * e)
    q = _to_heads(q, t, b, heads, dh)
    k = _to_heads(kv[:, :e], s, b, heads, dh)
    v = _to_heads(kv[:, e:], s, b, heads, dh)
    o = pl.pallas_call(
        _attn_kernel,
        out_shape=jax.ShapeDtypeStruct((b * heads, t, dh), jnp.float32),
        in_specs=[_VMEM] * 3,
        out_specs=_VMEM,
    )(q, k, v)
    o = o.transpose(1, 0, 2).reshape(n, e)
    x_flat = _call_rows(
        _linear_res_ln_kernel,
        [o, p["ca_out_w"], p["ca_out_b"].reshape(1, e), x_flat,
         p["n2_g"].reshape(1, e), p["n2_b"].reshape(1, e)],
        [True, False, False, True, False, False], e)

    # ---- feed forward: FF1+relu, then FF2 + residual + layernorm fused ----
    h = _call_rows(_linear_relu_kernel,
                   [x_flat, p["ff1_w"], p["ff1_b"].reshape(1, -1)],
                   [True, False, False], p["ff1_w"].shape[1])
    x_flat = _call_rows(
        _linear_res_ln_kernel,
        [h, p["ff2_w"], p["ff2_b"].reshape(1, e), x_flat,
         p["n3_g"].reshape(1, e), p["n3_b"].reshape(1, e)],
        [True, False, False, True, False, False], e)

    return x_flat.reshape(t, b, e)


def decoder_forward(params, trg, encoder_out, tgt_key_padding_mask, tgt_mask, heads):
    t, b = trg.shape
    e = params["embedding"].shape[1]
    vocab = params["embedding"].shape[0]

    # embedding lookup + scaling + positional encoding (gather stays in JAX)
    x = params["embedding"][trg] * math.sqrt(e)          # (T, B, E)
    x = x + params["pe"][:t]                             # broadcast over batch
    # TODO(synk): dropout layers are identity here (eval-mode semantics).

    # additive key-padding mask, replicated per head once (B*H, T) -- tiny;
    # the full (B*H, T, S) mask is never materialized.
    kpm_add = jnp.where(tgt_key_padding_mask, NEG_INF, 0.0).astype(jnp.float32)
    kpm_bh = jnp.repeat(kpm_add, heads, axis=0)          # (B*H, T)

    for layer in params["layers"]:
        x = decoder_layer_fwd(x, encoder_out, layer, heads, tgt_mask, kpm_bh)

    # final norm + vocab projection fused; out_w is padded to a multiple of
    # 128 columns for lane-dense stores, then sliced back (free in XLA).
    n = t * b
    logits = _call_rows(
        _ln_linear_kernel,
        [x.reshape(n, e), params["final_norm_g"].reshape(1, e),
         params["final_norm_b"].reshape(1, e), params["out_w"],
         params["out_b"].reshape(1, -1)],
        [True, False, False, False, False], params["out_w"].shape[1])
    return logits[:, :vocab].reshape(t, b, vocab)


# --------------------------------------------------------------------------
# Deterministic parameter initialization (shapes from Decoder.__init__).
# Weights are stored pre-transposed as (in_features, out_features) so no
# per-call w.T copy is needed; QKV / KV projections are stored fused.
# --------------------------------------------------------------------------
def init_params(key, output_dim, emb_dim, n_layers, heads, dff=2048, max_len=100):
    def nrm(k, shape, scale=0.02):
        return scale * jax.random.normal(k, shape, jnp.float32)

    vpad = 128 * ((output_dim + 127) // 128)  # lane-dense vocab projection

    ks = iter(jax.random.split(key, 2 + 7 * n_layers))
    params = {
        "embedding": nrm(next(ks), (output_dim, emb_dim), 1.0),
        "pe": make_pe(max_len, emb_dim),
    }
    layers = []
    for _ in range(n_layers):
        layers.append({
            "sa_qkv_w": nrm(next(ks), (emb_dim, 3 * emb_dim)),
            "sa_qkv_b": jnp.zeros((3 * emb_dim,), jnp.float32),
            "sa_out_w": nrm(next(ks), (emb_dim, emb_dim)),
            "sa_out_b": jnp.zeros((emb_dim,), jnp.float32),
            "ca_q_w": nrm(next(ks), (emb_dim, emb_dim)),
            "ca_q_b": jnp.zeros((emb_dim,), jnp.float32),
            "ca_kv_w": nrm(next(ks), (emb_dim, 2 * emb_dim)),
            "ca_kv_b": jnp.zeros((2 * emb_dim,), jnp.float32),
            "ca_out_w": nrm(next(ks), (emb_dim, emb_dim)),
            "ca_out_b": jnp.zeros((emb_dim,), jnp.float32),
            "ff1_w": nrm(next(ks), (emb_dim, dff)),
            "ff1_b": jnp.zeros((dff,), jnp.float32),
            "ff2_w": nrm(next(ks), (dff, emb_dim)),
            "ff2_b": jnp.zeros((emb_dim,), jnp.float32),
            "n1_g": jnp.ones((emb_dim,), jnp.float32),
            "n1_b": jnp.zeros((emb_dim,), jnp.float32),
            "n2_g": jnp.ones((emb_dim,), jnp.float32),
            "n2_b": jnp.zeros((emb_dim,), jnp.float32),
            "n3_g": jnp.ones((emb_dim,), jnp.float32),
            "n3_b": jnp.zeros((emb_dim,), jnp.float32),
        })
    params["layers"] = layers
    params["final_norm_g"] = jnp.ones((emb_dim,), jnp.float32)
    params["final_norm_b"] = jnp.zeros((emb_dim,), jnp.float32)
    w_out = nrm(next(ks), (emb_dim, output_dim))
    params["out_w"] = (
        jnp.zeros((emb_dim, vpad), jnp.float32).at[:, :output_dim].set(w_out)
    )
    params["out_b"] = jnp.zeros((vpad,), jnp.float32)
    return params


# --------------------------------------------------------------------------
if __name__ == "__main__":
    output_dim, emb_dim, n_layers, heads = 50, 32, 2, 4
    T, B, S = 8, 2, 6

    key = jax.random.PRNGKey(0)
    k_param, k_trg, k_mem = jax.random.split(key, 3)

    params = init_params(k_param, output_dim, emb_dim, n_layers, heads)

    trg = jax.random.randint(k_trg, (T, B), 0, output_dim, dtype=jnp.int32)
    encoder_out = jax.random.normal(k_mem, (S, B, emb_dim), jnp.float32)

    # causal (square subsequent) additive mask
    idx = jnp.arange(T)
    tgt_mask = jnp.where(idx[None, :] > idx[:, None], NEG_INF, 0.0).astype(jnp.float32)
    # key padding: last 2 positions of batch element 1 are padding
    tgt_key_padding_mask = jnp.zeros((B, T), bool).at[1, T - 2:].set(True)

    fwd = jax.jit(decoder_forward, static_argnames=("heads",))
    out = fwd(params, trg, encoder_out, tgt_key_padding_mask, tgt_mask, heads)
    out = jax.block_until_ready(out)

    assert out.shape == (T, B, output_dim), out.shape
    assert bool(jnp.all(jnp.isfinite(out)))
    print("KERNEL_OK")
</pallas_src>

<mosaic_0001>
module attributes {stable_mosaic.version = 11 : i64} {
  func.func @_linear_kernel(%arg0: i32, %arg1: memref<16x32xf32, #tpu.memory_space<vmem>>, %arg2: memref<32x96xf32, #tpu.memory_space<vmem>>, %arg3: memref<1x96xf32, #tpu.memory_space<vmem>>, %arg4: memref<16x96xf32, #tpu.memory_space<vmem>>) attributes {dimension_semantics = [#tpu.dimension_semantics<parallel>], iteration_bounds = array<i64: 1>, scalar_prefetch = 0 : i64, scratch_operands = 0 : i64, tpu.core_type = #tpu.core_type<tc>, window_params = [{transform_indices = @transform_0, window_bounds = array<i64: 16, 32>}, {pipeline_mode = #tpu.pipeline_mode<synchronous>, transform_indices = @transform_1, window_bounds = array<i64: 32, 96>}, {pipeline_mode = #tpu.pipeline_mode<synchronous>, transform_indices = @transform_2, window_bounds = array<i64: 1, 96>}, {transform_indices = @transform_3, window_bounds = array<i64: 16, 96>}]} {
    %c0 = arith.constant 0 : index
    %c0_0 = arith.constant 0 : index
    %0 = vector.load %arg1[%c0, %c0_0] : memref<16x32xf32, #tpu.memory_space<vmem>>, vector<16x32xf32>
    %c0_1 = arith.constant 0 : index
    %c0_2 = arith.constant 0 : index
    %1 = vector.load %arg2[%c0_1, %c0_2] : memref<32x96xf32, #tpu.memory_space<vmem>>, vector<32x96xf32>
    %cst = arith.constant dense<0.000000e+00> : vector<16x96xf32>
    %2 = tpu.matmul %0, %1, %cst {dimension_numbers = #tpu.dot_dimension_numbers<[1], [0], [0], [1], [0, 0, 1, 1], [], []>} : vector<16x32xf32>, vector<32x96xf32>, vector<16x96xf32> -> vector<16x96xf32>
    %c0_3 = arith.constant 0 : index
    %c0_4 = arith.constant 0 : index
    %3 = vector.load %arg3[%c0_3, %c0_4] : memref<1x96xf32, #tpu.memory_space<vmem>>, vector<1x96xf32>
    %4 = vector.broadcast %3 : vector<1x96xf32> to vector<16x96xf32>
    %5 = arith.addf %2, %4 : vector<16x96xf32>
    %c0_5 = arith.constant 0 : index
    %c0_6 = arith.constant 0 : index
    %6 = vector.load %arg4[%c0_5, %c0_6] : memref<16x96xf32, #tpu.memory_space<vmem>>, vector<16x96xf32>
    tpu.vector_store %arg4[%c0_5, %c0_6], %5 {strides = array<i32>} : memref<16x96xf32, #tpu.memory_space<vmem>>, vector<16x96xf32>,
    return
  }
  func.func @transform_0(%arg0: i32) -> (i32, i32) {
    %c0_i32 = arith.constant 0 : i32
    %c0_i32_0 = arith.constant 0 : i32
    return %arg0, %c0_i32 : i32, i32
  }
  func.func @transform_1(%arg0: i32) -> (i32, i32) {
    %c0_i32 = arith.constant 0 : i32
    %c0_i32_0 = arith.constant 0 : i32
    %c0_i32_1 = arith.constant 0 : i32
    return %c0_i32, %c0_i32_0 : i32, i32
  }
  func.func @transform_2(%arg0: i32) -> (i32, i32) {
    %c0_i32 = arith.constant 0 : i32
    %c0_i32_0 = arith.constant 0 : i32
    %c0_i32_1 = arith.constant 0 : i32
    return %c0_i32, %c0_i32_0 : i32, i32
  }
  func.func @transform_3(%arg0: i32) -> (i32, i32) {
    %c0_i32 = arith.constant 0 : i32
    %c0_i32_0 = arith.constant 0 : i32
    return %arg0, %c0_i32 : i32, i32
  }
}

module attributes {stable_mosaic.version = 11 : i64} {
  func.func @_attn_masked_kernel(%arg0: memref<8x8x8xf32, #tpu.memory_space<vmem>>, %arg1: memref<8x8x8xf32, #tpu.memory_space<vmem>>, %arg2: memref<8x8x8xf32, #tpu.memory_space<vmem>>, %arg3: memref<8x8xf32, #tpu.memory_space<vmem>>, %arg4: memref<8x8xf32, #tpu.memory_space<vmem>>, %arg5: memref<8x8x8xf32, #tpu.memory_space<vmem>>) attributes {dimension_semantics = [], scalar_prefetch = 0 : i64, scratch_operands = 0 : i64, tpu.core_type = #tpu.core_type<tc>} {
    %c0 = arith.constant 0 : index
    %c0_0 = arith.constant 0 : index
    %c0_1 = arith.constant 0 : index
    %0 = vector.load %arg0[%c0, %c0_0, %c0_1] : memref<8x8x8xf32, #tpu.memory_space<vmem>>, vector<8x8x8xf32>
    %cst = arith.constant 0.353553385 : f32
    %1 = vector.broadcast %cst : f32 to vector<8x8x8xf32>
    %2 = arith.mulf %0, %1 : vector<8x8x8xf32>
    %c0_2 = arith.constant 0 : index
    %c0_3 = arith.constant 0 : index
    %c0_4 = arith.constant 0 : index
    %3 = vector.load %arg1[%c0_2, %c0_3, %c0_4] : memref<8x8x8xf32, #tpu.memory_space<vmem>>, vector<8x8x8xf32>
    "tpu.trace_start"() <{level = 10 : i32, message = "bqd,bkd->bqk"}> : () -> ()
    %cst_5 = arith.constant dense<0.000000e+00> : vector<8x8x8xf32>
    %4 = tpu.matmul %2, %3, %cst_5 {dimension_numbers = #tpu.dot_dimension_numbers<[2], [2], [1], [1], [0, 0, 0, 1, 1, 1], [0], [0]>} : vector<8x8x8xf32>, vector<8x8x8xf32>, vector<8x8x8xf32> -> vector<8x8x8xf32>
    "tpu.trace_stop"() : () -> ()
    %c0_6 = arith.constant 0 : index
    %c0_7 = arith.constant 0 : index
    %5 = vector.load %arg3[%c0_6, %c0_7] : memref<8x8xf32, #tpu.memory_space<vmem>>, vector<8x8xf32>
    %6 = vector.shape_cast %5 : vector<8x8xf32> to vector<1x8x8xf32>
    %7 = vector.broadcast %6 : vector<1x8x8xf32> to vector<8x8x8xf32>
    %8 = arith.addf %4, %7 : vector<8x8x8xf32>
    %c0_8 = arith.constant 0 : index
    %c0_9 = arith.constant 0 : index
    %9 = vector.load %arg4[%c0_8, %c0_9] : memref<8x8xf32, #tpu.memory_space<vmem>>, vector<8x8xf32>
    %10 = vector.shape_cast %9 : vector<8x8xf32> to vector<8x1x8xf32>
    %11 = vector.broadcast %10 : vector<8x1x8xf32> to vector<8x8x8xf32>
    %12 = arith.addf %8, %11 : vector<8x8x8xf32>
    %cst_10 = arith.constant dense<0xFF800000> : vector<8x8xf32>
    %13 = vector.multi_reduction <maximumf>, %12, %cst_10 [2] : vector<8x8x8xf32> to vector<8x8xf32>
    %14 = vector.shape_cast %13 : vector<8x8xf32> to vector<8x8x1xf32>
    %15 = vector.broadcast %14 : vector<8x8x1xf32> to vector<8x8x8xf32>
    %16 = arith.subf %12, %15 : vector<8x8x8xf32>
    %17 = math.exp %16 : vector<8x8x8xf32>
    %cst_11 = arith.constant dense<0.000000e+00> : vector<8x8xf32>
    %18 = vector.multi_reduction <add>, %17, %cst_11 [2] : vector<8x8x8xf32> to vector<8x8xf32>
    %19 = vector.shape_cast %18 : vector<8x8xf32> to vector<8x8x1xf32>
    %20 = tpu.reciprocal %19 {approx = true} : vector<8x8x1xf32> -> vector<8x8x1xf32>
    %21 = vector.broadcast %20 : vector<8x8x1xf32> to vector<8x8x8xf32>
    %22 = arith.mulf %17, %21 : vector<8x8x8xf32>
    %c0_12 = arith.constant 0 : index
    %c0_13 = arith.constant 0 : index
    %c0_14 = arith.constant 0 : index
    %23 = vector.load %arg2[%c0_12, %c0_13, %c0_14] : memref<8x8x8xf32, #tpu.memory_space<vmem>>, vector<8x8x8xf32>
    "tpu.trace_start"() <{level = 10 : i32, message = "bqk,bkd->bqd"}> : () -> ()
    %cst_15 = arith.constant dense<0.000000e+00> : vector<8x8x8xf32>
    %24 = tpu.matmul %22, %23, %cst_15 {dimension_numbers = #tpu.dot_dimension_numbers<[2], [1], [1], [2], [0, 0, 0, 1, 1, 2], [0], [0]>} : vector<8x8x8xf32>, vector<8x8x8xf32>, vector<8x8x8xf32> -> vector<8x8x8xf32>
    "tpu.trace_stop"() : () -> ()
    %c0_16 = arith.constant 0 : index
    %c0_17 = arith.constant 0 : index
    %c0_18 = arith.constant 0 : index
    %25 = vector.load %arg5[%c0_16, %c0_17, %c0_18] : memref<8x8x8xf32, #tpu.memory_space<vmem>>, vector<8x8x8xf32>
    tpu.vector_store %arg5[%c0_16, %c0_17, %c0_18], %24 {strides = array<i32>} : memref<8x8x8xf32, #tpu.memory_space<vmem>>, vector<8x8x8xf32>,
    return
  }
}

module attributes {stable_mosaic.version = 11 : i64} {
  func.func @_linear_kernel(%arg0: i32, %arg1: memref<16x32xf32, #tpu.memory_space<vmem>>, %arg2: memref<32x32xf32, #tpu.memory_space<vmem>>, %arg3: memref<1x32xf32, #tpu.memory_space<vmem>>, %arg4: memref<16x32xf32, #tpu.memory_space<vmem>>) attributes {dimension_semantics = [#tpu.dimension_semantics<parallel>], iteration_bounds = array<i64: 1>, scalar_prefetch = 0 : i64, scratch_operands = 0 : i64, tpu.core_type = #tpu.core_type<tc>, window_params = [{transform_indices = @transform_0, window_bounds = array<i64: 16, 32>}, {pipeline_mode = #tpu.pipeline_mode<synchronous>, transform_indices = @transform_1, window_bounds = array<i64: 32, 32>}, {pipeline_mode = #tpu.pipeline_mode<synchronous>, transform_indices = @transform_2, window_bounds = array<i64: 1, 32>}, {transform_indices = @transform_3, window_bounds = array<i64: 16, 32>}]} {
    %c0 = arith.constant 0 : index
    %c0_0 = arith.constant 0 : index
    %0 = vector.load %arg1[%c0, %c0_0] : memref<16x32xf32, #tpu.memory_space<vmem>>, vector<16x32xf32>
    %c0_1 = arith.constant 0 : index
    %c0_2 = arith.constant 0 : index
    %1 = vector.load %arg2[%c0_1, %c0_2] : memref<32x32xf32, #tpu.memory_space<vmem>>, vector<32x32xf32>
    %cst = arith.constant dense<0.000000e+00> : vector<16x32xf32>
    %2 = tpu.matmul %0, %1, %cst {dimension_numbers = #tpu.dot_dimension_numbers<[1], [0], [0], [1], [0, 0, 1, 1], [], []>} : vector<16x32xf32>, vector<32x32xf32>, vector<16x32xf32> -> vector<16x32xf32>
    %c0_3 = arith.constant 0 : index
    %c0_4 = arith.constant 0 : index
    %3 = vector.load %arg3[%c0_3, %c0_4] : memref<1x32xf32, #tpu.memory_space<vmem>>, vector<1x32xf32>
    %4 = vector.broadcast %3 : vector<1x32xf32> to vector<16x32xf32>
    %5 = arith.addf %2, %4 : vector<16x32xf32>
    %c0_5 = arith.constant 0 : index
    %c0_6 = arith.constant 0 : index
    %6 = vector.load %arg4[%c0_5, %c0_6] : memref<16x32xf32, #tpu.memory_space<vmem>>, vector<16x32xf32>
    tpu.vector_store %arg4[%c0_5, %c0_6], %5 {strides = array<i32>} : memref<16x32xf32, #tpu.memory_space<vmem>>, vector<16x32xf32>,
    return
  }
  func.func @transform_0(%arg0: i32) -> (i32, i32) {
    %c0_i32 = arith.constant 0 : i32
    %c0_i32_0 = arith.constant 0 : i32
    return %arg0, %c0_i32 : i32, i32
  }
  func.func @transform_1(%arg0: i32) -> (i32, i32) {
    %c0_i32 = arith.constant 0 : i32
    %c0_i32_0 = arith.constant 0 : i32
    %c0_i32_1 = arith.constant 0 : i32
    return %c0_i32, %c0_i32_0 : i32, i32
  }
  func.func @transform_2(%arg0: i32) -> (i32, i32) {
    %c0_i32 = arith.constant 0 : i32
    %c0_i32_0 = arith.constant 0 : i32
    %c0_i32_1 = arith.constant 0 : i32
    return %c0_i32, %c0_i32_0 : i32, i32
  }
  func.func @transform_3(%arg0: i32) -> (i32, i32) {
    %c0_i32 = arith.constant 0 : i32
    %c0_i32_0 = arith.constant 0 : i32
    return %arg0, %c0_i32 : i32, i32
  }
}

module attributes {stable_mosaic.version = 11 : i64} {
  func.func @_linear_res_ln_kernel(%arg0: i32, %arg1: memref<16x32xf32, #tpu.memory_space<vmem>>, %arg2: memref<32x32xf32, #tpu.memory_space<vmem>>, %arg3: memref<1x32xf32, #tpu.memory_space<vmem>>, %arg4: memref<16x32xf32, #tpu.memory_space<vmem>>, %arg5: memref<1x32xf32, #tpu.memory_space<vmem>>, %arg6: memref<1x32xf32, #tpu.memory_space<vmem>>, %arg7: memref<16x32xf32, #tpu.memory_space<vmem>>) attributes {dimension_semantics = [#tpu.dimension_semantics<parallel>], iteration_bounds = array<i64: 1>, scalar_prefetch = 0 : i64, scratch_operands = 0 : i64, tpu.core_type = #tpu.core_type<tc>, window_params = [{transform_indices = @transform_0, window_bounds = array<i64: 16, 32>}, {pipeline_mode = #tpu.pipeline_mode<synchronous>, transform_indices = @transform_1, window_bounds = array<i64: 32, 32>}, {pipeline_mode = #tpu.pipeline_mode<synchronous>, transform_indices = @transform_2, window_bounds = array<i64: 1, 32>}, {transform_indices = @transform_3, window_bounds = array<i64: 16, 32>}, {pipeline_mode = #tpu.pipeline_mode<synchronous>, transform_indices = @transform_4, window_bounds = array<i64: 1, 32>}, {pipeline_mode = #tpu.pipeline_mode<synchronous>, transform_indices = @transform_5, window_bounds = array<i64: 1, 32>}, {transform_indices = @transform_6, window_bounds = array<i64: 16, 32>}]} {
    %c0 = arith.constant 0 : index
    %c0_0 = arith.constant 0 : index
    %0 = vector.load %arg1[%c0, %c0_0] : memref<16x32xf32, #tpu.memory_space<vmem>>, vector<16x32xf32>
    %c0_1 = arith.constant 0 : index
    %c0_2 = arith.constant 0 : index
    %1 = vector.load %arg2[%c0_1, %c0_2] : memref<32x32xf32, #tpu.memory_space<vmem>>, vector<32x32xf32>
    %cst = arith.constant dense<0.000000e+00> : vector<16x32xf32>
    %2 = tpu.matmul %0, %1, %cst {dimension_numbers = #tpu.dot_dimension_numbers<[1], [0], [0], [1], [0, 0, 1, 1], [], []>} : vector<16x32xf32>, vector<32x32xf32>, vector<16x32xf32> -> vector<16x32xf32>
    %c0_3 = arith.constant 0 : index
    %c0_4 = arith.constant 0 : index
    %3 = vector.load %arg3[%c0_3, %c0_4] : memref<1x32xf32, #tpu.memory_space<vmem>>, vector<1x32xf32>
    %4 = vector.broadcast %3 : vector<1x32xf32> to vector<16x32xf32>
    %5 = arith.addf %2, %4 : vector<16x32xf32>
    %c0_5 = arith.constant 0 : index
    %c0_6 = arith.constant 0 : index
    %6 = vector.load %arg4[%c0_5, %c0_6] : memref<16x32xf32, #tpu.memory_space<vmem>>, vector<16x32xf32>
    %7 = arith.addf %6, %5 : vector<16x32xf32>
    %cst_7 = arith.constant dense<0.000000e+00> : vector<16xf32>
    %8 = vector.multi_reduction <add>, %7, %cst_7 [1] : vector<16x32xf32> to vector<16xf32>
    %9 = vector.shape_cast %8 : vector<16xf32> to vector<16x1xf32>
    %cst_8 = arith.constant 3.200000e+01 : f32
    %10 = vector.broadcast %cst_8 : f32 to vector<16x1xf32>
    %11 = arith.divf %9, %10 : vector<16x1xf32>
    %12 = vector.broadcast %11 : vector<16x1xf32> to vector<16x32xf32>
    %13 = arith.subf %7, %12 : vector<16x32xf32>
    %14 = vector.broadcast %11 : vector<16x1xf32> to vector<16x32xf32>
    %15 = arith.subf %7, %14 : vector<16x32xf32>
    %16 = arith.mulf %13, %15 : vector<16x32xf32>
    %cst_9 = arith.constant dense<0.000000e+00> : vector<16xf32>
    %17 = vector.multi_reduction <add>, %16, %cst_9 [1] : vector<16x32xf32> to vector<16xf32>
    %18 = vector.shape_cast %17 : vector<16xf32> to vector<16x1xf32>
    %cst_10 = arith.constant 3.200000e+01 : f32
    %19 = vector.broadcast %cst_10 : f32 to vector<16x1xf32>
    %20 = arith.divf %18, %19 : vector<16x1xf32>
    %21 = vector.broadcast %11 : vector<16x1xf32> to vector<16x32xf32>
    %22 = arith.subf %7, %21 : vector<16x32xf32>
    %cst_11 = arith.constant 9.99999974E-6 : f32
    %23 = vector.broadcast %cst_11 : f32 to vector<16x1xf32>
    %24 = arith.addf %20, %23 : vector<16x1xf32>
    %25 = math.rsqrt %24 : vector<16x1xf32>
    %26 = vector.broadcast %25 : vector<16x1xf32> to vector<16x32xf32>
    %27 = arith.mulf %22, %26 : vector<16x32xf32>
    %c0_12 = arith.constant 0 : index
    %c0_13 = arith.constant 0 : index
    %28 = vector.load %arg5[%c0_12, %c0_13] : memref<1x32xf32, #tpu.memory_space<vmem>>, vector<1x32xf32>
    %29 = vector.broadcast %28 : vector<1x32xf32> to vector<16x32xf32>
    %30 = arith.mulf %27, %29 : vector<16x32xf32>
    %c0_14 = arith.constant 0 : index
    %c0_15 = arith.constant 0 : index
    %31 = vector.load %arg6[%c0_14, %c0_15] : memref<1x32xf32, #tpu.memory_space<vmem>>, vector<1x32xf32>
    %32 = vector.broadcast %31 : vector<1x32xf32> to vector<16x32xf32>
    %33 = arith.addf %30, %32 : vector<16x32xf32>
    %c0_16 = arith.constant 0 : index
    %c0_17 = arith.constant 0 : index
    %34 = vector.load %arg7[%c0_16, %c0_17] : memref<16x32xf32, #tpu.memory_space<vmem>>, vector<16x32xf32>
    tpu.vector_store %arg7[%c0_16, %c0_17], %33 {strides = array<i32>} : memref<16x32xf32, #tpu.memory_space<vmem>>, vector<16x32xf32>,
    return
  }
  func.func @transform_0(%arg0: i32) -> (i32, i32) {
    %c0_i32 = arith.constant 0 : i32
    %c0_i32_0 = arith.constant 0 : i32
    return %arg0, %c0_i32 : i32, i32
  }
  func.func @transform_1(%arg0: i32) -> (i32, i32) {
    %c0_i32 = arith.constant 0 : i32
    %c0_i32_0 = arith.constant 0 : i32
    %c0_i32_1 = arith.constant 0 : i32
    return %c0_i32, %c0_i32_0 : i32, i32
  }
  func.func @transform_2(%arg0: i32) -> (i32, i32) {
    %c0_i32 = arith.constant 0 : i32
    %c0_i32_0 = arith.constant 0 : i32
    %c0_i32_1 = arith.constant 0 : i32
    return %c0_i32, %c0_i32_0 : i32, i32
  }
  func.func @transform_3(%arg0: i32) -> (i32, i32) {
    %c0_i32 = arith.constant 0 : i32
    %c0_i32_0 = arith.constant 0 : i32
    return %arg0, %c0_i32 : i32, i32
  }
  func.func @transform_4(%arg0: i32) -> (i32, i32) {
    %c0_i32 = arith.constant 0 : i32
    %c0_i32_0 = arith.constant 0 : i32
    %c0_i32_1 = arith.constant 0 : i32
    return %c0_i32, %c0_i32_0 : i32, i32
  }
  func.func @transform_5(%arg0: i32) -> (i32, i32) {
    %c0_i32 = arith.constant 0 : i32
    %c0_i32_0 = arith.constant 0 : i32
    %c0_i32_1 = arith.constant 0 : i32
    return %c0_i32, %c0_i32_0 : i32, i32
  }
  func.func @transform_6(%arg0: i32) -> (i32, i32) {
    %c0_i32 = arith.constant 0 : i32
    %c0_i32_0 = arith.constant 0 : i32
    return %arg0, %c0_i32 : i32, i32
  }
}

module attributes {stable_mosaic.version = 11 : i64} {
  func.func @_linear_kernel(%arg0: i32, %arg1: memref<12x32xf32, #tpu.memory_space<vmem>>, %arg2: memref<32x64xf32, #tpu.memory_space<vmem>>, %arg3: memref<1x64xf32, #tpu.memory_space<vmem>>, %arg4: memref<12x64xf32, #tpu.memory_space<vmem>>) attributes {dimension_semantics = [#tpu.dimension_semantics<parallel>], iteration_bounds = array<i64: 1>, scalar_prefetch = 0 : i64, scratch_operands = 0 : i64, tpu.core_type = #tpu.core_type<tc>, window_params = [{transform_indices = @transform_0, window_bounds = array<i64: 12, 32>}, {pipeline_mode = #tpu.pipeline_mode<synchronous>, transform_indices = @transform_1, window_bounds = array<i64: 32, 64>}, {pipeline_mode = #tpu.pipeline_mode<synchronous>, transform_indices = @transform_2, window_bounds = array<i64: 1, 64>}, {transform_indices = @transform_3, window_bounds = array<i64: 12, 64>}]} {
    %c0 = arith.constant 0 : index
    %c0_0 = arith.constant 0 : index
    %0 = vector.load %arg1[%c0, %c0_0] : memref<12x32xf32, #tpu.memory_space<vmem>>, vector<12x32xf32>
    %c0_1 = arith.constant 0 : index
    %c0_2 = arith.constant 0 : index
    %1 = vector.load %arg2[%c0_1, %c0_2] : memref<32x64xf32, #tpu.memory_space<vmem>>, vector<32x64xf32>
    %cst = arith.constant dense<0.000000e+00> : vector<12x64xf32>
    %2 = tpu.matmul %0, %1, %cst {dimension_numbers = #tpu.dot_dimension_numbers<[1], [0], [0], [1], [0, 0, 1, 1], [], []>} : vector<12x32xf32>, vector<32x64xf32>, vector<12x64xf32> -> vector<12x64xf32>
    %c0_3 = arith.constant 0 : index
    %c0_4 = arith.constant 0 : index
    %3 = vector.load %arg3[%c0_3, %c0_4] : memref<1x64xf32, #tpu.memory_space<vmem>>, vector<1x64xf32>
    %4 = vector.broadcast %3 : vector<1x64xf32> to vector<12x64xf32>
    %5 = arith.addf %2, %4 : vector<12x64xf32>
    %c0_5 = arith.constant 0 : index
    %c0_6 = arith.constant 0 : index
    %6 = vector.load %arg4[%c0_5, %c0_6] : memref<12x64xf32, #tpu.memory_space<vmem>>, vector<12x64xf32>
    tpu.vector_store %arg4[%c0_5, %c0_6], %5 {strides = array<i32>} : memref<12x64xf32, #tpu.memory_space<vmem>>, vector<12x64xf32>,
    return
  }
  func.func @transform_0(%arg0: i32) -> (i32, i32) {
    %c0_i32 = arith.constant 0 : i32
    %c0_i32_0 = arith.constant 0 : i32
    return %arg0, %c0_i32 : i32, i32
  }
  func.func @transform_1(%arg0: i32) -> (i32, i32) {
    %c0_i32 = arith.constant 0 : i32
    %c0_i32_0 = arith.constant 0 : i32
    %c0_i32_1 = arith.constant 0 : i32
    return %c0_i32, %c0_i32_0 : i32, i32
  }
  func.func @transform_2(%arg0: i32) -> (i32, i32) {
    %c0_i32 = arith.constant 0 : i32
    %c0_i32_0 = arith.constant 0 : i32
    %c0_i32_1 = arith.constant 0 : i32
    return %c0_i32, %c0_i32_0 : i32, i32
  }
  func.func @transform_3(%arg0: i32) -> (i32, i32) {
    %c0_i32 = arith.constant 0 : i32
    %c0_i32_0 = arith.constant 0 : i32
    return %arg0, %c0_i32 : i32, i32
  }
}

module attributes {stable_mosaic.version = 11 : i64} {
  func.func @_attn_kernel(%arg0: memref<8x8x8xf32, #tpu.memory_space<vmem>>, %arg1: memref<8x6x8xf32, #tpu.memory_space<vmem>>, %arg2: memref<8x6x8xf32, #tpu.memory_space<vmem>>, %arg3: memref<8x8x8xf32, #tpu.memory_space<vmem>>) attributes {dimension_semantics = [], scalar_prefetch = 0 : i64, scratch_operands = 0 : i64, tpu.core_type = #tpu.core_type<tc>} {
    %c0 = arith.constant 0 : index
    %c0_0 = arith.constant 0 : index
    %c0_1 = arith.constant 0 : index
    %0 = vector.load %arg0[%c0, %c0_0, %c0_1] : memref<8x8x8xf32, #tpu.memory_space<vmem>>, vector<8x8x8xf32>
    %cst = arith.constant 0.353553385 : f32
    %1 = vector.broadcast %cst : f32 to vector<8x8x8xf32>
    %2 = arith.mulf %0, %1 : vector<8x8x8xf32>
    %c0_2 = arith.constant 0 : index
    %c0_3 = arith.constant 0 : index
    %c0_4 = arith.constant 0 : index
    %3 = vector.load %arg1[%c0_2, %c0_3, %c0_4] : memref<8x6x8xf32, #tpu.memory_space<vmem>>, vector<8x6x8xf32>
    "tpu.trace_start"() <{level = 10 : i32, message = "bqd,bkd->bqk"}> : () -> ()
    %cst_5 = arith.constant dense<0.000000e+00> : vector<8x8x6xf32>
    %4 = tpu.matmul %2, %3, %cst_5 {dimension_numbers = #tpu.dot_dimension_numbers<[2], [2], [1], [1], [0, 0, 0, 1, 1, 1], [0], [0]>} : vector<8x8x8xf32>, vector<8x6x8xf32>, vector<8x8x6xf32> -> vector<8x8x6xf32>
    "tpu.trace_stop"() : () -> ()
    %cst_6 = arith.constant dense<0xFF800000> : vector<8x8xf32>
    %5 = vector.multi_reduction <maximumf>, %4, %cst_6 [2] : vector<8x8x6xf32> to vector<8x8xf32>
    %6 = vector.shape_cast %5 : vector<8x8xf32> to vector<8x8x1xf32>
    %7 = vector.broadcast %6 : vector<8x8x1xf32> to vector<8x8x6xf32>
    %8 = arith.subf %4, %7 : vector<8x8x6xf32>
    %9 = math.exp %8 : vector<8x8x6xf32>
    %cst_7 = arith.constant dense<0.000000e+00> : vector<8x8xf32>
    %10 = vector.multi_reduction <add>, %9, %cst_7 [2] : vector<8x8x6xf32> to vector<8x8xf32>
    %11 = vector.shape_cast %10 : vector<8x8xf32> to vector<8x8x1xf32>
    %12 = tpu.reciprocal %11 {approx = true} : vector<8x8x1xf32> -> vector<8x8x1xf32>
    %13 = vector.broadcast %12 : vector<8x8x1xf32> to vector<8x8x6xf32>
    %14 = arith.mulf %9, %13 : vector<8x8x6xf32>
    %c0_8 = arith.constant 0 : index
    %c0_9 = arith.constant 0 : index
    %c0_10 = arith.constant 0 : index
    %15 = vector.load %arg2[%c0_8, %c0_9, %c0_10] : memref<8x6x8xf32, #tpu.memory_space<vmem>>, vector<8x6x8xf32>
    "tpu.trace_start"() <{level = 10 : i32, message = "bqk,bkd->bqd"}> : () -> ()
    %cst_11 = arith.constant dense<0.000000e+00> : vector<8x8x8xf32>
    %16 = tpu.matmul %14, %15, %cst_11 {dimension_numbers = #tpu.dot_dimension_numbers<[2], [1], [1], [2], [0, 0, 0, 1, 1, 2], [0], [0]>} : vector<8x8x6xf32>, vector<8x6x8xf32>, vector<8x8x8xf32> -> vector<8x8x8xf32>
    "tpu.trace_stop"() : () -> ()
    %c0_12 = arith.constant 0 : index
    %c0_13 = arith.constant 0 : index
    %c0_14 = arith.constant 0 : index
    %17 = vector.load %arg3[%c0_12, %c0_13, %c0_14] : memref<8x8x8xf32, #tpu.memory_space<vmem>>, vector<8x8x8xf32>
    tpu.vector_store %arg3[%c0_12, %c0_13, %c0_14], %16 {strides = array<i32>} : memref<8x8x8xf32, #tpu.memory_space<vmem>>, vector<8x8x8xf32>,
    return
  }
}

module attributes {stable_mosaic.version = 11 : i64} {
  func.func @_linear_relu_kernel(%arg0: i32, %arg1: memref<16x32xf32, #tpu.memory_space<vmem>>, %arg2: memref<32x2048xf32, #tpu.memory_space<vmem>>, %arg3: memref<1x2048xf32, #tpu.memory_space<vmem>>, %arg4: memref<16x2048xf32, #tpu.memory_space<vmem>>) attributes {dimension_semantics = [#tpu.dimension_semantics<parallel>], iteration_bounds = array<i64: 1>, scalar_prefetch = 0 : i64, scratch_operands = 0 : i64, tpu.core_type = #tpu.core_type<tc>, window_params = [{transform_indices = @transform_0, window_bounds = array<i64: 16, 32>}, {pipeline_mode = #tpu.pipeline_mode<synchronous>, transform_indices = @transform_1, window_bounds = array<i64: 32, 2048>}, {pipeline_mode = #tpu.pipeline_mode<synchronous>, transform_indices = @transform_2, window_bounds = array<i64: 1, 2048>}, {transform_indices = @transform_3, window_bounds = array<i64: 16, 2048>}]} {
    %c0 = arith.constant 0 : index
    %c0_0 = arith.constant 0 : index
    %0 = vector.load %arg1[%c0, %c0_0] : memref<16x32xf32, #tpu.memory_space<vmem>>, vector<16x32xf32>
    %c0_1 = arith.constant 0 : index
    %c0_2 = arith.constant 0 : index
    %1 = vector.load %arg2[%c0_1, %c0_2] : memref<32x2048xf32, #tpu.memory_space<vmem>>, vector<32x2048xf32>
    %cst = arith.constant dense<0.000000e+00> : vector<16x2048xf32>
    %2 = tpu.matmul %0, %1, %cst {dimension_numbers = #tpu.dot_dimension_numbers<[1], [0], [0], [1], [0, 0, 1, 1], [], []>} : vector<16x32xf32>, vector<32x2048xf32>, vector<16x2048xf32> -> vector<16x2048xf32>
    %c0_3 = arith.constant 0 : index
    %c0_4 = arith.constant 0 : index
    %3 = vector.load %arg3[%c0_3, %c0_4] : memref<1x2048xf32, #tpu.memory_space<vmem>>, vector<1x2048xf32>
    %4 = vector.broadcast %3 : vector<1x2048xf32> to vector<16x2048xf32>
    %5 = arith.addf %2, %4 : vector<16x2048xf32>
    %cst_5 = arith.constant 0.000000e+00 : f32
    %6 = vector.broadcast %cst_5 : f32 to vector<16x2048xf32>
    %7 = arith.maximumf %5, %6 : vector<16x2048xf32>
    %c0_6 = arith.constant 0 : index
    %c0_7 = arith.constant 0 : index
    %8 = vector.load %arg4[%c0_6, %c0_7] : memref<16x2048xf32, #tpu.memory_space<vmem>>, vector<16x2048xf32>
    tpu.vector_store %arg4[%c0_6, %c0_7], %7 {strides = array<i32>} : memref<16x2048xf32, #tpu.memory_space<vmem>>, vector<16x2048xf32>,
    return
  }
  func.func @transform_0(%arg0: i32) -> (i32, i32) {
    %c0_i32 = arith.constant 0 : i32
    %c0_i32_0 = arith.constant 0 : i32
    return %arg0, %c0_i32 : i32, i32
  }
  func.func @transform_1(%arg0: i32) -> (i32, i32) {
    %c0_i32 = arith.constant 0 : i32
    %c0_i32_0 = arith.constant 0 : i32
    %c0_i32_1 = arith.constant 0 : i32
    return %c0_i32, %c0_i32_0 : i32, i32
  }
  func.func @transform_2(%arg0: i32) -> (i32, i32) {
    %c0_i32 = arith.constant 0 : i32
    %c0_i32_0 = arith.constant 0 : i32
    %c0_i32_1 = arith.constant 0 : i32
    return %c0_i32, %c0_i32_0 : i32, i32
  }
  func.func @transform_3(%arg0: i32) -> (i32, i32) {
    %c0_i32 = arith.constant 0 : i32
    %c0_i32_0 = arith.constant 0 : i32
    return %arg0, %c0_i32 : i32, i32
  }
}

module attributes {stable_mosaic.version = 11 : i64} {
  func.func @_linear_res_ln_kernel(%arg0: i32, %arg1: memref<16x2048xf32, #tpu.memory_space<vmem>>, %arg2: memref<2048x32xf32, #tpu.memory_space<vmem>>, %arg3: memref<1x32xf32, #tpu.memory_space<vmem>>, %arg4: memref<16x32xf32, #tpu.memory_space<vmem>>, %arg5: memref<1x32xf32, #tpu.memory_space<vmem>>, %arg6: memref<1x32xf32, #tpu.memory_space<vmem>>, %arg7: memref<16x32xf32, #tpu.memory_space<vmem>>) attributes {dimension_semantics = [#tpu.dimension_semantics<parallel>], iteration_bounds = array<i64: 1>, scalar_prefetch = 0 : i64, scratch_operands = 0 : i64, tpu.core_type = #tpu.core_type<tc>, window_params = [{transform_indices = @transform_0, window_bounds = array<i64: 16, 2048>}, {pipeline_mode = #tpu.pipeline_mode<synchronous>, transform_indices = @transform_1, window_bounds = array<i64: 2048, 32>}, {pipeline_mode = #tpu.pipeline_mode<synchronous>, transform_indices = @transform_2, window_bounds = array<i64: 1, 32>}, {transform_indices = @transform_3, window_bounds = array<i64: 16, 32>}, {pipeline_mode = #tpu.pipeline_mode<synchronous>, transform_indices = @transform_4, window_bounds = array<i64: 1, 32>}, {pipeline_mode = #tpu.pipeline_mode<synchronous>, transform_indices = @transform_5, window_bounds = array<i64: 1, 32>}, {transform_indices = @transform_6, window_bounds = array<i64: 16, 32>}]} {
    %c0 = arith.constant 0 : index
    %c0_0 = arith.constant 0 : index
    %0 = vector.load %arg1[%c0, %c0_0] : memref<16x2048xf32, #tpu.memory_space<vmem>>, vector<16x2048xf32>
    %c0_1 = arith.constant 0 : index
    %c0_2 = arith.constant 0 : index
    %1 = vector.load %arg2[%c0_1, %c0_2] : memref<2048x32xf32, #tpu.memory_space<vmem>>, vector<2048x32xf32>
    %cst = arith.constant dense<0.000000e+00> : vector<16x32xf32>
    %2 = tpu.matmul %0, %1, %cst {dimension_numbers = #tpu.dot_dimension_numbers<[1], [0], [0], [1], [0, 0, 1, 1], [], []>} : vector<16x2048xf32>, vector<2048x32xf32>, vector<16x32xf32> -> vector<16x32xf32>
    %c0_3 = arith.constant 0 : index
    %c0_4 = arith.constant 0 : index
    %3 = vector.load %arg3[%c0_3, %c0_4] : memref<1x32xf32, #tpu.memory_space<vmem>>, vector<1x32xf32>
    %4 = vector.broadcast %3 : vector<1x32xf32> to vector<16x32xf32>
    %5 = arith.addf %2, %4 : vector<16x32xf32>
    %c0_5 = arith.constant 0 : index
    %c0_6 = arith.constant 0 : index
    %6 = vector.load %arg4[%c0_5, %c0_6] : memref<16x32xf32, #tpu.memory_space<vmem>>, vector<16x32xf32>
    %7 = arith.addf %6, %5 : vector<16x32xf32>
    %cst_7 = arith.constant dense<0.000000e+00> : vector<16xf32>
    %8 = vector.multi_reduction <add>, %7, %cst_7 [1] : vector<16x32xf32> to vector<16xf32>
    %9 = vector.shape_cast %8 : vector<16xf32> to vector<16x1xf32>
    %cst_8 = arith.constant 3.200000e+01 : f32
    %10 = vector.broadcast %cst_8 : f32 to vector<16x1xf32>
    %11 = arith.divf %9, %10 : vector<16x1xf32>
    %12 = vector.broadcast %11 : vector<16x1xf32> to vector<16x32xf32>
    %13 = arith.subf %7, %12 : vector<16x32xf32>
    %14 = vector.broadcast %11 : vector<16x1xf32> to vector<16x32xf32>
    %15 = arith.subf %7, %14 : vector<16x32xf32>
    %16 = arith.mulf %13, %15 : vector<16x32xf32>
    %cst_9 = arith.constant dense<0.000000e+00> : vector<16xf32>
    %17 = vector.multi_reduction <add>, %16, %cst_9 [1] : vector<16x32xf32> to vector<16xf32>
    %18 = vector.shape_cast %17 : vector<16xf32> to vector<16x1xf32>
    %cst_10 = arith.constant 3.200000e+01 : f32
    %19 = vector.broadcast %cst_10 : f32 to vector<16x1xf32>
    %20 = arith.divf %18, %19 : vector<16x1xf32>
    %21 = vector.broadcast %11 : vector<16x1xf32> to vector<16x32xf32>
    %22 = arith.subf %7, %21 : vector<16x32xf32>
    %cst_11 = arith.constant 9.99999974E-6 : f32
    %23 = vector.broadcast %cst_11 : f32 to vector<16x1xf32>
    %24 = arith.addf %20, %23 : vector<16x1xf32>
    %25 = math.rsqrt %24 : vector<16x1xf32>
    %26 = vector.broadcast %25 : vector<16x1xf32> to vector<16x32xf32>
    %27 = arith.mulf %22, %26 : vector<16x32xf32>
    %c0_12 = arith.constant 0 : index
    %c0_13 = arith.constant 0 : index
    %28 = vector.load %arg5[%c0_12, %c0_13] : memref<1x32xf32, #tpu.memory_space<vmem>>, vector<1x32xf32>
    %29 = vector.broadcast %28 : vector<1x32xf32> to vector<16x32xf32>
    %30 = arith.mulf %27, %29 : vector<16x32xf32>
    %c0_14 = arith.constant 0 : index
    %c0_15 = arith.constant 0 : index
    %31 = vector.load %arg6[%c0_14, %c0_15] : memref<1x32xf32, #tpu.memory_space<vmem>>, vector<1x32xf32>
    %32 = vector.broadcast %31 : vector<1x32xf32> to vector<16x32xf32>
    %33 = arith.addf %30, %32 : vector<16x32xf32>
    %c0_16 = arith.constant 0 : index
    %c0_17 = arith.constant 0 : index
    %34 = vector.load %arg7[%c0_16, %c0_17] : memref<16x32xf32, #tpu.memory_space<vmem>>, vector<16x32xf32>
    tpu.vector_store %arg7[%c0_16, %c0_17], %33 {strides = array<i32>} : memref<16x32xf32, #tpu.memory_space<vmem>>, vector<16x32xf32>,
    return
  }
  func.func @transform_0(%arg0: i32) -> (i32, i32) {
    %c0_i32 = arith.constant 0 : i32
    %c0_i32_0 = arith.constant 0 : i32
    return %arg0, %c0_i32 : i32, i32
  }
  func.func @transform_1(%arg0: i32) -> (i32, i32) {
    %c0_i32 = arith.constant 0 : i32
    %c0_i32_0 = arith.constant 0 : i32
    %c0_i32_1 = arith.constant 0 : i32
    return %c0_i32, %c0_i32_0 : i32, i32
  }
  func.func @transform_2(%arg0: i32) -> (i32, i32) {
    %c0_i32 = arith.constant 0 : i32
    %c0_i32_0 = arith.constant 0 : i32
    %c0_i32_1 = arith.constant 0 : i32
    return %c0_i32, %c0_i32_0 : i32, i32
  }
  func.func @transform_3(%arg0: i32) -> (i32, i32) {
    %c0_i32 = arith.constant 0 : i32
    %c0_i32_0 = arith.constant 0 : i32
    return %arg0, %c0_i32 : i32, i32
  }
  func.func @transform_4(%arg0: i32) -> (i32, i32) {
    %c0_i32 = arith.constant 0 : i32
    %c0_i32_0 = arith.constant 0 : i32
    %c0_i32_1 = arith.constant 0 : i32
    return %c0_i32, %c0_i32_0 : i32, i32
  }
  func.func @transform_5(%arg0: i32) -> (i32, i32) {
    %c0_i32 = arith.constant 0 : i32
    %c0_i32_0 = arith.constant 0 : i32
    %c0_i32_1 = arith.constant 0 : i32
    return %c0_i32, %c0_i32_0 : i32, i32
  }
  func.func @transform_6(%arg0: i32) -> (i32, i32) {
    %c0_i32 = arith.constant 0 : i32
    %c0_i32_0 = arith.constant 0 : i32
    return %arg0, %c0_i32 : i32, i32
  }
}

module attributes {stable_mosaic.version = 11 : i64} {
  func.func @_ln_linear_kernel(%arg0: i32, %arg1: memref<16x32xf32, #tpu.memory_space<vmem>>, %arg2: memref<1x32xf32, #tpu.memory_space<vmem>>, %arg3: memref<1x32xf32, #tpu.memory_space<vmem>>, %arg4: memref<32x128xf32, #tpu.memory_space<vmem>>, %arg5: memref<1x128xf32, #tpu.memory_space<vmem>>, %arg6: memref<16x128xf32, #tpu.memory_space<vmem>>) attributes {dimension_semantics = [#tpu.dimension_semantics<parallel>], iteration_bounds = array<i64: 1>, scalar_prefetch = 0 : i64, scratch_operands = 0 : i64, tpu.core_type = #tpu.core_type<tc>, window_params = [{transform_indices = @transform_0, window_bounds = array<i64: 16, 32>}, {pipeline_mode = #tpu.pipeline_mode<synchronous>, transform_indices = @transform_1, window_bounds = array<i64: 1, 32>}, {pipeline_mode = #tpu.pipeline_mode<synchronous>, transform_indices = @transform_2, window_bounds = array<i64: 1, 32>}, {pipeline_mode = #tpu.pipeline_mode<synchronous>, transform_indices = @transform_3, window_bounds = array<i64: 32, 128>}, {pipeline_mode = #tpu.pipeline_mode<synchronous>, transform_indices = @transform_4, window_bounds = array<i64: 1, 128>}, {transform_indices = @transform_5, window_bounds = array<i64: 16, 128>}]} {
    %c0 = arith.constant 0 : index
    %c0_0 = arith.constant 0 : index
    %0 = vector.load %arg1[%c0, %c0_0] : memref<16x32xf32, #tpu.memory_space<vmem>>, vector<16x32xf32>
    %cst = arith.constant dense<0.000000e+00> : vector<16xf32>
    %1 = vector.multi_reduction <add>, %0, %cst [1] : vector<16x32xf32> to vector<16xf32>
    %2 = vector.shape_cast %1 : vector<16xf32> to vector<16x1xf32>
    %cst_1 = arith.constant 3.200000e+01 : f32
    %3 = vector.broadcast %cst_1 : f32 to vector<16x1xf32>
    %4 = arith.divf %2, %3 : vector<16x1xf32>
    %5 = vector.broadcast %4 : vector<16x1xf32> to vector<16x32xf32>
    %6 = arith.subf %0, %5 : vector<16x32xf32>
    %7 = vector.broadcast %4 : vector<16x1xf32> to vector<16x32xf32>
    %8 = arith.subf %0, %7 : vector<16x32xf32>
    %9 = arith.mulf %6, %8 : vector<16x32xf32>
    %cst_2 = arith.constant dense<0.000000e+00> : vector<16xf32>
    %10 = vector.multi_reduction <add>, %9, %cst_2 [1] : vector<16x32xf32> to vector<16xf32>
    %11 = vector.shape_cast %10 : vector<16xf32> to vector<16x1xf32>
    %cst_3 = arith.constant 3.200000e+01 : f32
    %12 = vector.broadcast %cst_3 : f32 to vector<16x1xf32>
    %13 = arith.divf %11, %12 : vector<16x1xf32>
    %14 = vector.broadcast %4 : vector<16x1xf32> to vector<16x32xf32>
    %15 = arith.subf %0, %14 : vector<16x32xf32>
    %cst_4 = arith.constant 9.99999974E-6 : f32
    %16 = vector.broadcast %cst_4 : f32 to vector<16x1xf32>
    %17 = arith.addf %13, %16 : vector<16x1xf32>
    %18 = math.rsqrt %17 : vector<16x1xf32>
    %19 = vector.broadcast %18 : vector<16x1xf32> to vector<16x32xf32>
    %20 = arith.mulf %15, %19 : vector<16x32xf32>
    %c0_5 = arith.constant 0 : index
    %c0_6 = arith.constant 0 : index
    %21 = vector.load %arg2[%c0_5, %c0_6] : memref<1x32xf32, #tpu.memory_space<vmem>>, vector<1x32xf32>
    %22 = vector.broadcast %21 : vector<1x32xf32> to vector<16x32xf32>
    %23 = arith.mulf %20, %22 : vector<16x32xf32>
    %c0_7 = arith.constant 0 : index
    %c0_8 = arith.constant 0 : index
    %24 = vector.load %arg3[%c0_7, %c0_8] : memref<1x32xf32, #tpu.memory_space<vmem>>, vector<1x32xf32>
    %25 = vector.broadcast %24 : vector<1x32xf32> to vector<16x32xf32>
    %26 = arith.addf %23, %25 : vector<16x32xf32>
    %c0_9 = arith.constant 0 : index
    %c0_10 = arith.constant 0 : index
    %27 = vector.load %arg4[%c0_9, %c0_10] : memref<32x128xf32, #tpu.memory_space<vmem>>, vector<32x128xf32>
    %cst_11 = arith.constant dense<0.000000e+00> : vector<16x128xf32>
    %28 = tpu.matmul %26, %27, %cst_11 {dimension_numbers = #tpu.dot_dimension_numbers<[1], [0], [0], [1], [0, 0, 1, 1], [], []>} : vector<16x32xf32>, vector<32x128xf32>, vector<16x128xf32> -> vector<16x128xf32>
    %c0_12 = arith.constant 0 : index
    %c0_13 = arith.constant 0 : index
    %29 = vector.load %arg5[%c0_12, %c0_13] : memref<1x128xf32, #tpu.memory_space<vmem>>, vector<1x128xf32>
    %30 = vector.broadcast %29 : vector<1x128xf32> to vector<16x128xf32>
    %31 = arith.addf %28, %30 : vector<16x128xf32>
    %c0_14 = arith.constant 0 : index
    %c0_15 = arith.constant 0 : index
    %32 = vector.load %arg6[%c0_14, %c0_15] : memref<16x128xf32, #tpu.memory_space<vmem>>, vector<16x128xf32>
    tpu.vector_store %arg6[%c0_14, %c0_15], %31 {strides = array<i32>} : memref<16x128xf32, #tpu.memory_space<vmem>>, vector<16x128xf32>,
    return
  }
  func.func @transform_0(%arg0: i32) -> (i32, i32) {
    %c0_i32 = arith.constant 0 : i32
    %c0_i32_0 = arith.constant 0 : i32
    return %arg0, %c0_i32 : i32, i32
  }
  func.func @transform_1(%arg0: i32) -> (i32, i32) {
    %c0_i32 = arith.constant 0 : i32
    %c0_i32_0 = arith.constant 0 : i32
    %c0_i32_1 = arith.constant 0 : i32
    return %c0_i32, %c0_i32_0 : i32, i32
  }
  func.func @transform_2(%arg0: i32) -> (i32, i32) {
    %c0_i32 = arith.constant 0 : i32
    %c0_i32_0 = arith.constant 0 : i32
    %c0_i32_1 = arith.constant 0 : i32
    return %c0_i32, %c0_i32_0 : i32, i32
  }
  func.func @transform_3(%arg0: i32) -> (i32, i32) {
    %c0_i32 = arith.constant 0 : i32
    %c0_i32_0 = arith.constant 0 : i32
    %c0_i32_1 = arith.constant 0 : i32
    return %c0_i32, %c0_i32_0 : i32, i32
  }
  func.func @transform_4(%arg0: i32) -> (i32, i32) {
    %c0_i32 = arith.constant 0 : i32
    %c0_i32_0 = arith.constant 0 : i32
    %c0_i32_1 = arith.constant 0 : i32
    return %c0_i32, %c0_i32_0 : i32, i32
  }
  func.func @transform_5(%arg0: i32) -> (i32, i32) {
    %c0_i32 = arith.constant 0 : i32
    %c0_i32_0 = arith.constant 0 : i32
    return %arg0, %c0_i32 : i32, i32
  }
}

</mosaic_0001>

<llo_original>
// kernel: decoder_forward.19
$region0: #{decoder_forward.19}
  #allocation0 [shape = 'u32[]', space=smem, size = 0x4, offset = 0x4, fixed_abs, tag = 'smem constant byte address 0x4 - core index']
  #allocation1 [shape = 'u32[72,128]{1,0:T(1,128)}', space=vmem, size = 0x9000, scoped, tag = 'internal scratch']
  %s0 = inlined_call_operand.vmem [shape: f32[16,32], index: 0, kind: input, shape index: {}]
  %s1 = inlined_call_operand.vmem [shape: f32[32,96], index: 1, kind: input, shape index: {}]
  %s2 = inlined_call_operand.vmem [shape: f32[1,96], index: 2, kind: input, shape index: {}]
  %s3 = inlined_call_operand.vmem [shape: f32[16,96], index: 3, kind: output, shape index: {}]
  %s4 = sld [smem:[#allocation0]]
  $region22: #{decoder_forward.19} parent=0
    _
  %s6 = ssub.s32 1, %s4
  %s7 = scalar_select 0, %s6, %s4
  // Predicated region
  $region2: #{decoder_forward.19} parent=0 // pred_check
    _
  $region3: #{decoder_forward.19} parent=0 // pred_check_branch
    %9 = sbr.rel (0) target = $region5
  $region4: #{decoder_forward.19} parent=0 // pred_region
    _
  $region5: #{decoder_forward.19} parent=0 // pred_fallthru
    _
  // Predicated region
  $region6: #{decoder_forward.19} parent=0 // pred_check
    _
  $region7: #{decoder_forward.19} parent=0 // pred_check_branch
    %11 = sbr.rel (0) target = $region9
  $region8: #{decoder_forward.19} parent=0 // pred_region
    _
  $region9: #{decoder_forward.19} parent=0 // pred_fallthru
    _
  // Predicated region
  $region10: #{decoder_forward.19} parent=0 // pred_check
    _
  $region11: #{decoder_forward.19} parent=0 // pred_check_branch
    %13 = sbr.rel (0) target = $region13
  $region12: #{decoder_forward.19} parent=0 // pred_region
    _
  $region13: #{decoder_forward.19} parent=0 // pred_fallthru
    _
  %v14 = vld [vmem:[%s0] sm:$0xff]
  %v15 = vld [vmem:[%s0 + $0x8] sm:$0xff]
  %v16 = vld [vmem:[%s1] sm:$0xff]
  %v17 = vld [vmem:[%s1 + $0x8] sm:$0xff]
  %v18 = vld [vmem:[%s1 + $0x10] sm:$0xff]
  %v19 = vld [vmem:[%s1 + $0x18] sm:$0xff]
  %v20 = vld [vmem:[%s2] sm:$0x1]
  %v22 = vperm.slane %v20, 0
  %vm24 = vcmask 261120
  %v26 = vsel %vm24, %v14, 0
  %v29 = vsel %vm24, %v15, 0
  %31 = vmatpush.msra.mxu0 0.0
  %32 = vmatpush.msra.mxu0 0.0
  %33 = vmatpush.msra.mxu0 0.0
  %34 = vmatpush.msra.mxu0 0.0
  %35 = vmatpush.msra.mxu0 0.0
  %36 = vmatpush.msra.mxu0 0.0
  %37 = vmatpush.msra.mxu0 0.0
  %38 = vmatpush.msra.mxu0 0.0
  %39 = vmatpush.msra.mxu0 0.0
  %40 = vmatpush.msra.mxu0 0.0
  %41 = vmatpush.msra.mxu0 0.0
  %42 = vmatpush.msra.mxu0 0.0
  %43 = vmatpush.msra.mxu0 %v19
  %44 = vmatpush.msra.mxu0 %v18
  %45 = vmatpush.msra.mxu0 %v17
  %46 = vmatpush.msra.mxu0 %v16
  %47 = vmatmul.f32.gmra.mxu0 %v26
  %v48 = vpop.f32.mrf.mxu0
  %v49 = vadd.f32 %v22, %v48
  %50 = vmatmul.f32.gmra.mxu0 %v29
  %v51 = vpop.f32.mrf.mxu0
  %v52 = vadd.f32 %v22, %v51
  %53 = vdwg.mxu0
  %vm54 = vcmask 785408
  %55 = vst.msk [vmem:[%s3] sm:$0xff] %vm54, %v49
  %56 = vst.msk [vmem:[%s3 + $0x8] sm:$0xff] %vm54, %v52
  // Predicated region
  $region14: #{decoder_forward.19} parent=0 // pred_check
    _
  $region15: #{decoder_forward.19} parent=0 // pred_check_branch
    %58 = sbr.rel (0) target = $region17
  $region16: #{decoder_forward.19} parent=0 // pred_region
    _
  $region17: #{decoder_forward.19} parent=0 // pred_fallthru
    _
  // Predicated region
  $region18: #{decoder_forward.19} parent=0 // pred_check
    _
  $region19: #{decoder_forward.19} parent=0 // pred_check_branch
    %60 = sbr.rel (0) target = $region21
  $region20: #{decoder_forward.19} parent=0 // pred_region
    _
  $region21: #{decoder_forward.19} parent=0 // pred_fallthru
    _

// kernel: decoder_forward.22
$region0: #{decoder_forward.22}
  #allocation0 [shape = 'u32[]', space=smem, size = 0x4, offset = 0x4, fixed_abs, tag = 'smem constant byte address 0x4 - core index']
  #allocation1 [shape = 'u32[72,128]{1,0:T(1,128)}', space=vmem, size = 0x9000, scoped, tag = 'internal scratch']
  %s0 = inlined_call_operand.vmem [shape: f32[16,32], index: 0, kind: input, shape index: {}]
  %s1 = inlined_call_operand.vmem [shape: f32[32,32], index: 1, kind: input, shape index: {}]
  %s2 = inlined_call_operand.vmem [shape: f32[1,32], index: 2, kind: input, shape index: {}]
  %s3 = inlined_call_operand.vmem [shape: f32[16,32], index: 3, kind: output, shape index: {}]
  %s4 = sld [smem:[#allocation0]]
  $region22: #{decoder_forward.22} parent=0
    _
  %s6 = ssub.s32 1, %s4
  %s7 = scalar_select 0, %s6, %s4
  // Predicated region
  $region2: #{decoder_forward.22} parent=0 // pred_check
    _
  $region3: #{decoder_forward.22} parent=0 // pred_check_branch
    %9 = sbr.rel (0) target = $region5
  $region4: #{decoder_forward.22} parent=0 // pred_region
    _
  $region5: #{decoder_forward.22} parent=0 // pred_fallthru
    _
  // Predicated region
  $region6: #{decoder_forward.22} parent=0 // pred_check
    _
  $region7: #{decoder_forward.22} parent=0 // pred_check_branch
    %11 = sbr.rel (0) target = $region9
  $region8: #{decoder_forward.22} parent=0 // pred_region
    _
  $region9: #{decoder_forward.22} parent=0 // pred_fallthru
    _
  // Predicated region
  $region10: #{decoder_forward.22} parent=0 // pred_check
    _
  $region11: #{decoder_forward.22} parent=0 // pred_check_branch
    %13 = sbr.rel (0) target = $region13
  $region12: #{decoder_forward.22} parent=0 // pred_region
    _
  $region13: #{decoder_forward.22} parent=0 // pred_fallthru
    _
  %v14 = vld [vmem:[%s0] sm:$0xff]
  %v15 = vld [vmem:[%s0 + $0x8] sm:$0xff]
  %v16 = vld [vmem:[%s1] sm:$0xff]
  %v17 = vld [vmem:[%s1 + $0x8] sm:$0xff]
  %v18 = vld [vmem:[%s1 + $0x10] sm:$0xff]
  %v19 = vld [vmem:[%s1 + $0x18] sm:$0xff]
  %v20 = vld [vmem:[%s2] sm:$0x1]
  %v22 = vperm.slane %v20, 0
  %vm24 = vcmask 261120
  %v26 = vsel %vm24, %v14, 0
  %v29 = vsel %vm24, %v15, 0
  %31 = vmatpush.msra.mxu0 0.0
  %32 = vmatpush.msra.mxu0 0.0
  %33 = vmatpush.msra.mxu0 0.0
  %34 = vmatpush.msra.mxu0 0.0
  %35 = vmatpush.msra.mxu0 0.0
  %36 = vmatpush.msra.mxu0 0.0
  %37 = vmatpush.msra.mxu0 0.0
  %38 = vmatpush.msra.mxu0 0.0
  %39 = vmatpush.msra.mxu0 0.0
  %40 = vmatpush.msra.mxu0 0.0
  %41 = vmatpush.msra.mxu0 0.0
  %42 = vmatpush.msra.mxu0 0.0
  %43 = vmatpush.msra.mxu0 %v19
  %44 = vmatpush.msra.mxu0 %v18
  %45 = vmatpush.msra.mxu0 %v17
  %46 = vmatpush.msra.mxu0 %v16
  %47 = vmatmul.f32.gmra.mxu0 %v26
  %v48 = vpop.f32.mrf.mxu0
  %v49 = vadd.f32 %v22, %v48
  %50 = vmatmul.f32.gmra.mxu0 %v29
  %v51 = vpop.f32.mrf.mxu0
  %v52 = vadd.f32 %v22, %v51
  %53 = vdwg.mxu0
  %54 = vst.msk [vmem:[%s3] sm:$0xff] %vm24, %v49
  %55 = vst.msk [vmem:[%s3 + $0x8] sm:$0xff] %vm24, %v52
  // Predicated region
  $region14: #{decoder_forward.22} parent=0 // pred_check
    _
  $region15: #{decoder_forward.22} parent=0 // pred_check_branch
    %57 = sbr.rel (0) target = $region17
  $region16: #{decoder_forward.22} parent=0 // pred_region
    _
  $region17: #{decoder_forward.22} parent=0 // pred_fallthru
    _
  // Predicated region
  $region18: #{decoder_forward.22} parent=0 // pred_check
    _
  $region19: #{decoder_forward.22} parent=0 // pred_check_branch
    %59 = sbr.rel (0) target = $region21
  $region20: #{decoder_forward.22} parent=0 // pred_region
    _
  $region21: #{decoder_forward.22} parent=0 // pred_fallthru
    _

// kernel: decoder_forward.21
$region0: #{decoder_forward.21}
  #allocation0 [shape = 'u32[]', space=smem, size = 0x4, offset = 0x4, fixed_abs, tag = 'smem constant byte address 0x4 - core index']
  #allocation1 [shape = 'u32[72,128]{1,0:T(1,128)}', space=vmem, size = 0x9000, scoped, tag = 'internal scratch']
  %s0 = inlined_call_operand.vmem [shape: f32[16,32], index: 0, kind: input, shape index: {}]
  %s1 = inlined_call_operand.vmem [shape: f32[32,32], index: 1, kind: input, shape index: {}]
  %s2 = inlined_call_operand.vmem [shape: f32[1,32], index: 2, kind: input, shape index: {}]
  %s3 = inlined_call_operand.vmem [shape: f32[16,32], index: 3, kind: input, shape index: {}]
  %s4 = inlined_call_operand.vmem [shape: f32[1,32], index: 4, kind: input, shape index: {}]
  %s5 = inlined_call_operand.vmem [shape: f32[1,32], index: 5, kind: input, shape index: {}]
  %s6 = inlined_call_operand.vmem [shape: f32[16,32], index: 6, kind: output, shape index: {}]
  %s7 = sld [smem:[#allocation0]]
  $region34: #{decoder_forward.21} parent=0
    _
  %s9 = ssub.s32 1, %s7
  %s10 = scalar_select 0, %s9, %s7
  // Predicated region
  $region2: #{decoder_forward.21} parent=0 // pred_check
    _
  $region3: #{decoder_forward.21} parent=0 // pred_check_branch
    %12 = sbr.rel (0) target = $region5
  $region4: #{decoder_forward.21} parent=0 // pred_region
    _
  $region5: #{decoder_forward.21} parent=0 // pred_fallthru
    _
  // Predicated region
  $region6: #{decoder_forward.21} parent=0 // pred_check
    _
  $region7: #{decoder_forward.21} parent=0 // pred_check_branch
    %14 = sbr.rel (0) target = $region9
  $region8: #{decoder_forward.21} parent=0 // pred_region
    _
  $region9: #{decoder_forward.21} parent=0 // pred_fallthru
    _
  // Predicated region
  $region10: #{decoder_forward.21} parent=0 // pred_check
    _
  $region11: #{decoder_forward.21} parent=0 // pred_check_branch
    %16 = sbr.rel (0) target = $region13
  $region12: #{decoder_forward.21} parent=0 // pred_region
    _
  $region13: #{decoder_forward.21} parent=0 // pred_fallthru
    _
  // Predicated region
  $region14: #{decoder_forward.21} parent=0 // pred_check
    _
  $region15: #{decoder_forward.21} parent=0 // pred_check_branch
    %18 = sbr.rel (0) target = $region17
  $region16: #{decoder_forward.21} parent=0 // pred_region
    _
  $region17: #{decoder_forward.21} parent=0 // pred_fallthru
    _
  // Predicated region
  $region18: #{decoder_forward.21} parent=0 // pred_check
    _
  $region19: #{decoder_forward.21} parent=0 // pred_check_branch
    %20 = sbr.rel (0) target = $region21
  $region20: #{decoder_forward.21} parent=0 // pred_region
    _
  $region21: #{decoder_forward.21} parent=0 // pred_fallthru
    _
  // Predicated region
  $region22: #{decoder_forward.21} parent=0 // pred_check
    _
  $region23: #{decoder_forward.21} parent=0 // pred_check_branch
    %22 = sbr.rel (0) target = $region25
  $region24: #{decoder_forward.21} parent=0 // pred_region
    _
  $region25: #{decoder_forward.21} parent=0 // pred_fallthru
    _
  %v23 = vld [vmem:[%s0] sm:$0xff]
  %v24 = vld [vmem:[%s0 + $0x8] sm:$0xff]
  %v25 = vld [vmem:[%s1] sm:$0xff]
  %v26 = vld [vmem:[%s1 + $0x8] sm:$0xff]
  %v27 = vld [vmem:[%s1 + $0x10] sm:$0xff]
  %v28 = vld [vmem:[%s1 + $0x18] sm:$0xff]
  %v29 = vld [vmem:[%s2] sm:$0x1]
  %v31 = vperm.slane %v29, 0
  %vm33 = vcmask 261120
  %v35 = vsel %vm33, %v23, 0
  %v38 = vsel %vm33, %v24, 0
  %40 = vmatpush.msra.mxu0 0.0
  %41 = vmatpush.msra.mxu0 0.0
  %42 = vmatpush.msra.mxu0 0.0
  %43 = vmatpush.msra.mxu0 0.0
  %44 = vmatpush.msra.mxu0 0.0
  %45 = vmatpush.msra.mxu0 0.0
  %46 = vmatpush.msra.mxu0 0.0
  %47 = vmatpush.msra.mxu0 0.0
  %48 = vmatpush.msra.mxu0 0.0
  %49 = vmatpush.msra.mxu0 0.0
  %50 = vmatpush.msra.mxu0 0.0
  %51 = vmatpush.msra.mxu0 0.0
  %52 = vmatpush.msra.mxu0 %v28
  %53 = vmatpush.msra.mxu0 %v27
  %54 = vmatpush.msra.mxu0 %v26
  %55 = vmatpush.msra.mxu0 %v25
  %56 = vmatmul.f32.gmra.mxu0 %v35
  %v57 = vpop.f32.mrf.mxu0
  %v58 = vadd.f32 %v31, %v57
  %59 = vmatmul.f32.gmra.mxu0 %v38
  %v60 = vpop.f32.mrf.mxu0
  %v61 = vadd.f32 %v31, %v60
  %62 = vdwg.mxu0
  %v63 = vld [vmem:[%s3] sm:$0xff]
  %v64 = vld [vmem:[%s3 + $0x8] sm:$0xff]
  %v65 = vadd.f32 %v63, %v58
  %v66 = vadd.f32 %v64, %v61
  %v67 = vsel %vm33, %v65, 0.0
  %68 = vadd.xlane.f32.xlu0 %v67
  %v69 = vpop.xlane.xlu0 %68
  %v70 = vsel %vm33, %v66, 0.0
  %71 = vadd.xlane.f32.xlu0 %v70
  %v72 = vpop.xlane.xlu0 %71
  %v73 = vrcp.pop 32.0
  %v74 = vmul.f32 32.0, %v73
  %v75 = vsub.f32 1.0, %v74
  %v76 = vmul.f32 %v73, %v75
  %v77 = vadd.f32 %v73, %v76
  %vm78 = vweird.f32 %v73
  %v79 = vsel %vm78, %v73, %v77
  %v80 = vmul.f32 %v69, %v79
  %v81 = vmul.f32 %v72, %v79
  %v82 = vsub.f32 %v65, %v80
  %v83 = vsub.f32 %v66, %v81
  %v84 = vmul.f32 %v82, %v82
  %v85 = vmul.f32 %v83, %v83
  %v86 = vsel %vm33, %v84, 0.0
  %87 = vadd.xlane.f32.xlu0 %v86
  %v88 = vpop.xlane.xlu0 %87
  %v89 = vsel %vm33, %v85, 0.0
  %90 = vadd.xlane.f32.xlu0 %v89
  %v91 = vpop.xlane.xlu0 %90
  %v92 = vmul.f32 %v88, %v79
  %v93 = vmul.f32 %v91, %v79
  %v94 = vadd.f32 %v92, 1e-05
  %v95 = vadd.f32 %v93, 1e-05
  %v96 = vrsqrt.pop %v94
  %v97 = vmul.f32 %v96, %v94
  %v98 = vmul.f32 %v97, %v96
  %v99 = vmul.f32 0.5, %v98
  %v100 = vsub.f32 1.5, %v99
  %v101 = vmul.f32 %v96, %v100
  %vm102 = vweird.f32 %v94
  %vm103 = vweird.f32 %v96
  %vm104 = vmor %vm102, %vm103
  %v105 = vsel %vm104, %v96, %v101
  %v106 = vrsqrt.pop %v95
  %v107 = vmul.f32 %v106, %v95
  %v108 = vmul.f32 %v107, %v106
  %v109 = vmul.f32 0.5, %v108
  %v110 = vsub.f32 1.5, %v109
  %v111 = vmul.f32 %v106, %v110
  %vm112 = vweird.f32 %v95
  %vm113 = vweird.f32 %v106
  %vm114 = vmor %vm112, %vm113
  %v115 = vsel %vm114, %v106, %v111
  %v116 = vmul.f32 %v82, %v105
  %v117 = vmul.f32 %v83, %v115
  %v118 = vld [vmem:[%s4] sm:$0x1]
  %v120 = vperm.slane %v118, 0
  %v122 = vmul.f32 %v116, %v120
  %v123 = vmul.f32 %v117, %v120
  %v124 = vld [vmem:[%s5] sm:$0x1]
  %v126 = vperm.slane %v124, 0
  %v128 = vadd.f32 %v122, %v126
  %v129 = vadd.f32 %v123, %v126
  %130 = vst.msk [vmem:[%s6] sm:$0xff] %vm33, %v128
  %131 = vst.msk [vmem:[%s6 + $0x8] sm:$0xff] %vm33, %v129
  // Predicated region
  $region26: #{decoder_forward.21} parent=0 // pred_check
    _
  $region27: #{decoder_forward.21} parent=0 // pred_check_branch
    %133 = sbr.rel (0) target = $region29
  $region28: #{decoder_forward.21} parent=0 // pred_region
    _
  $region29: #{decoder_forward.21} parent=0 // pred_fallthru
    _
  // Predicated region
  $region30: #{decoder_forward.21} parent=0 // pred_check
    _
  $region31: #{decoder_forward.21} parent=0 // pred_check_branch
    %135 = sbr.rel (0) target = $region33
  $region32: #{decoder_forward.21} parent=0 // pred_region
    _
  $region33: #{decoder_forward.21} parent=0 // pred_fallthru
    _

// kernel: decoder_forward.20
$region0: #{decoder_forward.20}
  #allocation0 [shape = 'u32[]', space=smem, size = 0x4, offset = 0x4, fixed_abs, tag = 'smem constant byte address 0x4 - core index']
  #allocation1 [shape = 'u32[72,128]{1,0:T(1,128)}', space=vmem, size = 0x9000, scoped, tag = 'internal scratch']
  %s0 = inlined_call_operand.vmem [shape: f32[8,8,8], index: 0, kind: input, shape index: {}]
  %s1 = inlined_call_operand.vmem [shape: f32[8,8,8], index: 1, kind: input, shape index: {}]
  %s2 = inlined_call_operand.vmem [shape: f32[8,8,8], index: 2, kind: input, shape index: {}]
  %s3 = inlined_call_operand.vmem [shape: f32[8,8], index: 3, kind: input, shape index: {}]
  %s4 = inlined_call_operand.vmem [shape: f32[8,8], index: 4, kind: input, shape index: {}]
  %s5 = inlined_call_operand.vmem [shape: f32[8,8,8], index: 5, kind: output, shape index: {}]
  %s6 = sld [smem:[#allocation0]]
  $region30: #{decoder_forward.20} parent=0
    _
  %s8 = ssub.s32 1, %s6
  %s9 = scalar_select 0, %s8, %s6
  // Predicated region
  $region2: #{decoder_forward.20} parent=0 // pred_check
    _
  $region3: #{decoder_forward.20} parent=0 // pred_check_branch
    %11 = sbr.rel (0) target = $region5
  $region4: #{decoder_forward.20} parent=0 // pred_region
    _
  $region5: #{decoder_forward.20} parent=0 // pred_fallthru
    _
  // Predicated region
  $region6: #{decoder_forward.20} parent=0 // pred_check
    _
  $region7: #{decoder_forward.20} parent=0 // pred_check_branch
    %13 = sbr.rel (0) target = $region9
  $region8: #{decoder_forward.20} parent=0 // pred_region
    _
  $region9: #{decoder_forward.20} parent=0 // pred_fallthru
    _
  // Predicated region
  $region10: #{decoder_forward.20} parent=0 // pred_check
    _
  $region11: #{decoder_forward.20} parent=0 // pred_check_branch
    %15 = sbr.rel (0) target = $region13
  $region12: #{decoder_forward.20} parent=0 // pred_region
    _
  $region13: #{decoder_forward.20} parent=0 // pred_fallthru
    _
  // Predicated region
  $region14: #{decoder_forward.20} parent=0 // pred_check
    _
  $region15: #{decoder_forward.20} parent=0 // pred_check_branch
    %17 = sbr.rel (0) target = $region17
  $region16: #{decoder_forward.20} parent=0 // pred_region
    _
  $region17: #{decoder_forward.20} parent=0 // pred_fallthru
    _
  // Predicated region
  $region18: #{decoder_forward.20} parent=0 // pred_check
    _
  $region19: #{decoder_forward.20} parent=0 // pred_check_branch
    %19 = sbr.rel (0) target = $region21
  $region20: #{decoder_forward.20} parent=0 // pred_region
    _
  $region21: #{decoder_forward.20} parent=0 // pred_fallthru
    _
  %v20 = vld [vmem:[%s0] sm:$0xff]
  %v21 = vld [vmem:[%s0 + $0x8] sm:$0xff]
  %v22 = vld [vmem:[%s0 + $0x10] sm:$0xff]
  %v23 = vld [vmem:[%s0 + $0x18] sm:$0xff]
  %v24 = vld [vmem:[%s0 + $0x20] sm:$0xff]
  %v25 = vld [vmem:[%s0 + $0x28] sm:$0xff]
  %v26 = vld [vmem:[%s0 + $0x30] sm:$0xff]
  %v27 = vld [vmem:[%s0 + $0x38] sm:$0xff]
  %v28 = vmul.f32 %v20, 0.35355338
  %v29 = vmul.f32 %v21, 0.35355338
  %v30 = vmul.f32 %v22, 0.35355338
  %v31 = vmul.f32 %v23, 0.35355338
  %v32 = vmul.f32 %v24, 0.35355338
  %v33 = vmul.f32 %v25, 0.35355338
  %v34 = vmul.f32 %v26, 0.35355338
  %v35 = vmul.f32 %v27, 0.35355338
  %v36 = vld [vmem:[%s1] sm:$0xff]
  %v37 = vld [vmem:[%s1 + $0x8] sm:$0xff]
  %v38 = vld [vmem:[%s1 + $0x10] sm:$0xff]
  %v39 = vld [vmem:[%s1 + $0x18] sm:$0xff]
  %v40 = vld [vmem:[%s1 + $0x20] sm:$0xff]
  %v41 = vld [vmem:[%s1 + $0x28] sm:$0xff]
  %v42 = vld [vmem:[%s1 + $0x30] sm:$0xff]
  %v43 = vld [vmem:[%s1 + $0x38] sm:$0xff]
  %v44 = vld [vmem:[%s3] sm:$0xff]
  %vm45 = vcmask 64512
  %v47 = vsel %vm45, %v28, 0
  %v50 = vsel %vm45, %v36, 0
  %52 = vmatpush.xpose.msra.mxu0 0.0
  %53 = vmatpush.xpose.msra.mxu0 0.0
  %54 = vmatpush.xpose.msra.mxu0 0.0
  %55 = vmatpush.xpose.msra.mxu0 0.0
  %56 = vmatpush.xpose.msra.mxu0 0.0
  %57 = vmatpush.xpose.msra.mxu0 0.0
  %58 = vmatpush.xpose.msra.mxu0 0.0
  %59 = vmatpush.xpose.msra.mxu0 0.0
  %60 = vmatpush.xpose.msra.mxu0 0.0
  %61 = vmatpush.xpose.msra.mxu0 0.0
  %62 = vmatpush.xpose.msra.mxu0 0.0
  %63 = vmatpush.xpose.msra.mxu0 0.0
  %64 = vmatpush.xpose.msra.mxu0 0.0
  %65 = vmatpush.xpose.msra.mxu0 0.0
  %66 = vmatpush.xpose.msra.mxu0 0.0
  %67 = vmatpush.xpose.msra.mxu0 %v50
  %68 = vmatmul.f32.gmra.mxu0 %v47
  %v69 = vpop.f32.mrf.mxu0
  %v70 = vadd.f32 %v44, %v69
  %71 = vdwg.mxu0
  %v73 = vsel %vm45, %v29, 0
  %v76 = vsel %vm45, %v37, 0
  %78 = vmatpush.xpose.msra.mxu0 0.0
  %79 = vmatpush.xpose.msra.mxu0 0.0
  %80 = vmatpush.xpose.msra.mxu0 0.0
  %81 = vmatpush.xpose.msra.mxu0 0.0
  %82 = vmatpush.xpose.msra.mxu0 0.0
  %83 = vmatpush.xpose.msra.mxu0 0.0
  %84 = vmatpush.xpose.msra.mxu0 0.0
  %85 = vmatpush.xpose.msra.mxu0 0.0
  %86 = vmatpush.xpose.msra.mxu0 0.0
  %87 = vmatpush.xpose.msra.mxu0 0.0
  %88 = vmatpush.xpose.msra.mxu0 0.0
  %89 = vmatpush.xpose.msra.mxu0 0.0
  %90 = vmatpush.xpose.msra.mxu0 0.0
  %91 = vmatpush.xpose.msra.mxu0 0.0
  %92 = vmatpush.xpose.msra.mxu0 0.0
  %93 = vmatpush.xpose.msra.mxu0 %v76
  %94 = vmatmul.f32.gmra.mxu0 %v73
  %v95 = vpop.f32.mrf.mxu0
  %v96 = vadd.f32 %v44, %v95
  %97 = vdwg.mxu0
  %v99 = vsel %vm45, %v30, 0
  %v102 = vsel %vm45, %v38, 0
  %104 = vmatpush.xpose.msra.mxu0 0.0
  %105 = vmatpush.xpose.msra.mxu0 0.0
  %106 = vmatpush.xpose.msra.mxu0 0.0
  %107 = vmatpush.xpose.msra.mxu0 0.0
  %108 = vmatpush.xpose.msra.mxu0 0.0
  %109 = vmatpush.xpose.msra.mxu0 0.0
  %110 = vmatpush.xpose.msra.mxu0 0.0
  %111 = vmatpush.xpose.msra.mxu0 0.0
  %112 = vmatpush.xpose.msra.mxu0 0.0
  %113 = vmatpush.xpose.msra.mxu0 0.0
  %114 = vmatpush.xpose.msra.mxu0 0.0
  %115 = vmatpush.xpose.msra.mxu0 0.0
  %116 = vmatpush.xpose.msra.mxu0 0.0
  %117 = vmatpush.xpose.msra.mxu0 0.0
  %118 = vmatpush.xpose.msra.mxu0 0.0
  %119 = vmatpush.xpose.msra.mxu0 %v102
  %120 = vmatmul.f32.gmra.mxu0 %v99
  %v121 = vpop.f32.mrf.mxu0
  %v122 = vadd.f32 %v44, %v121
  %123 = vdwg.mxu0
  %v125 = vsel %vm45, %v31, 0
  %v128 = vsel %vm45, %v39, 0
  %130 = vmatpush.xpose.msra.mxu0 0.0
  %131 = vmatpush.xpose.msra.mxu0 0.0
  %132 = vmatpush.xpose.msra.mxu0 0.0
  %133 = vmatpush.xpose.msra.mxu0 0.0
  %134 = vmatpush.xpose.msra.mxu0 0.0
  %135 = vmatpush.xpose.msra.mxu0 0.0
  %136 = vmatpush.xpose.msra.mxu0 0.0
  %137 = vmatpush.xpose.msra.mxu0 0.0
  %138 = vmatpush.xpose.msra.mxu0 0.0
  %139 = vmatpush.xpose.msra.mxu0 0.0
  %140 = vmatpush.xpose.msra.mxu0 0.0
  %141 = vmatpush.xpose.msra.mxu0 0.0
  %142 = vmatpush.xpose.msra.mxu0 0.0
  %143 = vmatpush.xpose.msra.mxu0 0.0
  %144 = vmatpush.xpose.msra.mxu0 0.0
  %145 = vmatpush.xpose.msra.mxu0 %v128
  %146 = vmatmul.f32.gmra.mxu0 %v125
  %v147 = vpop.f32.mrf.mxu0
  %v148 = vadd.f32 %v44, %v147
  %149 = vdwg.mxu0
  %v151 = vsel %vm45, %v32, 0
  %v154 = vsel %vm45, %v40, 0
  %156 = vmatpush.xpose.msra.mxu0 0.0
  %157 = vmatpush.xpose.msra.mxu0 0.0
  %158 = vmatpush.xpose.msra.mxu0 0.0
  %159 = vmatpush.xpose.msra.mxu0 0.0
  %160 = vmatpush.xpose.msra.mxu0 0.0
  %161 = vmatpush.xpose.msra.mxu0 0.0
  %162 = vmatpush.xpose.msra.mxu0 0.0
  %163 = vmatpush.xpose.msra.mxu0 0.0
  %164 = vmatpush.xpose.msra.mxu0 0.0
  %165 = vmatpush.xpose.msra.mxu0 0.0
  %166 = vmatpush.xpose.msra.mxu0 0.0
  %167 = vmatpush.xpose.msra.mxu0 0.0
  %168 = vmatpush.xpose.msra.mxu0 0.0
  %169 = vmatpush.xpose.msra.mxu0 0.0
  %170 = vmatpush.xpose.msra.mxu0 0.0
  %171 = vmatpush.xpose.msra.mxu0 %v154
  %172 = vmatmul.f32.gmra.mxu0 %v151
  %v173 = vpop.f32.mrf.mxu0
  %v174 = vadd.f32 %v44, %v173
  %175 = vdwg.mxu0
  %v177 = vsel %vm45, %v33, 0
  %v180 = vsel %vm45, %v41, 0
  %182 = vmatpush.xpose.msra.mxu0 0.0
  %183 = vmatpush.xpose.msra.mxu0 0.0
  %184 = vmatpush.xpose.msra.mxu0 0.0
  %185 = vmatpush.xpose.msra.mxu0 0.0
  %186 = vmatpush.xpose.msra.mxu0 0.0
  %187 = vmatpush.xpose.msra.mxu0 0.0
  %188 = vmatpush.xpose.msra.mxu0 0.0
  %189 = vmatpush.xpose.msra.mxu0 0.0
  %190 = vmatpush.xpose.msra.mxu0 0.0
  %191 = vmatpush.xpose.msra.mxu0 0.0
  %192 = vmatpush.xpose.msra.mxu0 0.0
  %193 = vmatpush.xpose.msra.mxu0 0.0
  %194 = vmatpush.xpose.msra.mxu0 0.0
  %195 = vmatpush.xpose.msra.mxu0 0.0
  %196 = vmatpush.xpose.msra.mxu0 0.0
  %197 = vmatpush.xpose.msra.mxu0 %v180
  %198 = vmatmul.f32.gmra.mxu0 %v177
  %v199 = vpop.f32.mrf.mxu0
  %v200 = vadd.f32 %v44, %v199
  %201 = vdwg.mxu0
  %v203 = vsel %vm45, %v34, 0
  %v206 = vsel %vm45, %v42, 0
  %208 = vmatpush.xpose.msra.mxu0 0.0
  %209 = vmatpush.xpose.msra.mxu0 0.0
  %210 = vmatpush.xpose.msra.mxu0 0.0
  %211 = vmatpush.xpose.msra.mxu0 0.0
  %212 = vmatpush.xpose.msra.mxu0 0.0
  %213 = vmatpush.xpose.msra.mxu0 0.0
  %214 = vmatpush.xpose.msra.mxu0 0.0
  %215 = vmatpush.xpose.msra.mxu0 0.0
  %216 = vmatpush.xpose.msra.mxu0 0.0
  %217 = vmatpush.xpose.msra.mxu0 0.0
  %218 = vmatpush.xpose.msra.mxu0 0.0
  %219 = vmatpush.xpose.msra.mxu0 0.0
  %220 = vmatpush.xpose.msra.mxu0 0.0
  %221 = vmatpush.xpose.msra.mxu0 0.0
  %222 = vmatpush.xpose.msra.mxu0 0.0
  %223 = vmatpush.xpose.msra.mxu0 %v206
  %224 = vmatmul.f32.gmra.mxu0 %v203
  %v225 = vpop.f32.mrf.mxu0
  %v226 = vadd.f32 %v44, %v225
  %227 = vdwg.mxu0
  %v229 = vsel %vm45, %v35, 0
  %v232 = vsel %vm45, %v43, 0
  %234 = vmatpush.xpose.msra.mxu0 0.0
  %235 = vmatpush.xpose.msra.mxu0 0.0
  %236 = vmatpush.xpose.msra.mxu0 0.0
  %237 = vmatpush.xpose.msra.mxu0 0.0
  %238 = vmatpush.xpose.msra.mxu0 0.0
  %239 = vmatpush.xpose.msra.mxu0 0.0
  %240 = vmatpush.xpose.msra.mxu0 0.0
  %241 = vmatpush.xpose.msra.mxu0 0.0
  %242 = vmatpush.xpose.msra.mxu0 0.0
  %243 = vmatpush.xpose.msra.mxu0 0.0
  %244 = vmatpush.xpose.msra.mxu0 0.0
  %245 = vmatpush.xpose.msra.mxu0 0.0
  %246 = vmatpush.xpose.msra.mxu0 0.0
  %247 = vmatpush.xpose.msra.mxu0 0.0
  %248 = vmatpush.xpose.msra.mxu0 0.0
  %249 = vmatpush.xpose.msra.mxu0 %v232
  %250 = vmatmul.f32.gmra.mxu0 %v229
  %v251 = vpop.f32.mrf.mxu0
  %v252 = vadd.f32 %v44, %v251
  %253 = vdwg.mxu0
  %v254 = vld [vmem:[%s4] sm:$0xff]
  %v256 = vrot.slane %v254, 1
  %v257 = vrot.slane %v254, 2
  %v258 = vrot.slane %v254, 3
  %v259 = vrot.slane %v254, 4
  %v260 = vrot.slane %v254, 5
  %v261 = vrot.slane %v254, 6
  %v262 = vrot.slane %v254, 7
  %v263 = vperm.slane %v254, 0
  %v264 = vperm.slane %v256, 0
  %v265 = vperm.slane %v257, 0
  %v266 = vperm.slane %v258, 0
  %v267 = vperm.slane %v259, 0
  %v268 = vperm.slane %v260, 0
  %v269 = vperm.slane %v261, 0
  %v270 = vperm.slane %v262, 0
  %v279 = vadd.f32 %v70, %v263
  %v280 = vadd.f32 %v96, %v264
  %v281 = vadd.f32 %v122, %v265
  %v282 = vadd.f32 %v148, %v266
  %v283 = vadd.f32 %v174, %v267
  %v284 = vadd.f32 %v200, %v268
  %v285 = vadd.f32 %v226, %v269
  %v286 = vadd.f32 %v252, %v270
  %v287 = vsel %vm45, %v279, -inf
  %288 = vmax.xlane.f32.xlu0 %v287
  %v289 = vpop.xlane.xlu0 %288
  %v290 = vsel %vm45, %v280, -inf
  %291 = vmax.xlane.f32.xlu0 %v290
  %v292 = vpop.xlane.xlu0 %291
  %v293 = vsel %vm45, %v281, -inf
  %294 = vmax.xlane.f32.xlu0 %v293
  %v295 = vpop.xlane.xlu0 %294
  %v296 = vsel %vm45, %v282, -inf
  %297 = vmax.xlane.f32.xlu0 %v296
  %v298 = vpop.xlane.xlu0 %297
  %v299 = vsel %vm45, %v283, -inf
  %300 = vmax.xlane.f32.xlu0 %v299
  %v301 = vpop.xlane.xlu0 %300
  %v302 = vsel %vm45, %v284, -inf
  %303 = vmax.xlane.f32.xlu0 %v302
  %v304 = vpop.xlane.xlu0 %303
  %v305 = vsel %vm45, %v285, -inf
  %306 = vmax.xlane.f32.xlu0 %v305
  %v307 = vpop.xlane.xlu0 %306
  %v308 = vsel %vm45, %v286, -inf
  %309 = vmax.xlane.f32.xlu0 %v308
  %v310 = vpop.xlane.xlu0 %309
  %v311 = vsub.f32 %v279, %v289
  %v312 = vsub.f32 %v280, %v292
  %v313 = vsub.f32 %v281, %v295
  %v314 = vsub.f32 %v282, %v298
  %v315 = vsub.f32 %v283, %v301
  %v316 = vsub.f32 %v284, %v304
  %v317 = vsub.f32 %v285, %v307
  %v318 = vsub.f32 %v286, %v310
  %v319 = vmul.f32 %v311, 1.442695
  %v320 = vpow.pop %v319
  %v321 = vmul.f32 %v312, 1.442695
  %v322 = vpow.pop %v321
  %v323 = vmul.f32 %v313, 1.442695
  %v324 = vpow.pop %v323
  %v325 = vmul.f32 %v314, 1.442695
  %v326 = vpow.pop %v325
  %v327 = vmul.f32 %v315, 1.442695
  %v328 = vpow.pop %v327
  %v329 = vmul.f32 %v316, 1.442695
  %v330 = vpow.pop %v329
  %v331 = vmul.f32 %v317, 1.442695
  %v332 = vpow.pop %v331
  %v333 = vmul.f32 %v318, 1.442695
  %v334 = vpow.pop %v333
  %v335 = vsel %vm45, %v320, 0.0
  %336 = vadd.xlane.f32.xlu0 %v335
  %v337 = vpop.xlane.xlu0 %336
  %v338 = vsel %vm45, %v322, 0.0
  %339 = vadd.xlane.f32.xlu0 %v338
  %v340 = vpop.xlane.xlu0 %339
  %v341 = vsel %vm45, %v324, 0.0
  %342 = vadd.xlane.f32.xlu0 %v341
  %v343 = vpop.xlane.xlu0 %342
  %v344 = vsel %vm45, %v326, 0.0
  %345 = vadd.xlane.f32.xlu0 %v344
  %v346 = vpop.xlane.xlu0 %345
  %v347 = vsel %vm45, %v328, 0.0
  %348 = vadd.xlane.f32.xlu0 %v347
  %v349 = vpop.xlane.xlu0 %348
  %v350 = vsel %vm45, %v330, 0.0
  %351 = vadd.xlane.f32.xlu0 %v350
  %v352 = vpop.xlane.xlu0 %351
  %v353 = vsel %vm45, %v332, 0.0
  %354 = vadd.xlane.f32.xlu0 %v353
  %v355 = vpop.xlane.xlu0 %354
  %v356 = vsel %vm45, %v334, 0.0
  %357 = vadd.xlane.f32.xlu0 %v356
  %v358 = vpop.xlane.xlu0 %357
  %v359 = vrcp.pop %v337
  %v360 = vrcp.pop %v340
  %v361 = vrcp.pop %v343
  %v362 = vrcp.pop %v346
  %v363 = vrcp.pop %v349
  %v364 = vrcp.pop %v352
  %v365 = vrcp.pop %v355
  %v366 = vrcp.pop %v358
  %v367 = vmul.f32 %v320, %v359
  %v368 = vmul.f32 %v322, %v360
  %v369 = vmul.f32 %v324, %v361
  %v370 = vmul.f32 %v326, %v362
  %v371 = vmul.f32 %v328, %v363
  %v372 = vmul.f32 %v330, %v364
  %v373 = vmul.f32 %v332, %v365
  %v374 = vmul.f32 %v334, %v366
  %v375 = vld [vmem:[%s2] sm:$0xff]
  %v376 = vld [vmem:[%s2 + $0x8] sm:$0xff]
  %v377 = vld [vmem:[%s2 + $0x10] sm:$0xff]
  %v378 = vld [vmem:[%s2 + $0x18] sm:$0xff]
  %v379 = vld [vmem:[%s2 + $0x20] sm:$0xff]
  %v380 = vld [vmem:[%s2 + $0x28] sm:$0xff]
  %v381 = vld [vmem:[%s2 + $0x30] sm:$0xff]
  %v382 = vld [vmem:[%s2 + $0x38] sm:$0xff]
  %v384 = vsel %vm45, %v367, 0
  %386 = vmatpush.msra.mxu0 0.0
  %387 = vmatpush.msra.mxu0 0.0
  %388 = vmatpush.msra.mxu0 0.0
  %389 = vmatpush.msra.mxu0 0.0
  %390 = vmatpush.msra.mxu0 0.0
  %391 = vmatpush.msra.mxu0 0.0
  %392 = vmatpush.msra.mxu0 0.0
  %393 = vmatpush.msra.mxu0 0.0
  %394 = vmatpush.msra.mxu0 0.0
  %395 = vmatpush.msra.mxu0 0.0
  %396 = vmatpush.msra.mxu0 0.0
  %397 = vmatpush.msra.mxu0 0.0
  %398 = vmatpush.msra.mxu0 0.0
  %399 = vmatpush.msra.mxu0 0.0
  %400 = vmatpush.msra.mxu0 0.0
  %401 = vmatpush.msra.mxu0 %v375
  %402 = vmatmul.f32.gmra.mxu0 %v384
  %v403 = vpop.f32.mrf.mxu0
  %v404 = vadd.f32 0.0, %v403
  %405 = vdwg.mxu0
  %v407 = vsel %vm45, %v368, 0
  %409 = vmatpush.msra.mxu0 0.0
  %410 = vmatpush.msra.mxu0 0.0
  %411 = vmatpush.msra.mxu0 0.0
  %412 = vmatpush.msra.mxu0 0.0
  %413 = vmatpush.msra.mxu0 0.0
  %414 = vmatpush.msra.mxu0 0.0
  %415 = vmatpush.msra.mxu0 0.0
  %416 = vmatpush.msra.mxu0 0.0
  %417 = vmatpush.msra.mxu0 0.0
  %418 = vmatpush.msra.mxu0 0.0
  %419 = vmatpush.msra.mxu0 0.0
  %420 = vmatpush.msra.mxu0 0.0
  %421 = vmatpush.msra.mxu0 0.0
  %422 = vmatpush.msra.mxu0 0.0
  %423 = vmatpush.msra.mxu0 0.0
  %424 = vmatpush.msra.mxu0 %v376
  %425 = vmatmul.f32.gmra.mxu0 %v407
  %v426 = vpop.f32.mrf.mxu0
  %v427 = vadd.f32 0.0, %v426
  %428 = vdwg.mxu0
  %v430 = vsel %vm45, %v369, 0
  %432 = vmatpush.msra.mxu0 0.0
  %433 = vmatpush.msra.mxu0 0.0
  %434 = vmatpush.msra.mxu0 0.0
  %435 = vmatpush.msra.mxu0 0.0
  %436 = vmatpush.msra.mxu0 0.0
  %437 = vmatpush.msra.mxu0 0.0
  %438 = vmatpush.msra.mxu0 0.0
  %439 = vmatpush.msra.mxu0 0.0
  %440 = vmatpush.msra.mxu0 0.0
  %441 = vmatpush.msra.mxu0 0.0
  %442 = vmatpush.msra.mxu0 0.0
  %443 = vmatpush.msra.mxu0 0.0
  %444 = vmatpush.msra.mxu0 0.0
  %445 = vmatpush.msra.mxu0 0.0
  %446 = vmatpush.msra.mxu0 0.0
  %447 = vmatpush.msra.mxu0 %v377
  %448 = vmatmul.f32.gmra.mxu0 %v430
  %v449 = vpop.f32.mrf.mxu0
  %v450 = vadd.f32 0.0, %v449
  %451 = vdwg.mxu0
  %v453 = vsel %vm45, %v370, 0
  %455 = vmatpush.msra.mxu0 0.0
  %456 = vmatpush.msra.mxu0 0.0
  %457 = vmatpush.msra.mxu0 0.0
  %458 = vmatpush.msra.mxu0 0.0
  %459 = vmatpush.msra.mxu0 0.0
  %460 = vmatpush.msra.mxu0 0.0
  %461 = vmatpush.msra.mxu0 0.0
  %462 = vmatpush.msra.mxu0 0.0
  %463 = vmatpush.msra.mxu0 0.0
  %464 = vmatpush.msra.mxu0 0.0
  %465 = vmatpush.msra.mxu0 0.0
  %466 = vmatpush.msra.mxu0 0.0
  %467 = vmatpush.msra.mxu0 0.0
  %468 = vmatpush.msra.mxu0 0.0
  %469 = vmatpush.msra.mxu0 0.0
  %470 = vmatpush.msra.mxu0 %v378
  %471 = vmatmul.f32.gmra.mxu0 %v453
  %v472 = vpop.f32.mrf.mxu0
  %v473 = vadd.f32 0.0, %v472
  %474 = vdwg.mxu0
  %v476 = vsel %vm45, %v371, 0
  %478 = vmatpush.msra.mxu0 0.0
  %479 = vmatpush.msra.mxu0 0.0
  %480 = vmatpush.msra.mxu0 0.0
  %481 = vmatpush.msra.mxu0 0.0
  %482 = vmatpush.msra.mxu0 0.0
  %483 = vmatpush.msra.mxu0 0.0
  %484 = vmatpush.msra.mxu0 0.0
  %485 = vmatpush.msra.mxu0 0.0
  %486 = vmatpush.msra.mxu0 0.0
  %487 = vmatpush.msra.mxu0 0.0
  %488 = vmatpush.msra.mxu0 0.0
  %489 = vmatpush.msra.mxu0 0.0
  %490 = vmatpush.msra.mxu0 0.0
  %491 = vmatpush.msra.mxu0 0.0
  %492 = vmatpush.msra.mxu0 0.0
  %493 = vmatpush.msra.mxu0 %v379
  %494 = vmatmul.f32.gmra.mxu0 %v476
  %v495 = vpop.f32.mrf.mxu0
  %v496 = vadd.f32 0.0, %v495
  %497 = vdwg.mxu0
  %v499 = vsel %vm45, %v372, 0
  %501 = vmatpush.msra.mxu0 0.0
  %502 = vmatpush.msra.mxu0 0.0
  %503 = vmatpush.msra.mxu0 0.0
  %504 = vmatpush.msra.mxu0 0.0
  %505 = vmatpush.msra.mxu0 0.0
  %506 = vmatpush.msra.mxu0 0.0
  %507 = vmatpush.msra.mxu0 0.0
  %508 = vmatpush.msra.mxu0 0.0
  %509 = vmatpush.msra.mxu0 0.0
  %510 = vmatpush.msra.mxu0 0.0
  %511 = vmatpush.msra.mxu0 0.0
  %512 = vmatpush.msra.mxu0 0.0
  %513 = vmatpush.msra.mxu0 0.0
  %514 = vmatpush.msra.mxu0 0.0
  %515 = vmatpush.msra.mxu0 0.0
  %516 = vmatpush.msra.mxu0 %v380
  %517 = vmatmul.f32.gmra.mxu0 %v499
  %v518 = vpop.f32.mrf.mxu0
  %v519 = vadd.f32 0.0, %v518
  %520 = vdwg.mxu0
  %v522 = vsel %vm45, %v373, 0
  %524 = vmatpush.msra.mxu0 0.0
  %525 = vmatpush.msra.mxu0 0.0
  %526 = vmatpush.msra.mxu0 0.0
  %527 = vmatpush.msra.mxu0 0.0
  %528 = vmatpush.msra.mxu0 0.0
  %529 = vmatpush.msra.mxu0 0.0
  %530 = vmatpush.msra.mxu0 0.0
  %531 = vmatpush.msra.mxu0 0.0
  %532 = vmatpush.msra.mxu0 0.0
  %533 = vmatpush.msra.mxu0 0.0
  %534 = vmatpush.msra.mxu0 0.0
  %535 = vmatpush.msra.mxu0 0.0
  %536 = vmatpush.msra.mxu0 0.0
  %537 = vmatpush.msra.mxu0 0.0
  %538 = vmatpush.msra.mxu0 0.0
  %539 = vmatpush.msra.mxu0 %v381
  %540 = vmatmul.f32.gmra.mxu0 %v522
  %v541 = vpop.f32.mrf.mxu0
  %v542 = vadd.f32 0.0, %v541
  %543 = vdwg.mxu0
  %v545 = vsel %vm45, %v374, 0
  %547 = vmatpush.msra.mxu0 0.0
  %548 = vmatpush.msra.mxu0 0.0
  %549 = vmatpush.msra.mxu0 0.0
  %550 = vmatpush.msra.mxu0 0.0
  %551 = vmatpush.msra.mxu0 0.0
  %552 = vmatpush.msra.mxu0 0.0
  %553 = vmatpush.msra.mxu0 0.0
  %554 = vmatpush.msra.mxu0 0.0
  %555 = vmatpush.msra.mxu0 0.0
  %556 = vmatpush.msra.mxu0 0.0
  %557 = vmatpush.msra.mxu0 0.0
  %558 = vmatpush.msra.mxu0 0.0
  %559 = vmatpush.msra.mxu0 0.0
  %560 = vmatpush.msra.mxu0 0.0
  %561 = vmatpush.msra.mxu0 0.0
  %562 = vmatpush.msra.mxu0 %v382
  %563 = vmatmul.f32.gmra.mxu0 %v545
  %v564 = vpop.f32.mrf.mxu0
  %v565 = vadd.f32 0.0, %v564
  %566 = vdwg.mxu0
  %567 = vst.msk [vmem:[%s5] sm:$0xff] %vm45, %v404
  %568 = vst.msk [vmem:[%s5 + $0x8] sm:$0xff] %vm45, %v427
  %569 = vst.msk [vmem:[%s5 + $0x10] sm:$0xff] %vm45, %v450
  %570 = vst.msk [vmem:[%s5 + $0x18] sm:$0xff] %vm45, %v473
  %571 = vst.msk [vmem:[%s5 + $0x20] sm:$0xff] %vm45, %v496
  %572 = vst.msk [vmem:[%s5 + $0x28] sm:$0xff] %vm45, %v519
  %573 = vst.msk [vmem:[%s5 + $0x30] sm:$0xff] %vm45, %v542
  %574 = vst.msk [vmem:[%s5 + $0x38] sm:$0xff] %vm45, %v565
  // Predicated region
  $region22: #{decoder_forward.20} parent=0 // pred_check
    _
  $region23: #{decoder_forward.20} parent=0 // pred_check_branch
    %576 = sbr.rel (0) target = $region25
  $region24: #{decoder_forward.20} parent=0 // pred_region
    _
  $region25: #{decoder_forward.20} parent=0 // pred_fallthru
    _
  // Predicated region
  $region26: #{decoder_forward.20} parent=0 // pred_check
    _
  $region27: #{decoder_forward.20} parent=0 // pred_check_branch
    %578 = sbr.rel (0) target = $region29
  $region28: #{decoder_forward.20} parent=0 // pred_region
    _
  $region29: #{decoder_forward.20} parent=0 // pred_fallthru
    _

// kernel: decoder_forward.23
$region0: #{decoder_forward.23}
  #allocation0 [shape = 'u32[]', space=smem, size = 0x4, offset = 0x4, fixed_abs, tag = 'smem constant byte address 0x4 - core index']
  #allocation1 [shape = 'u32[72,128]{1,0:T(1,128)}', space=vmem, size = 0x9000, scoped, tag = 'internal scratch']
  %s0 = inlined_call_operand.vmem [shape: f32[12,32], index: 0, kind: input, shape index: {}]
  %s1 = inlined_call_operand.vmem [shape: f32[32,64], index: 1, kind: input, shape index: {}]
  %s2 = inlined_call_operand.vmem [shape: f32[1,64], index: 2, kind: input, shape index: {}]
  %s3 = inlined_call_operand.vmem [shape: f32[12,64], index: 3, kind: output, shape index: {}]
  %s4 = sld [smem:[#allocation0]]
  $region22: #{decoder_forward.23} parent=0
    _
  %s6 = ssub.s32 1, %s4
  %s7 = scalar_select 0, %s6, %s4
  // Predicated region
  $region2: #{decoder_forward.23} parent=0 // pred_check
    _
  $region3: #{decoder_forward.23} parent=0 // pred_check_branch
    %9 = sbr.rel (0) target = $region5
  $region4: #{decoder_forward.23} parent=0 // pred_region
    _
  $region5: #{decoder_forward.23} parent=0 // pred_fallthru
    _
  // Predicated region
  $region6: #{decoder_forward.23} parent=0 // pred_check
    _
  $region7: #{decoder_forward.23} parent=0 // pred_check_branch
    %11 = sbr.rel (0) target = $region9
  $region8: #{decoder_forward.23} parent=0 // pred_region
    _
  $region9: #{decoder_forward.23} parent=0 // pred_fallthru
    _
  // Predicated region
  $region10: #{decoder_forward.23} parent=0 // pred_check
    _
  $region11: #{decoder_forward.23} parent=0 // pred_check_branch
    %13 = sbr.rel (0) target = $region13
  $region12: #{decoder_forward.23} parent=0 // pred_region
    _
  $region13: #{decoder_forward.23} parent=0 // pred_fallthru
    _
  %v14 = vld [vmem:[%s0] sm:$0xff]
  %v15 = vld [vmem:[%s0 + $0x8] sm:$0xf]
  %v16 = vld [vmem:[%s1] sm:$0xff]
  %v17 = vld [vmem:[%s1 + $0x8] sm:$0xff]
  %v18 = vld [vmem:[%s1 + $0x10] sm:$0xff]
  %v19 = vld [vmem:[%s1 + $0x18] sm:$0xff]
  %v20 = vld [vmem:[%s2] sm:$0x1]
  %v22 = vperm.slane %v20, 0
  %vm24 = vcmask 261120
  %v26 = vsel %vm24, %v14, 0
  %v29 = vsel %vm24, %v15, 0
  %31 = vmatpush.msra.mxu0 0.0
  %32 = vmatpush.msra.mxu0 0.0
  %33 = vmatpush.msra.mxu0 0.0
  %34 = vmatpush.msra.mxu0 0.0
  %35 = vmatpush.msra.mxu0 0.0
  %36 = vmatpush.msra.mxu0 0.0
  %37 = vmatpush.msra.mxu0 0.0
  %38 = vmatpush.msra.mxu0 0.0
  %39 = vmatpush.msra.mxu0 0.0
  %40 = vmatpush.msra.mxu0 0.0
  %41 = vmatpush.msra.mxu0 0.0
  %42 = vmatpush.msra.mxu0 0.0
  %43 = vmatpush.msra.mxu0 %v19
  %44 = vmatpush.msra.mxu0 %v18
  %45 = vmatpush.msra.mxu0 %v17
  %46 = vmatpush.msra.mxu0 %v16
  %47 = vmatmul.f32.gmra.mxu0 %v26
  %v48 = vpop.f32.mrf.mxu0
  %v49 = vadd.f32 %v22, %v48
  %50 = vmatmul.f32.gmra.mxu0 %v29
  %v51 = vpop.f32.mrf.mxu0
  %v52 = vadd.f32 %v22, %v51
  %53 = vdwg.mxu0
  %vm54 = vcmask 523264
  %55 = vst.msk [vmem:[%s3] sm:$0xff] %vm54, %v49
  %vm56 = vcmask 519168
  %57 = vst.msk [vmem:[%s3 + $0x8] sm:$0xf] %vm56, %v52
  // Predicated region
  $region14: #{decoder_forward.23} parent=0 // pred_check
    _
  $region15: #{decoder_forward.23} parent=0 // pred_check_branch
    %59 = sbr.rel (0) target = $region17
  $region16: #{decoder_forward.23} parent=0 // pred_region
    _
  $region17: #{decoder_forward.23} parent=0 // pred_fallthru
    _
  // Predicated region
  $region18: #{decoder_forward.23} parent=0 // pred_check
    _
  $region19: #{decoder_forward.23} parent=0 // pred_check_branch
    %61 = sbr.rel (0) target = $region21
  $region20: #{decoder_forward.23} parent=0 // pred_region
    _
  $region21: #{decoder_forward.23} parent=0 // pred_fallthru
    _

// kernel: decoder_forward.24
$region0: #{decoder_forward.24}
  #allocation0 [shape = 'u32[]', space=smem, size = 0x4, offset = 0x4, fixed_abs, tag = 'smem constant byte address 0x4 - core index']
  #allocation1 [shape = 'u32[72,128]{1,0:T(1,128)}', space=vmem, size = 0x9000, scoped, tag = 'internal scratch']
  %s0 = inlined_call_operand.vmem [shape: f32[8,8,8], index: 0, kind: input, shape index: {}]
  %s1 = inlined_call_operand.vmem [shape: f32[8,6,8], index: 1, kind: input, shape index: {}]
  %s2 = inlined_call_operand.vmem [shape: f32[8,6,8], index: 2, kind: input, shape index: {}]
  %s3 = inlined_call_operand.vmem [shape: f32[8,8,8], index: 3, kind: output, shape index: {}]
  %s4 = sld [smem:[#allocation0]]
  $region22: #{decoder_forward.24} parent=0
    _
  %s6 = ssub.s32 1, %s4
  %s7 = scalar_select 0, %s6, %s4
  // Predicated region
  $region2: #{decoder_forward.24} parent=0 // pred_check
    _
  $region3: #{decoder_forward.24} parent=0 // pred_check_branch
    %9 = sbr.rel (0) target = $region5
  $region4: #{decoder_forward.24} parent=0 // pred_region
    _
  $region5: #{decoder_forward.24} parent=0 // pred_fallthru
    _
  // Predicated region
  $region6: #{decoder_forward.24} parent=0 // pred_check
    _
  $region7: #{decoder_forward.24} parent=0 // pred_check_branch
    %11 = sbr.rel (0) target = $region9
  $region8: #{decoder_forward.24} parent=0 // pred_region
    _
  $region9: #{decoder_forward.24} parent=0 // pred_fallthru
    _
  // Predicated region
  $region10: #{decoder_forward.24} parent=0 // pred_check
    _
  $region11: #{decoder_forward.24} parent=0 // pred_check_branch
    %13 = sbr.rel (0) target = $region13
  $region12: #{decoder_forward.24} parent=0 // pred_region
    _
  $region13: #{decoder_forward.24} parent=0 // pred_fallthru
    _
  %v14 = vld [vmem:[%s0] sm:$0xff]
  %v15 = vld [vmem:[%s0 + $0x8] sm:$0xff]
  %v16 = vld [vmem:[%s0 + $0x10] sm:$0xff]
  %v17 = vld [vmem:[%s0 + $0x18] sm:$0xff]
  %v18 = vld [vmem:[%s0 + $0x20] sm:$0xff]
  %v19 = vld [vmem:[%s0 + $0x28] sm:$0xff]
  %v20 = vld [vmem:[%s0 + $0x30] sm:$0xff]
  %v21 = vld [vmem:[%s0 + $0x38] sm:$0xff]
  %v22 = vmul.f32 %v14, 0.35355338
  %v23 = vmul.f32 %v15, 0.35355338
  %v24 = vmul.f32 %v16, 0.35355338
  %v25 = vmul.f32 %v17, 0.35355338
  %v26 = vmul.f32 %v18, 0.35355338
  %v27 = vmul.f32 %v19, 0.35355338
  %v28 = vmul.f32 %v20, 0.35355338
  %v29 = vmul.f32 %v21, 0.35355338
  %v30 = vld [vmem:[%s1] sm:$0x3f]
  %v31 = vld [vmem:[%s1 + $0x8] sm:$0x3f]
  %v32 = vld [vmem:[%s1 + $0x10] sm:$0x3f]
  %v33 = vld [vmem:[%s1 + $0x18] sm:$0x3f]
  %v34 = vld [vmem:[%s1 + $0x20] sm:$0x3f]
  %v35 = vld [vmem:[%s1 + $0x28] sm:$0x3f]
  %v36 = vld [vmem:[%s1 + $0x30] sm:$0x3f]
  %v37 = vld [vmem:[%s1 + $0x38] sm:$0x3f]
  %vm38 = vcmask 64512
  %v40 = vsel %vm38, %v22, 0
  %v43 = vsel %vm38, %v30, 0
  %45 = vmatpush.xpose.msra.mxu0 0.0
  %46 = vmatpush.xpose.msra.mxu0 0.0
  %47 = vmatpush.xpose.msra.mxu0 0.0
  %48 = vmatpush.xpose.msra.mxu0 0.0
  %49 = vmatpush.xpose.msra.mxu0 0.0
  %50 = vmatpush.xpose.msra.mxu0 0.0
  %51 = vmatpush.xpose.msra.mxu0 0.0
  %52 = vmatpush.xpose.msra.mxu0 0.0
  %53 = vmatpush.xpose.msra.mxu0 0.0
  %54 = vmatpush.xpose.msra.mxu0 0.0
  %55 = vmatpush.xpose.msra.mxu0 0.0
  %56 = vmatpush.xpose.msra.mxu0 0.0
  %57 = vmatpush.xpose.msra.mxu0 0.0
  %58 = vmatpush.xpose.msra.mxu0 0.0
  %59 = vmatpush.xpose.msra.mxu0 0.0
  %60 = vmatpush.xpose.msra.mxu0 %v43
  %61 = vmatmul.f32.gmra.mxu0 %v40
  %v62 = vpop.f32.mrf.mxu0
  %v63 = vadd.f32 0.0, %v62
  %64 = vdwg.mxu0
  %v66 = vsel %vm38, %v23, 0
  %v69 = vsel %vm38, %v31, 0
  %71 = vmatpush.xpose.msra.mxu0 0.0
  %72 = vmatpush.xpose.msra.mxu0 0.0
  %73 = vmatpush.xpose.msra.mxu0 0.0
  %74 = vmatpush.xpose.msra.mxu0 0.0
  %75 = vmatpush.xpose.msra.mxu0 0.0
  %76 = vmatpush.xpose.msra.mxu0 0.0
  %77 = vmatpush.xpose.msra.mxu0 0.0
  %78 = vmatpush.xpose.msra.mxu0 0.0
  %79 = vmatpush.xpose.msra.mxu0 0.0
  %80 = vmatpush.xpose.msra.mxu0 0.0
  %81 = vmatpush.xpose.msra.mxu0 0.0
  %82 = vmatpush.xpose.msra.mxu0 0.0
  %83 = vmatpush.xpose.msra.mxu0 0.0
  %84 = vmatpush.xpose.msra.mxu0 0.0
  %85 = vmatpush.xpose.msra.mxu0 0.0
  %86 = vmatpush.xpose.msra.mxu0 %v69
  %87 = vmatmul.f32.gmra.mxu0 %v66
  %v88 = vpop.f32.mrf.mxu0
  %v89 = vadd.f32 0.0, %v88
  %90 = vdwg.mxu0
  %v92 = vsel %vm38, %v24, 0
  %v95 = vsel %vm38, %v32, 0
  %97 = vmatpush.xpose.msra.mxu0 0.0
  %98 = vmatpush.xpose.msra.mxu0 0.0
  %99 = vmatpush.xpose.msra.mxu0 0.0
  %100 = vmatpush.xpose.msra.mxu0 0.0
  %101 = vmatpush.xpose.msra.mxu0 0.0
  %102 = vmatpush.xpose.msra.mxu0 0.0
  %103 = vmatpush.xpose.msra.mxu0 0.0
  %104 = vmatpush.xpose.msra.mxu0 0.0
  %105 = vmatpush.xpose.msra.mxu0 0.0
  %106 = vmatpush.xpose.msra.mxu0 0.0
  %107 = vmatpush.xpose.msra.mxu0 0.0
  %108 = vmatpush.xpose.msra.mxu0 0.0
  %109 = vmatpush.xpose.msra.mxu0 0.0
  %110 = vmatpush.xpose.msra.mxu0 0.0
  %111 = vmatpush.xpose.msra.mxu0 0.0
  %112 = vmatpush.xpose.msra.mxu0 %v95
  %113 = vmatmul.f32.gmra.mxu0 %v92
  %v114 = vpop.f32.mrf.mxu0
  %v115 = vadd.f32 0.0, %v114
  %116 = vdwg.mxu0
  %v118 = vsel %vm38, %v25, 0
  %v121 = vsel %vm38, %v33, 0
  %123 = vmatpush.xpose.msra.mxu0 0.0
  %124 = vmatpush.xpose.msra.mxu0 0.0
  %125 = vmatpush.xpose.msra.mxu0 0.0
  %126 = vmatpush.xpose.msra.mxu0 0.0
  %127 = vmatpush.xpose.msra.mxu0 0.0
  %128 = vmatpush.xpose.msra.mxu0 0.0
  %129 = vmatpush.xpose.msra.mxu0 0.0
  %130 = vmatpush.xpose.msra.mxu0 0.0
  %131 = vmatpush.xpose.msra.mxu0 0.0
  %132 = vmatpush.xpose.msra.mxu0 0.0
  %133 = vmatpush.xpose.msra.mxu0 0.0
  %134 = vmatpush.xpose.msra.mxu0 0.0
  %135 = vmatpush.xpose.msra.mxu0 0.0
  %136 = vmatpush.xpose.msra.mxu0 0.0
  %137 = vmatpush.xpose.msra.mxu0 0.0
  %138 = vmatpush.xpose.msra.mxu0 %v121
  %139 = vmatmul.f32.gmra.mxu0 %v118
  %v140 = vpop.f32.mrf.mxu0
  %v141 = vadd.f32 0.0, %v140
  %142 = vdwg.mxu0
  %v144 = vsel %vm38, %v26, 0
  %v147 = vsel %vm38, %v34, 0
  %149 = vmatpush.xpose.msra.mxu0 0.0
  %150 = vmatpush.xpose.msra.mxu0 0.0
  %151 = vmatpush.xpose.msra.mxu0 0.0
  %152 = vmatpush.xpose.msra.mxu0 0.0
  %153 = vmatpush.xpose.msra.mxu0 0.0
  %154 = vmatpush.xpose.msra.mxu0 0.0
  %155 = vmatpush.xpose.msra.mxu0 0.0
  %156 = vmatpush.xpose.msra.mxu0 0.0
  %157 = vmatpush.xpose.msra.mxu0 0.0
  %158 = vmatpush.xpose.msra.mxu0 0.0
  %159 = vmatpush.xpose.msra.mxu0 0.0
  %160 = vmatpush.xpose.msra.mxu0 0.0
  %161 = vmatpush.xpose.msra.mxu0 0.0
  %162 = vmatpush.xpose.msra.mxu0 0.0
  %163 = vmatpush.xpose.msra.mxu0 0.0
  %164 = vmatpush.xpose.msra.mxu0 %v147
  %165 = vmatmul.f32.gmra.mxu0 %v144
  %v166 = vpop.f32.mrf.mxu0
  %v167 = vadd.f32 0.0, %v166
  %168 = vdwg.mxu0
  %v170 = vsel %vm38, %v27, 0
  %v173 = vsel %vm38, %v35, 0
  %175 = vmatpush.xpose.msra.mxu0 0.0
  %176 = vmatpush.xpose.msra.mxu0 0.0
  %177 = vmatpush.xpose.msra.mxu0 0.0
  %178 = vmatpush.xpose.msra.mxu0 0.0
  %179 = vmatpush.xpose.msra.mxu0 0.0
  %180 = vmatpush.xpose.msra.mxu0 0.0
  %181 = vmatpush.xpose.msra.mxu0 0.0
  %182 = vmatpush.xpose.msra.mxu0 0.0
  %183 = vmatpush.xpose.msra.mxu0 0.0
  %184 = vmatpush.xpose.msra.mxu0 0.0
  %185 = vmatpush.xpose.msra.mxu0 0.0
  %186 = vmatpush.xpose.msra.mxu0 0.0
  %187 = vmatpush.xpose.msra.mxu0 0.0
  %188 = vmatpush.xpose.msra.mxu0 0.0
  %189 = vmatpush.xpose.msra.mxu0 0.0
  %190 = vmatpush.xpose.msra.mxu0 %v173
  %191 = vmatmul.f32.gmra.mxu0 %v170
  %v192 = vpop.f32.mrf.mxu0
  %v193 = vadd.f32 0.0, %v192
  %194 = vdwg.mxu0
  %v196 = vsel %vm38, %v28, 0
  %v199 = vsel %vm38, %v36, 0
  %201 = vmatpush.xpose.msra.mxu0 0.0
  %202 = vmatpush.xpose.msra.mxu0 0.0
  %203 = vmatpush.xpose.msra.mxu0 0.0
  %204 = vmatpush.xpose.msra.mxu0 0.0
  %205 = vmatpush.xpose.msra.mxu0 0.0
  %206 = vmatpush.xpose.msra.mxu0 0.0
  %207 = vmatpush.xpose.msra.mxu0 0.0
  %208 = vmatpush.xpose.msra.mxu0 0.0
  %209 = vmatpush.xpose.msra.mxu0 0.0
  %210 = vmatpush.xpose.msra.mxu0 0.0
  %211 = vmatpush.xpose.msra.mxu0 0.0
  %212 = vmatpush.xpose.msra.mxu0 0.0
  %213 = vmatpush.xpose.msra.mxu0 0.0
  %214 = vmatpush.xpose.msra.mxu0 0.0
  %215 = vmatpush.xpose.msra.mxu0 0.0
  %216 = vmatpush.xpose.msra.mxu0 %v199
  %217 = vmatmul.f32.gmra.mxu0 %v196
  %v218 = vpop.f32.mrf.mxu0
  %v219 = vadd.f32 0.0, %v218
  %220 = vdwg.mxu0
  %v222 = vsel %vm38, %v29, 0
  %v225 = vsel %vm38, %v37, 0
  %227 = vmatpush.xpose.msra.mxu0 0.0
  %228 = vmatpush.xpose.msra.mxu0 0.0
  %229 = vmatpush.xpose.msra.mxu0 0.0
  %230 = vmatpush.xpose.msra.mxu0 0.0
  %231 = vmatpush.xpose.msra.mxu0 0.0
  %232 = vmatpush.xpose.msra.mxu0 0.0
  %233 = vmatpush.xpose.msra.mxu0 0.0
  %234 = vmatpush.xpose.msra.mxu0 0.0
  %235 = vmatpush.xpose.msra.mxu0 0.0
  %236 = vmatpush.xpose.msra.mxu0 0.0
  %237 = vmatpush.xpose.msra.mxu0 0.0
  %238 = vmatpush.xpose.msra.mxu0 0.0
  %239 = vmatpush.xpose.msra.mxu0 0.0
  %240 = vmatpush.xpose.msra.mxu0 0.0
  %241 = vmatpush.xpose.msra.mxu0 0.0
  %242 = vmatpush.xpose.msra.mxu0 %v225
  %243 = vmatmul.f32.gmra.mxu0 %v222
  %v244 = vpop.f32.mrf.mxu0
  %v245 = vadd.f32 0.0, %v244
  %246 = vdwg.mxu0
  %vm247 = vcmask 48128
  %v248 = vsel %vm247, %v63, -inf
  %249 = vmax.xlane.f32.xlu0 %v248
  %v250 = vpop.xlane.xlu0 %249
  %v251 = vsel %vm247, %v89, -inf
  %252 = vmax.xlane.f32.xlu0 %v251
  %v253 = vpop.xlane.xlu0 %252
  %v254 = vsel %vm247, %v115, -inf
  %255 = vmax.xlane.f32.xlu0 %v254
  %v256 = vpop.xlane.xlu0 %255
  %v257 = vsel %vm247, %v141, -inf
  %258 = vmax.xlane.f32.xlu0 %v257
  %v259 = vpop.xlane.xlu0 %258
  %v260 = vsel %vm247, %v167, -inf
  %261 = vmax.xlane.f32.xlu0 %v260
  %v262 = vpop.xlane.xlu0 %261
  %v263 = vsel %vm247, %v193, -inf
  %264 = vmax.xlane.f32.xlu0 %v263
  %v265 = vpop.xlane.xlu0 %264
  %v266 = vsel %vm247, %v219, -inf
  %267 = vmax.xlane.f32.xlu0 %v266
  %v268 = vpop.xlane.xlu0 %267
  %v269 = vsel %vm247, %v245, -inf
  %270 = vmax.xlane.f32.xlu0 %v269
  %v271 = vpop.xlane.xlu0 %270
  %v272 = vsub.f32 %v63, %v250
  %v273 = vsub.f32 %v89, %v253
  %v274 = vsub.f32 %v115, %v256
  %v275 = vsub.f32 %v141, %v259
  %v276 = vsub.f32 %v167, %v262
  %v277 = vsub.f32 %v193, %v265
  %v278 = vsub.f32 %v219, %v268
  %v279 = vsub.f32 %v245, %v271
  %v280 = vmul.f32 %v272, 1.442695
  %v281 = vpow.pop %v280
  %v282 = vmul.f32 %v273, 1.442695
  %v283 = vpow.pop %v282
  %v284 = vmul.f32 %v274, 1.442695
  %v285 = vpow.pop %v284
  %v286 = vmul.f32 %v275, 1.442695
  %v287 = vpow.pop %v286
  %v288 = vmul.f32 %v276, 1.442695
  %v289 = vpow.pop %v288
  %v290 = vmul.f32 %v277, 1.442695
  %v291 = vpow.pop %v290
  %v292 = vmul.f32 %v278, 1.442695
  %v293 = vpow.pop %v292
  %v294 = vmul.f32 %v279, 1.442695
  %v295 = vpow.pop %v294
  %v296 = vsel %vm247, %v281, 0.0
  %297 = vadd.xlane.f32.xlu0 %v296
  %v298 = vpop.xlane.xlu0 %297
  %v299 = vsel %vm247, %v283, 0.0
  %300 = vadd.xlane.f32.xlu0 %v299
  %v301 = vpop.xlane.xlu0 %300
  %v302 = vsel %vm247, %v285, 0.0
  %303 = vadd.xlane.f32.xlu0 %v302
  %v304 = vpop.xlane.xlu0 %303
  %v305 = vsel %vm247, %v287, 0.0
  %306 = vadd.xlane.f32.xlu0 %v305
  %v307 = vpop.xlane.xlu0 %306
  %v308 = vsel %vm247, %v289, 0.0
  %309 = vadd.xlane.f32.xlu0 %v308
  %v310 = vpop.xlane.xlu0 %309
  %v311 = vsel %vm247, %v291, 0.0
  %312 = vadd.xlane.f32.xlu0 %v311
  %v313 = vpop.xlane.xlu0 %312
  %v314 = vsel %vm247, %v293, 0.0
  %315 = vadd.xlane.f32.xlu0 %v314
  %v316 = vpop.xlane.xlu0 %315
  %v317 = vsel %vm247, %v295, 0.0
  %318 = vadd.xlane.f32.xlu0 %v317
  %v319 = vpop.xlane.xlu0 %318
  %v320 = vrcp.pop %v298
  %v321 = vrcp.pop %v301
  %v322 = vrcp.pop %v304
  %v323 = vrcp.pop %v307
  %v324 = vrcp.pop %v310
  %v325 = vrcp.pop %v313
  %v326 = vrcp.pop %v316
  %v327 = vrcp.pop %v319
  %v328 = vmul.f32 %v281, %v320
  %v329 = vmul.f32 %v283, %v321
  %v330 = vmul.f32 %v285, %v322
  %v331 = vmul.f32 %v287, %v323
  %v332 = vmul.f32 %v289, %v324
  %v333 = vmul.f32 %v291, %v325
  %v334 = vmul.f32 %v293, %v326
  %v335 = vmul.f32 %v295, %v327
  %v336 = vld [vmem:[%s2] sm:$0x3f]
  %v337 = vld [vmem:[%s2 + $0x8] sm:$0x3f]
  %v338 = vld [vmem:[%s2 + $0x10] sm:$0x3f]
  %v339 = vld [vmem:[%s2 + $0x18] sm:$0x3f]
  %v340 = vld [vmem:[%s2 + $0x20] sm:$0x3f]
  %v341 = vld [vmem:[%s2 + $0x28] sm:$0x3f]
  %v342 = vld [vmem:[%s2 + $0x30] sm:$0x3f]
  %v343 = vld [vmem:[%s2 + $0x38] sm:$0x3f]
  %v345 = vsel %vm247, %v328, 0
  %vm347 = vcmask 1045504
  %v349 = vsel %vm347, %v336, 0
  %351 = vmatpush.msra.mxu0 0.0
  %352 = vmatpush.msra.mxu0 0.0
  %353 = vmatpush.msra.mxu0 0.0
  %354 = vmatpush.msra.mxu0 0.0
  %355 = vmatpush.msra.mxu0 0.0
  %356 = vmatpush.msra.mxu0 0.0
  %357 = vmatpush.msra.mxu0 0.0
  %358 = vmatpush.msra.mxu0 0.0
  %359 = vmatpush.msra.mxu0 0.0
  %360 = vmatpush.msra.mxu0 0.0
  %361 = vmatpush.msra.mxu0 0.0
  %362 = vmatpush.msra.mxu0 0.0
  %363 = vmatpush.msra.mxu0 0.0
  %364 = vmatpush.msra.mxu0 0.0
  %365 = vmatpush.msra.mxu0 0.0
  %366 = vmatpush.msra.mxu0 %v349
  %367 = vmatmul.f32.gmra.mxu0 %v345
  %v368 = vpop.f32.mrf.mxu0
  %v369 = vadd.f32 0.0, %v368
  %370 = vdwg.mxu0
  %v372 = vsel %vm247, %v329, 0
  %v375 = vsel %vm347, %v337, 0
  %377 = vmatpush.msra.mxu0 0.0
  %378 = vmatpush.msra.mxu0 0.0
  %379 = vmatpush.msra.mxu0 0.0
  %380 = vmatpush.msra.mxu0 0.0
  %381 = vmatpush.msra.mxu0 0.0
  %382 = vmatpush.msra.mxu0 0.0
  %383 = vmatpush.msra.mxu0 0.0
  %384 = vmatpush.msra.mxu0 0.0
  %385 = vmatpush.msra.mxu0 0.0
  %386 = vmatpush.msra.mxu0 0.0
  %387 = vmatpush.msra.mxu0 0.0
  %388 = vmatpush.msra.mxu0 0.0
  %389 = vmatpush.msra.mxu0 0.0
  %390 = vmatpush.msra.mxu0 0.0
  %391 = vmatpush.msra.mxu0 0.0
  %392 = vmatpush.msra.mxu0 %v375
  %393 = vmatmul.f32.gmra.mxu0 %v372
  %v394 = vpop.f32.mrf.mxu0
  %v395 = vadd.f32 0.0, %v394
  %396 = vdwg.mxu0
  %v398 = vsel %vm247, %v330, 0
  %v401 = vsel %vm347, %v338, 0
  %403 = vmatpush.msra.mxu0 0.0
  %404 = vmatpush.msra.mxu0 0.0
  %405 = vmatpush.msra.mxu0 0.0
  %406 = vmatpush.msra.mxu0 0.0
  %407 = vmatpush.msra.mxu0 0.0
  %408 = vmatpush.msra.mxu0 0.0
  %409 = vmatpush.msra.mxu0 0.0
  %410 = vmatpush.msra.mxu0 0.0
  %411 = vmatpush.msra.mxu0 0.0
  %412 = vmatpush.msra.mxu0 0.0
  %413 = vmatpush.msra.mxu0 0.0
  %414 = vmatpush.msra.mxu0 0.0
  %415 = vmatpush.msra.mxu0 0.0
  %416 = vmatpush.msra.mxu0 0.0
  %417 = vmatpush.msra.mxu0 0.0
  %418 = vmatpush.msra.mxu0 %v401
  %419 = vmatmul.f32.gmra.mxu0 %v398
  %v420 = vpop.f32.mrf.mxu0
  %v421 = vadd.f32 0.0, %v420
  %422 = vdwg.mxu0
  %v424 = vsel %vm247, %v331, 0
  %v427 = vsel %vm347, %v339, 0
  %429 = vmatpush.msra.mxu0 0.0
  %430 = vmatpush.msra.mxu0 0.0
  %431 = vmatpush.msra.mxu0 0.0
  %432 = vmatpush.msra.mxu0 0.0
  %433 = vmatpush.msra.mxu0 0.0
  %434 = vmatpush.msra.mxu0 0.0
  %435 = vmatpush.msra.mxu0 0.0
  %436 = vmatpush.msra.mxu0 0.0
  %437 = vmatpush.msra.mxu0 0.0
  %438 = vmatpush.msra.mxu0 0.0
  %439 = vmatpush.msra.mxu0 0.0
  %440 = vmatpush.msra.mxu0 0.0
  %441 = vmatpush.msra.mxu0 0.0
  %442 = vmatpush.msra.mxu0 0.0
  %443 = vmatpush.msra.mxu0 0.0
  %444 = vmatpush.msra.mxu0 %v427
  %445 = vmatmul.f32.gmra.mxu0 %v424
  %v446 = vpop.f32.mrf.mxu0
  %v447 = vadd.f32 0.0, %v446
  %448 = vdwg.mxu0
  %v450 = vsel %vm247, %v332, 0
  %v453 = vsel %vm347, %v340, 0
  %455 = vmatpush.msra.mxu0 0.0
  %456 = vmatpush.msra.mxu0 0.0
  %457 = vmatpush.msra.mxu0 0.0
  %458 = vmatpush.msra.mxu0 0.0
  %459 = vmatpush.msra.mxu0 0.0
  %460 = vmatpush.msra.mxu0 0.0
  %461 = vmatpush.msra.mxu0 0.0
  %462 = vmatpush.msra.mxu0 0.0
  %463 = vmatpush.msra.mxu0 0.0
  %464 = vmatpush.msra.mxu0 0.0
  %465 = vmatpush.msra.mxu0 0.0
  %466 = vmatpush.msra.mxu0 0.0
  %467 = vmatpush.msra.mxu0 0.0
  %468 = vmatpush.msra.mxu0 0.0
  %469 = vmatpush.msra.mxu0 0.0
  %470 = vmatpush.msra.mxu0 %v453
  %471 = vmatmul.f32.gmra.mxu0 %v450
  %v472 = vpop.f32.mrf.mxu0
  %v473 = vadd.f32 0.0, %v472
  %474 = vdwg.mxu0
  %v476 = vsel %vm247, %v333, 0
  %v479 = vsel %vm347, %v341, 0
  %481 = vmatpush.msra.mxu0 0.0
  %482 = vmatpush.msra.mxu0 0.0
  %483 = vmatpush.msra.mxu0 0.0
  %484 = vmatpush.msra.mxu0 0.0
  %485 = vmatpush.msra.mxu0 0.0
  %486 = vmatpush.msra.mxu0 0.0
  %487 = vmatpush.msra.mxu0 0.0
  %488 = vmatpush.msra.mxu0 0.0
  %489 = vmatpush.msra.mxu0 0.0
  %490 = vmatpush.msra.mxu0 0.0
  %491 = vmatpush.msra.mxu0 0.0
  %492 = vmatpush.msra.mxu0 0.0
  %493 = vmatpush.msra.mxu0 0.0
  %494 = vmatpush.msra.mxu0 0.0
  %495 = vmatpush.msra.mxu0 0.0
  %496 = vmatpush.msra.mxu0 %v479
  %497 = vmatmul.f32.gmra.mxu0 %v476
  %v498 = vpop.f32.mrf.mxu0
  %v499 = vadd.f32 0.0, %v498
  %500 = vdwg.mxu0
  %v502 = vsel %vm247, %v334, 0
  %v505 = vsel %vm347, %v342, 0
  %507 = vmatpush.msra.mxu0 0.0
  %508 = vmatpush.msra.mxu0 0.0
  %509 = vmatpush.msra.mxu0 0.0
  %510 = vmatpush.msra.mxu0 0.0
  %511 = vmatpush.msra.mxu0 0.0
  %512 = vmatpush.msra.mxu0 0.0
  %513 = vmatpush.msra.mxu0 0.0
  %514 = vmatpush.msra.mxu0 0.0
  %515 = vmatpush.msra.mxu0 0.0
  %516 = vmatpush.msra.mxu0 0.0
  %517 = vmatpush.msra.mxu0 0.0
  %518 = vmatpush.msra.mxu0 0.0
  %519 = vmatpush.msra.mxu0 0.0
  %520 = vmatpush.msra.mxu0 0.0
  %521 = vmatpush.msra.mxu0 0.0
  %522 = vmatpush.msra.mxu0 %v505
  %523 = vmatmul.f32.gmra.mxu0 %v502
  %v524 = vpop.f32.mrf.mxu0
  %v525 = vadd.f32 0.0, %v524
  %526 = vdwg.mxu0
  %v528 = vsel %vm247, %v335, 0
  %v531 = vsel %vm347, %v343, 0
  %533 = vmatpush.msra.mxu0 0.0
  %534 = vmatpush.msra.mxu0 0.0
  %535 = vmatpush.msra.mxu0 0.0
  %536 = vmatpush.msra.mxu0 0.0
  %537 = vmatpush.msra.mxu0 0.0
  %538 = vmatpush.msra.mxu0 0.0
  %539 = vmatpush.msra.mxu0 0.0
  %540 = vmatpush.msra.mxu0 0.0
  %541 = vmatpush.msra.mxu0 0.0
  %542 = vmatpush.msra.mxu0 0.0
  %543 = vmatpush.msra.mxu0 0.0
  %544 = vmatpush.msra.mxu0 0.0
  %545 = vmatpush.msra.mxu0 0.0
  %546 = vmatpush.msra.mxu0 0.0
  %547 = vmatpush.msra.mxu0 0.0
  %548 = vmatpush.msra.mxu0 %v531
  %549 = vmatmul.f32.gmra.mxu0 %v528
  %v550 = vpop.f32.mrf.mxu0
  %v551 = vadd.f32 0.0, %v550
  %552 = vdwg.mxu0
  %553 = vst.msk [vmem:[%s3] sm:$0xff] %vm38, %v369
  %554 = vst.msk [vmem:[%s3 + $0x8] sm:$0xff] %vm38, %v395
  %555 = vst.msk [vmem:[%s3 + $0x10] sm:$0xff] %vm38, %v421
  %556 = vst.msk [vmem:[%s3 + $0x18] sm:$0xff] %vm38, %v447
  %557 = vst.msk [vmem:[%s3 + $0x20] sm:$0xff] %vm38, %v473
  %558 = vst.msk [vmem:[%s3 + $0x28] sm:$0xff] %vm38, %v499
  %559 = vst.msk [vmem:[%s3 + $0x30] sm:$0xff] %vm38, %v525
  %560 = vst.msk [vmem:[%s3 + $0x38] sm:$0xff] %vm38, %v551
  // Predicated region
  $region14: #{decoder_forward.24} parent=0 // pred_check
    _
  $region15: #{decoder_forward.24} parent=0 // pred_check_branch
    %562 = sbr.rel (0) target = $region17
  $region16: #{decoder_forward.24} parent=0 // pred_region
    _
  $region17: #{decoder_forward.24} parent=0 // pred_fallthru
    _
  // Predicated region
  $region18: #{decoder_forward.24} parent=0 // pred_check
    _
  $region19: #{decoder_forward.24} parent=0 // pred_check_branch
    %564 = sbr.rel (0) target = $region21
  $region20: #{decoder_forward.24} parent=0 // pred_region
    _
  $region21: #{decoder_forward.24} parent=0 // pred_fallthru
    _

// kernel: decoder_forward.26
$region0: #{decoder_forward.26}
  #allocation0 [shape = 'u32[]', space=smem, size = 0x4, offset = 0x4, fixed_abs, tag = 'smem constant byte address 0x4 - core index']
  #allocation1 [shape = 'u32[72,128]{1,0:T(1,128)}', space=vmem, size = 0x9000, scoped, tag = 'internal scratch']
  %s0 = inlined_call_operand.vmem [shape: f32[16,32], index: 0, kind: input, shape index: {}]
  %s1 = inlined_call_operand.vmem [shape: f32[32,2048], index: 1, kind: input, shape index: {}]
  %s2 = inlined_call_operand.vmem [shape: f32[1,2048], index: 2, kind: input, shape index: {}]
  %s3 = inlined_call_operand.vmem [shape: f32[16,2048], index: 3, kind: output, shape index: {}]
  %s4 = sld [smem:[#allocation0]]
  $region22: #{decoder_forward.26} parent=0
    _
  %s6 = ssub.s32 1, %s4
  %s7 = scalar_select 0, %s6, %s4
  // Predicated region
  $region2: #{decoder_forward.26} parent=0 // pred_check
    _
  $region3: #{decoder_forward.26} parent=0 // pred_check_branch
    %9 = sbr.rel (0) target = $region5
  $region4: #{decoder_forward.26} parent=0 // pred_region
    _
  $region5: #{decoder_forward.26} parent=0 // pred_fallthru
    _
  // Predicated region
  $region6: #{decoder_forward.26} parent=0 // pred_check
    _
  $region7: #{decoder_forward.26} parent=0 // pred_check_branch
    %11 = sbr.rel (0) target = $region9
  $region8: #{decoder_forward.26} parent=0 // pred_region
    _
  $region9: #{decoder_forward.26} parent=0 // pred_fallthru
    _
  // Predicated region
  $region10: #{decoder_forward.26} parent=0 // pred_check
    _
  $region11: #{decoder_forward.26} parent=0 // pred_check_branch
    %13 = sbr.rel (0) target = $region13
  $region12: #{decoder_forward.26} parent=0 // pred_region
    _
  $region13: #{decoder_forward.26} parent=0 // pred_fallthru
    _
  %v14 = vld [vmem:[%s0] sm:$0xff]
  %v15 = vld [vmem:[%s0 + $0x8] sm:$0xff]
  %v16 = vld [vmem:[%s1] sm:$0xff]
  %v17 = vld [vmem:[%s1 + $0x8] sm:$0xff]
  %v18 = vld [vmem:[%s1 + $0x10] sm:$0xff]
  %v19 = vld [vmem:[%s1 + $0x18] sm:$0xff]
  %v20 = vld [vmem:[%s1 + $0x20] sm:$0xff]
  %v21 = vld [vmem:[%s1 + $0x28] sm:$0xff]
  %v22 = vld [vmem:[%s1 + $0x30] sm:$0xff]
  %v23 = vld [vmem:[%s1 + $0x38] sm:$0xff]
  %v24 = vld [vmem:[%s1 + $0x40] sm:$0xff]
  %v25 = vld [vmem:[%s1 + $0x48] sm:$0xff]
  %v26 = vld [vmem:[%s1 + $0x50] sm:$0xff]
  %v27 = vld [vmem:[%s1 + $0x58] sm:$0xff]
  %v28 = vld [vmem:[%s1 + $0x60] sm:$0xff]
  %v29 = vld [vmem:[%s1 + $0x68] sm:$0xff]
  %v30 = vld [vmem:[%s1 + $0x70] sm:$0xff]
  %v31 = vld [vmem:[%s1 + $0x78] sm:$0xff]
  %v32 = vld [vmem:[%s1 + $0x80] sm:$0xff]
  %v33 = vld [vmem:[%s1 + $0x88] sm:$0xff]
  %v34 = vld [vmem:[%s1 + $0x90] sm:$0xff]
  %v35 = vld [vmem:[%s1 + $0x98] sm:$0xff]
  %v36 = vld [vmem:[%s1 + $0xa0] sm:$0xff]
  %v37 = vld [vmem:[%s1 + $0xa8] sm:$0xff]
  %v38 = vld [vmem:[%s1 + $0xb0] sm:$0xff]
  %v39 = vld [vmem:[%s1 + $0xb8] sm:$0xff]
  %v40 = vld [vmem:[%s1 + $0xc0] sm:$0xff]
  %v41 = vld [vmem:[%s1 + $0xc8] sm:$0xff]
  %v42 = vld [vmem:[%s1 + $0xd0] sm:$0xff]
  %v43 = vld [vmem:[%s1 + $0xd8] sm:$0xff]
  %v44 = vld [vmem:[%s1 + $0xe0] sm:$0xff]
  %v45 = vld [vmem:[%s1 + $0xe8] sm:$0xff]
  %v46 = vld [vmem:[%s1 + $0xf0] sm:$0xff]
  %v47 = vld [vmem:[%s1 + $0xf8] sm:$0xff]
  %v48 = vld [vmem:[%s1 + $0x100] sm:$0xff]
  %v49 = vld [vmem:[%s1 + $0x108] sm:$0xff]
  %v50 = vld [vmem:[%s1 + $0x110] sm:$0xff]
  %v51 = vld [vmem:[%s1 + $0x118] sm:$0xff]
  %v52 = vld [vmem:[%s1 + $0x120] sm:$0xff]
  %v53 = vld [vmem:[%s1 + $0x128] sm:$0xff]
  %v54 = vld [vmem:[%s1 + $0x130] sm:$0xff]
  %v55 = vld [vmem:[%s1 + $0x138] sm:$0xff]
  %v56 = vld [vmem:[%s1 + $0x140] sm:$0xff]
  %v57 = vld [vmem:[%s1 + $0x148] sm:$0xff]
  %v58 = vld [vmem:[%s1 + $0x150] sm:$0xff]
  %v59 = vld [vmem:[%s1 + $0x158] sm:$0xff]
  %v60 = vld [vmem:[%s1 + $0x160] sm:$0xff]
  %v61 = vld [vmem:[%s1 + $0x168] sm:$0xff]
  %v62 = vld [vmem:[%s1 + $0x170] sm:$0xff]
  %v63 = vld [vmem:[%s1 + $0x178] sm:$0xff]
  %v64 = vld [vmem:[%s1 + $0x180] sm:$0xff]
  %v65 = vld [vmem:[%s1 + $0x188] sm:$0xff]
  %v66 = vld [vmem:[%s1 + $0x190] sm:$0xff]
  %v67 = vld [vmem:[%s1 + $0x198] sm:$0xff]
  %v68 = vld [vmem:[%s1 + $0x1a0] sm:$0xff]
  %v69 = vld [vmem:[%s1 + $0x1a8] sm:$0xff]
  %v70 = vld [vmem:[%s1 + $0x1b0] sm:$0xff]
  %v71 = vld [vmem:[%s1 + $0x1b8] sm:$0xff]
  %v72 = vld [vmem:[%s1 + $0x1c0] sm:$0xff]
  %v73 = vld [vmem:[%s1 + $0x1c8] sm:$0xff]
  %v74 = vld [vmem:[%s1 + $0x1d0] sm:$0xff]
  %v75 = vld [vmem:[%s1 + $0x1d8] sm:$0xff]
  %v76 = vld [vmem:[%s1 + $0x1e0] sm:$0xff]
  %v77 = vld [vmem:[%s1 + $0x1e8] sm:$0xff]
  %v78 = vld [vmem:[%s1 + $0x1f0] sm:$0xff]
  %v79 = vld [vmem:[%s1 + $0x1f8] sm:$0xff]
  %v80 = vld [vmem:[%s2] sm:$0xff]
  %v81 = vld [vmem:[%s2 + $0x8] sm:$0xff]
  %v84 = vperm.slane %v80, 0
  %v85 = vperm.slane %v80, 1
  %v86 = vperm.slane %v80, 2
  %v87 = vperm.slane %v80, 3
  %v88 = vperm.slane %v80, 4
  %v89 = vperm.slane %v80, 5
  %v90 = vperm.slane %v80, 6
  %v91 = vperm.slane %v80, 7
  %v92 = vperm.slane %v81, 0
  %v93 = vperm.slane %v81, 1
  %v94 = vperm.slane %v81, 2
  %v95 = vperm.slane %v81, 3
  %v96 = vperm.slane %v81, 4
  %v97 = vperm.slane %v81, 5
  %v98 = vperm.slane %v81, 6
  %v99 = vperm.slane %v81, 7
  %vm116 = vcmask 261120
  %v118 = vsel %vm116, %v14, 0
  %v121 = vsel %vm116, %v15, 0
  %123 = vmatpush.msra.mxu0 0.0
  %124 = vmatpush.msra.mxu0 0.0
  %125 = vmatpush.msra.mxu0 0.0
  %126 = vmatpush.msra.mxu0 0.0
  %127 = vmatpush.msra.mxu0 0.0
  %128 = vmatpush.msra.mxu0 0.0
  %129 = vmatpush.msra.mxu0 0.0
  %130 = vmatpush.msra.mxu0 0.0
  %131 = vmatpush.msra.mxu0 0.0
  %132 = vmatpush.msra.mxu0 0.0
  %133 = vmatpush.msra.mxu0 0.0
  %134 = vmatpush.msra.mxu0 0.0
  %135 = vmatpush.msra.mxu0 %v64
  %136 = vmatpush.msra.mxu0 %v48
  %137 = vmatpush.msra.mxu0 %v32
  %138 = vmatpush.msra.mxu0 %v16
  %139 = vmatmul.f32.gmra.mxu0 %v118
  %v140 = vpop.f32.mrf.mxu0
  %v141 = vadd.f32 %v84, %v140
  %142 = vmatmul.f32.gmra.mxu0 %v121
  %v143 = vpop.f32.mrf.mxu0
  %v144 = vadd.f32 %v84, %v143
  %145 = vdwg.mxu0
  %146 = vmatpush.msra.mxu0 0.0
  %147 = vmatpush.msra.mxu0 0.0
  %148 = vmatpush.msra.mxu0 0.0
  %149 = vmatpush.msra.mxu0 0.0
  %150 = vmatpush.msra.mxu0 0.0
  %151 = vmatpush.msra.mxu0 0.0
  %152 = vmatpush.msra.mxu0 0.0
  %153 = vmatpush.msra.mxu0 0.0
  %154 = vmatpush.msra.mxu0 0.0
  %155 = vmatpush.msra.mxu0 0.0
  %156 = vmatpush.msra.mxu0 0.0
  %157 = vmatpush.msra.mxu0 0.0
  %158 = vmatpush.msra.mxu0 %v65
  %159 = vmatpush.msra.mxu0 %v49
  %160 = vmatpush.msra.mxu0 %v33
  %161 = vmatpush.msra.mxu0 %v17
  %162 = vmatmul.f32.gmra.mxu0 %v118
  %v163 = vpop.f32.mrf.mxu0
  %v164 = vadd.f32 %v85, %v163
  %165 = vmatmul.f32.gmra.mxu0 %v121
  %v166 = vpop.f32.mrf.mxu0
  %v167 = vadd.f32 %v85, %v166
  %168 = vdwg.mxu0
  %169 = vmatpush.msra.mxu0 0.0
  %170 = vmatpush.msra.mxu0 0.0
  %171 = vmatpush.msra.mxu0 0.0
  %172 = vmatpush.msra.mxu0 0.0
  %173 = vmatpush.msra.mxu0 0.0
  %174 = vmatpush.msra.mxu0 0.0
  %175 = vmatpush.msra.mxu0 0.0
  %176 = vmatpush.msra.mxu0 0.0
  %177 = vmatpush.msra.mxu0 0.0
  %178 = vmatpush.msra.mxu0 0.0
  %179 = vmatpush.msra.mxu0 0.0
  %180 = vmatpush.msra.mxu0 0.0
  %181 = vmatpush.msra.mxu0 %v66
  %182 = vmatpush.msra.mxu0 %v50
  %183 = vmatpush.msra.mxu0 %v34
  %184 = vmatpush.msra.mxu0 %v18
  %185 = vmatmul.f32.gmra.mxu0 %v118
  %v186 = vpop.f32.mrf.mxu0
  %v187 = vadd.f32 %v86, %v186
  %188 = vmatmul.f32.gmra.mxu0 %v121
  %v189 = vpop.f32.mrf.mxu0
  %v190 = vadd.f32 %v86, %v189
  %191 = vdwg.mxu0
  %192 = vmatpush.msra.mxu0 0.0
  %193 = vmatpush.msra.mxu0 0.0
  %194 = vmatpush.msra.mxu0 0.0
  %195 = vmatpush.msra.mxu0 0.0
  %196 = vmatpush.msra.mxu0 0.0
  %197 = vmatpush.msra.mxu0 0.0
  %198 = vmatpush.msra.mxu0 0.0
  %199 = vmatpush.msra.mxu0 0.0
  %200 = vmatpush.msra.mxu0 0.0
  %201 = vmatpush.msra.mxu0 0.0
  %202 = vmatpush.msra.mxu0 0.0
  %203 = vmatpush.msra.mxu0 0.0
  %204 = vmatpush.msra.mxu0 %v67
  %205 = vmatpush.msra.mxu0 %v51
  %206 = vmatpush.msra.mxu0 %v35
  %207 = vmatpush.msra.mxu0 %v19
  %208 = vmatmul.f32.gmra.mxu0 %v118
  %v209 = vpop.f32.mrf.mxu0
  %v210 = vadd.f32 %v87, %v209
  %211 = vmatmul.f32.gmra.mxu0 %v121
  %v212 = vpop.f32.mrf.mxu0
  %v213 = vadd.f32 %v87, %v212
  %214 = vdwg.mxu0
  %215 = vmatpush.msra.mxu0 0.0
  %216 = vmatpush.msra.mxu0 0.0
  %217 = vmatpush.msra.mxu0 0.0
  %218 = vmatpush.msra.mxu0 0.0
  %219 = vmatpush.msra.mxu0 0.0
  %220 = vmatpush.msra.mxu0 0.0
  %221 = vmatpush.msra.mxu0 0.0
  %222 = vmatpush.msra.mxu0 0.0
  %223 = vmatpush.msra.mxu0 0.0
  %224 = vmatpush.msra.mxu0 0.0
  %225 = vmatpush.msra.mxu0 0.0
  %226 = vmatpush.msra.mxu0 0.0
  %227 = vmatpush.msra.mxu0 %v68
  %228 = vmatpush.msra.mxu0 %v52
  %229 = vmatpush.msra.mxu0 %v36
  %230 = vmatpush.msra.mxu0 %v20
  %231 = vmatmul.f32.gmra.mxu0 %v118
  %v232 = vpop.f32.mrf.mxu0
  %v233 = vadd.f32 %v88, %v232
  %234 = vmatmul.f32.gmra.mxu0 %v121
  %v235 = vpop.f32.mrf.mxu0
  %v236 = vadd.f32 %v88, %v235
  %237 = vdwg.mxu0
  %238 = vmatpush.msra.mxu0 0.0
  %239 = vmatpush.msra.mxu0 0.0
  %240 = vmatpush.msra.mxu0 0.0
  %241 = vmatpush.msra.mxu0 0.0
  %242 = vmatpush.msra.mxu0 0.0
  %243 = vmatpush.msra.mxu0 0.0
  %244 = vmatpush.msra.mxu0 0.0
  %245 = vmatpush.msra.mxu0 0.0
  %246 = vmatpush.msra.mxu0 0.0
  %247 = vmatpush.msra.mxu0 0.0
  %248 = vmatpush.msra.mxu0 0.0
  %249 = vmatpush.msra.mxu0 0.0
  %250 = vmatpush.msra.mxu0 %v69
  %251 = vmatpush.msra.mxu0 %v53
  %252 = vmatpush.msra.mxu0 %v37
  %253 = vmatpush.msra.mxu0 %v21
  %254 = vmatmul.f32.gmra.mxu0 %v118
  %v255 = vpop.f32.mrf.mxu0
  %v256 = vadd.f32 %v89, %v255
  %257 = vmatmul.f32.gmra.mxu0 %v121
  %v258 = vpop.f32.mrf.mxu0
  %v259 = vadd.f32 %v89, %v258
  %260 = vdwg.mxu0
  %261 = vmatpush.msra.mxu0 0.0
  %262 = vmatpush.msra.mxu0 0.0
  %263 = vmatpush.msra.mxu0 0.0
  %264 = vmatpush.msra.mxu0 0.0
  %265 = vmatpush.msra.mxu0 0.0
  %266 = vmatpush.msra.mxu0 0.0
  %267 = vmatpush.msra.mxu0 0.0
  %268 = vmatpush.msra.mxu0 0.0
  %269 = vmatpush.msra.mxu0 0.0
  %270 = vmatpush.msra.mxu0 0.0
  %271 = vmatpush.msra.mxu0 0.0
  %272 = vmatpush.msra.mxu0 0.0
  %273 = vmatpush.msra.mxu0 %v70
  %274 = vmatpush.msra.mxu0 %v54
  %275 = vmatpush.msra.mxu0 %v38
  %276 = vmatpush.msra.mxu0 %v22
  %277 = vmatmul.f32.gmra.mxu0 %v118
  %v278 = vpop.f32.mrf.mxu0
  %v279 = vadd.f32 %v90, %v278
  %280 = vmatmul.f32.gmra.mxu0 %v121
  %v281 = vpop.f32.mrf.mxu0
  %v282 = vadd.f32 %v90, %v281
  %283 = vdwg.mxu0
  %284 = vmatpush.msra.mxu0 0.0
  %285 = vmatpush.msra.mxu0 0.0
  %286 = vmatpush.msra.mxu0 0.0
  %287 = vmatpush.msra.mxu0 0.0
  %288 = vmatpush.msra.mxu0 0.0
  %289 = vmatpush.msra.mxu0 0.0
  %290 = vmatpush.msra.mxu0 0.0
  %291 = vmatpush.msra.mxu0 0.0
  %292 = vmatpush.msra.mxu0 0.0
  %293 = vmatpush.msra.mxu0 0.0
  %294 = vmatpush.msra.mxu0 0.0
  %295 = vmatpush.msra.mxu0 0.0
  %296 = vmatpush.msra.mxu0 %v71
  %297 = vmatpush.msra.mxu0 %v55
  %298 = vmatpush.msra.mxu0 %v39
  %299 = vmatpush.msra.mxu0 %v23
  %300 = vmatmul.f32.gmra.mxu0 %v118
  %v301 = vpop.f32.mrf.mxu0
  %v302 = vadd.f32 %v91, %v301
  %303 = vmatmul.f32.gmra.mxu0 %v121
  %v304 = vpop.f32.mrf.mxu0
  %v305 = vadd.f32 %v91, %v304
  %306 = vdwg.mxu0
  %307 = vmatpush.msra.mxu0 0.0
  %308 = vmatpush.msra.mxu0 0.0
  %309 = vmatpush.msra.mxu0 0.0
  %310 = vmatpush.msra.mxu0 0.0
  %311 = vmatpush.msra.mxu0 0.0
  %312 = vmatpush.msra.mxu0 0.0
  %313 = vmatpush.msra.mxu0 0.0
  %314 = vmatpush.msra.mxu0 0.0
  %315 = vmatpush.msra.mxu0 0.0
  %316 = vmatpush.msra.mxu0 0.0
  %317 = vmatpush.msra.mxu0 0.0
  %318 = vmatpush.msra.mxu0 0.0
  %319 = vmatpush.msra.mxu0 %v72
  %320 = vmatpush.msra.mxu0 %v56
  %321 = vmatpush.msra.mxu0 %v40
  %322 = vmatpush.msra.mxu0 %v24
  %323 = vmatmul.f32.gmra.mxu0 %v118
  %v324 = vpop.f32.mrf.mxu0
  %v325 = vadd.f32 %v92, %v324
  %326 = vmatmul.f32.gmra.mxu0 %v121
  %v327 = vpop.f32.mrf.mxu0
  %v328 = vadd.f32 %v92, %v327
  %329 = vdwg.mxu0
  %330 = vmatpush.msra.mxu0 0.0
  %331 = vmatpush.msra.mxu0 0.0
  %332 = vmatpush.msra.mxu0 0.0
  %333 = vmatpush.msra.mxu0 0.0
  %334 = vmatpush.msra.mxu0 0.0
  %335 = vmatpush.msra.mxu0 0.0
  %336 = vmatpush.msra.mxu0 0.0
  %337 = vmatpush.msra.mxu0 0.0
  %338 = vmatpush.msra.mxu0 0.0
  %339 = vmatpush.msra.mxu0 0.0
  %340 = vmatpush.msra.mxu0 0.0
  %341 = vmatpush.msra.mxu0 0.0
  %342 = vmatpush.msra.mxu0 %v73
  %343 = vmatpush.msra.mxu0 %v57
  %344 = vmatpush.msra.mxu0 %v41
  %345 = vmatpush.msra.mxu0 %v25
  %346 = vmatmul.f32.gmra.mxu0 %v118
  %v347 = vpop.f32.mrf.mxu0
  %v348 = vadd.f32 %v93, %v347
  %349 = vmatmul.f32.gmra.mxu0 %v121
  %v350 = vpop.f32.mrf.mxu0
  %v351 = vadd.f32 %v93, %v350
  %352 = vdwg.mxu0
  %353 = vmatpush.msra.mxu0 0.0
  %354 = vmatpush.msra.mxu0 0.0
  %355 = vmatpush.msra.mxu0 0.0
  %356 = vmatpush.msra.mxu0 0.0
  %357 = vmatpush.msra.mxu0 0.0
  %358 = vmatpush.msra.mxu0 0.0
  %359 = vmatpush.msra.mxu0 0.0
  %360 = vmatpush.msra.mxu0 0.0
  %361 = vmatpush.msra.mxu0 0.0
  %362 = vmatpush.msra.mxu0 0.0
  %363 = vmatpush.msra.mxu0 0.0
  %364 = vmatpush.msra.mxu0 0.0
  %365 = vmatpush.msra.mxu0 %v74
  %366 = vmatpush.msra.mxu0 %v58
  %367 = vmatpush.msra.mxu0 %v42
  %368 = vmatpush.msra.mxu0 %v26
  %369 = vmatmul.f32.gmra.mxu0 %v118
  %v370 = vpop.f32.mrf.mxu0
  %v371 = vadd.f32 %v94, %v370
  %372 = vmatmul.f32.gmra.mxu0 %v121
  %v373 = vpop.f32.mrf.mxu0
  %v374 = vadd.f32 %v94, %v373
  %375 = vdwg.mxu0
  %376 = vmatpush.msra.mxu0 0.0
  %377 = vmatpush.msra.mxu0 0.0
  %378 = vmatpush.msra.mxu0 0.0
  %379 = vmatpush.msra.mxu0 0.0
  %380 = vmatpush.msra.mxu0 0.0
  %381 = vmatpush.msra.mxu0 0.0
  %382 = vmatpush.msra.mxu0 0.0
  %383 = vmatpush.msra.mxu0 0.0
  %384 = vmatpush.msra.mxu0 0.0
  %385 = vmatpush.msra.mxu0 0.0
  %386 = vmatpush.msra.mxu0 0.0
  %387 = vmatpush.msra.mxu0 0.0
  %388 = vmatpush.msra.mxu0 %v75
  %389 = vmatpush.msra.mxu0 %v59
  %390 = vmatpush.msra.mxu0 %v43
  %391 = vmatpush.msra.mxu0 %v27
  %392 = vmatmul.f32.gmra.mxu0 %v118
  %v393 = vpop.f32.mrf.mxu0
  %v394 = vadd.f32 %v95, %v393
  %395 = vmatmul.f32.gmra.mxu0 %v121
  %v396 = vpop.f32.mrf.mxu0
  %v397 = vadd.f32 %v95, %v396
  %398 = vdwg.mxu0
  %399 = vmatpush.msra.mxu0 0.0
  %400 = vmatpush.msra.mxu0 0.0
  %401 = vmatpush.msra.mxu0 0.0
  %402 = vmatpush.msra.mxu0 0.0
  %403 = vmatpush.msra.mxu0 0.0
  %404 = vmatpush.msra.mxu0 0.0
  %405 = vmatpush.msra.mxu0 0.0
  %406 = vmatpush.msra.mxu0 0.0
  %407 = vmatpush.msra.mxu0 0.0
  %408 = vmatpush.msra.mxu0 0.0
  %409 = vmatpush.msra.mxu0 0.0
  %410 = vmatpush.msra.mxu0 0.0
  %411 = vmatpush.msra.mxu0 %v76
  %412 = vmatpush.msra.mxu0 %v60
  %413 = vmatpush.msra.mxu0 %v44
  %414 = vmatpush.msra.mxu0 %v28
  %415 = vmatmul.f32.gmra.mxu0 %v118
  %v416 = vpop.f32.mrf.mxu0
  %v417 = vadd.f32 %v96, %v416
  %418 = vmatmul.f32.gmra.mxu0 %v121
  %v419 = vpop.f32.mrf.mxu0
  %v420 = vadd.f32 %v96, %v419
  %421 = vdwg.mxu0
  %422 = vmatpush.msra.mxu0 0.0
  %423 = vmatpush.msra.mxu0 0.0
  %424 = vmatpush.msra.mxu0 0.0
  %425 = vmatpush.msra.mxu0 0.0
  %426 = vmatpush.msra.mxu0 0.0
  %427 = vmatpush.msra.mxu0 0.0
  %428 = vmatpush.msra.mxu0 0.0
  %429 = vmatpush.msra.mxu0 0.0
  %430 = vmatpush.msra.mxu0 0.0
  %431 = vmatpush.msra.mxu0 0.0
  %432 = vmatpush.msra.mxu0 0.0
  %433 = vmatpush.msra.mxu0 0.0
  %434 = vmatpush.msra.mxu0 %v77
  %435 = vmatpush.msra.mxu0 %v61
  %436 = vmatpush.msra.mxu0 %v45
  %437 = vmatpush.msra.mxu0 %v29
  %438 = vmatmul.f32.gmra.mxu0 %v118
  %v439 = vpop.f32.mrf.mxu0
  %v440 = vadd.f32 %v97, %v439
  %441 = vmatmul.f32.gmra.mxu0 %v121
  %v442 = vpop.f32.mrf.mxu0
  %v443 = vadd.f32 %v97, %v442
  %444 = vdwg.mxu0
  %445 = vmatpush.msra.mxu0 0.0
  %446 = vmatpush.msra.mxu0 0.0
  %447 = vmatpush.msra.mxu0 0.0
  %448 = vmatpush.msra.mxu0 0.0
  %449 = vmatpush.msra.mxu0 0.0
  %450 = vmatpush.msra.mxu0 0.0
  %451 = vmatpush.msra.mxu0 0.0
  %452 = vmatpush.msra.mxu0 0.0
  %453 = vmatpush.msra.mxu0 0.0
  %454 = vmatpush.msra.mxu0 0.0
  %455 = vmatpush.msra.mxu0 0.0
  %456 = vmatpush.msra.mxu0 0.0
  %457 = vmatpush.msra.mxu0 %v78
  %458 = vmatpush.msra.mxu0 %v62
  %459 = vmatpush.msra.mxu0 %v46
  %460 = vmatpush.msra.mxu0 %v30
  %461 = vmatmul.f32.gmra.mxu0 %v118
  %v462 = vpop.f32.mrf.mxu0
  %v463 = vadd.f32 %v98, %v462
  %464 = vmatmul.f32.gmra.mxu0 %v121
  %v465 = vpop.f32.mrf.mxu0
  %v466 = vadd.f32 %v98, %v465
  %467 = vdwg.mxu0
  %468 = vmatpush.msra.mxu0 0.0
  %469 = vmatpush.msra.mxu0 0.0
  %470 = vmatpush.msra.mxu0 0.0
  %471 = vmatpush.msra.mxu0 0.0
  %472 = vmatpush.msra.mxu0 0.0
  %473 = vmatpush.msra.mxu0 0.0
  %474 = vmatpush.msra.mxu0 0.0
  %475 = vmatpush.msra.mxu0 0.0
  %476 = vmatpush.msra.mxu0 0.0
  %477 = vmatpush.msra.mxu0 0.0
  %478 = vmatpush.msra.mxu0 0.0
  %479 = vmatpush.msra.mxu0 0.0
  %480 = vmatpush.msra.mxu0 %v79
  %481 = vmatpush.msra.mxu0 %v63
  %482 = vmatpush.msra.mxu0 %v47
  %483 = vmatpush.msra.mxu0 %v31
  %484 = vmatmul.f32.gmra.mxu0 %v118
  %v485 = vpop.f32.mrf.mxu0
  %v486 = vadd.f32 %v99, %v485
  %487 = vmatmul.f32.gmra.mxu0 %v121
  %v488 = vpop.f32.mrf.mxu0
  %v489 = vadd.f32 %v99, %v488
  %490 = vdwg.mxu0
  %v491 = vmax.f32 %v141, 0.0
  %v492 = vmax.f32 %v164, 0.0
  %v493 = vmax.f32 %v187, 0.0
  %v494 = vmax.f32 %v210, 0.0
  %v495 = vmax.f32 %v233, 0.0
  %v496 = vmax.f32 %v256, 0.0
  %v497 = vmax.f32 %v279, 0.0
  %v498 = vmax.f32 %v302, 0.0
  %v499 = vmax.f32 %v325, 0.0
  %v500 = vmax.f32 %v348, 0.0
  %v501 = vmax.f32 %v371, 0.0
  %v502 = vmax.f32 %v394, 0.0
  %v503 = vmax.f32 %v417, 0.0
  %v504 = vmax.f32 %v440, 0.0
  %v505 = vmax.f32 %v463, 0.0
  %v506 = vmax.f32 %v486, 0.0
  %v507 = vmax.f32 %v144, 0.0
  %v508 = vmax.f32 %v167, 0.0
  %v509 = vmax.f32 %v190, 0.0
  %v510 = vmax.f32 %v213, 0.0
  %v511 = vmax.f32 %v236, 0.0
  %v512 = vmax.f32 %v259, 0.0
  %v513 = vmax.f32 %v282, 0.0
  %v514 = vmax.f32 %v305, 0.0
  %v515 = vmax.f32 %v328, 0.0
  %v516 = vmax.f32 %v351, 0.0
  %v517 = vmax.f32 %v374, 0.0
  %v518 = vmax.f32 %v397, 0.0
  %v519 = vmax.f32 %v420, 0.0
  %v520 = vmax.f32 %v443, 0.0
  %v521 = vmax.f32 %v466, 0.0
  %v522 = vmax.f32 %v489, 0.0
  %523 = vst [vmem:[%s3] sm:$0xff] %v491
  %524 = vst [vmem:[%s3 + $0x8] sm:$0xff] %v492
  %525 = vst [vmem:[%s3 + $0x10] sm:$0xff] %v493
  %526 = vst [vmem:[%s3 + $0x18] sm:$0xff] %v494
  %527 = vst [vmem:[%s3 + $0x20] sm:$0xff] %v495
  %528 = vst [vmem:[%s3 + $0x28] sm:$0xff] %v496
  %529 = vst [vmem:[%s3 + $0x30] sm:$0xff] %v497
  %530 = vst [vmem:[%s3 + $0x38] sm:$0xff] %v498
  %531 = vst [vmem:[%s3 + $0x40] sm:$0xff] %v499
  %532 = vst [vmem:[%s3 + $0x48] sm:$0xff] %v500
  %533 = vst [vmem:[%s3 + $0x50] sm:$0xff] %v501
  %534 = vst [vmem:[%s3 + $0x58] sm:$0xff] %v502
  %535 = vst [vmem:[%s3 + $0x60] sm:$0xff] %v503
  %536 = vst [vmem:[%s3 + $0x68] sm:$0xff] %v504
  %537 = vst [vmem:[%s3 + $0x70] sm:$0xff] %v505
  %538 = vst [vmem:[%s3 + $0x78] sm:$0xff] %v506
  %539 = vst [vmem:[%s3 + $0x80] sm:$0xff] %v507
  %540 = vst [vmem:[%s3 + $0x88] sm:$0xff] %v508
  %541 = vst [vmem:[%s3 + $0x90] sm:$0xff] %v509
  %542 = vst [vmem:[%s3 + $0x98] sm:$0xff] %v510
  %543 = vst [vmem:[%s3 + $0xa0] sm:$0xff] %v511
  %544 = vst [vmem:[%s3 + $0xa8] sm:$0xff] %v512
  %545 = vst [vmem:[%s3 + $0xb0] sm:$0xff] %v513
  %546 = vst [vmem:[%s3 + $0xb8] sm:$0xff] %v514
  %547 = vst [vmem:[%s3 + $0xc0] sm:$0xff] %v515
  %548 = vst [vmem:[%s3 + $0xc8] sm:$0xff] %v516
  %549 = vst [vmem:[%s3 + $0xd0] sm:$0xff] %v517
  %550 = vst [vmem:[%s3 + $0xd8] sm:$0xff] %v518
  %551 = vst [vmem:[%s3 + $0xe0] sm:$0xff] %v519
  %552 = vst [vmem:[%s3 + $0xe8] sm:$0xff] %v520
  %553 = vst [vmem:[%s3 + $0xf0] sm:$0xff] %v521
  %554 = vst [vmem:[%s3 + $0xf8] sm:$0xff] %v522
  // Predicated region
  $region14: #{decoder_forward.26} parent=0 // pred_check
    _
  $region15: #{decoder_forward.26} parent=0 // pred_check_branch
    %556 = sbr.rel (0) target = $region17
  $region16: #{decoder_forward.26} parent=0 // pred_region
    _
  $region17: #{decoder_forward.26} parent=0 // pred_fallthru
    _
  // Predicated region
  $region18: #{decoder_forward.26} parent=0 // pred_check
    _
  $region19: #{decoder_forward.26} parent=0 // pred_check_branch
    %558 = sbr.rel (0) target = $region21
  $region20: #{decoder_forward.26} parent=0 // pred_region
    _
  $region21: #{decoder_forward.26} parent=0 // pred_fallthru
    _

// kernel: decoder_forward.37
$region0: #{decoder_forward.37}
  #allocation0 [shape = 'u32[]', space=smem, size = 0x4, offset = 0x4, fixed_abs, tag = 'smem constant byte address 0x4 - core index']
  #allocation1 [shape = 'u32[72,128]{1,0:T(1,128)}', space=vmem, size = 0x9000, scoped, tag = 'internal scratch']
  %s0 = inlined_call_operand.vmem [shape: f32[16,32], index: 0, kind: input, shape index: {}]
  %s1 = inlined_call_operand.vmem [shape: f32[1,32], index: 1, kind: input, shape index: {}]
  %s2 = inlined_call_operand.vmem [shape: f32[1,32], index: 2, kind: input, shape index: {}]
  %s3 = inlined_call_operand.vmem [shape: f32[32,128], index: 3, kind: input, shape index: {}]
  %s4 = inlined_call_operand.vmem [shape: f32[1,128], index: 4, kind: input, shape index: {}]
  %s5 = inlined_call_operand.hbm [shape: f32[16,128], index: 5, kind: output, shape index: {}]
  %s6 = sld [smem:[#allocation0]]
  $region30: #{decoder_forward.37} parent=0
    _
  %s8 = ssub.s32 1, %s6
  %s9 = scalar_select 0, %s8, %s6
  $region1: #{decoder_forward.37} parent=0
    #allocation2 [shape = 'u8[8192]{0}', space=vmem, size = 0x2000, scoped, tag = 'output window, operand 0, single buffered']
    #allocation3 [shape = 's32[1]{0}', space=sflag, size = 0x4, scoped, tag = 'scoped memory for decoder_forward.37']
    %10 = vsyncpa [#allocation3], 0
    // Predicated region
    $region2: #{decoder_forward.37} parent=1 // pred_check
      _
    $region3: #{decoder_forward.37} parent=1 // pred_check_branch
      %12 = sbr.rel (0) target = $region5
    $region4: #{decoder_forward.37} parent=1 // pred_region
      _
    $region5: #{decoder_forward.37} parent=1 // pred_fallthru
      _
    // Predicated region
    $region6: #{decoder_forward.37} parent=1 // pred_check
      _
    $region7: #{decoder_forward.37} parent=1 // pred_check_branch
      %14 = sbr.rel (0) target = $region9
    $region8: #{decoder_forward.37} parent=1 // pred_region
      _
    $region9: #{decoder_forward.37} parent=1 // pred_fallthru
      _
    // Predicated region
    $region10: #{decoder_forward.37} parent=1 // pred_check
      _
    $region11: #{decoder_forward.37} parent=1 // pred_check_branch
      %16 = sbr.rel (0) target = $region13
    $region12: #{decoder_forward.37} parent=1 // pred_region
      _
    $region13: #{decoder_forward.37} parent=1 // pred_fallthru
      _
    // Predicated region
    $region14: #{decoder_forward.37} parent=1 // pred_check
      _
    $region15: #{decoder_forward.37} parent=1 // pred_check_branch
      %18 = sbr.rel (0) target = $region17
    $region16: #{decoder_forward.37} parent=1 // pred_region
      _
    $region17: #{decoder_forward.37} parent=1 // pred_fallthru
      _
    // Predicated region
    $region18: #{decoder_forward.37} parent=1 // pred_check
      _
    $region19: #{decoder_forward.37} parent=1 // pred_check_branch
      %20 = sbr.rel (0) target = $region21
    $region20: #{decoder_forward.37} parent=1 // pred_region
      _
    $region21: #{decoder_forward.37} parent=1 // pred_fallthru
      _
    %v21 = vld [vmem:[%s0] sm:$0xff]
    %v22 = vld [vmem:[%s0 + $0x8] sm:$0xff]
    %vm23 = vcmask 261120
    %v24 = vsel %vm23, %v21, 0.0
    %25 = vadd.xlane.f32.xlu0 %v24
    %v26 = vpop.xlane.xlu0 %25
    %v27 = vsel %vm23, %v22, 0.0
    %28 = vadd.xlane.f32.xlu0 %v27
    %v29 = vpop.xlane.xlu0 %28
    %v30 = vrcp.pop 32.0
    %v31 = vmul.f32 32.0, %v30
    %v32 = vsub.f32 1.0, %v31
    %v33 = vmul.f32 %v30, %v32
    %v34 = vadd.f32 %v30, %v33
    %vm35 = vweird.f32 %v30
    %v36 = vsel %vm35, %v30, %v34
    %v37 = vmul.f32 %v26, %v36
    %v38 = vmul.f32 %v29, %v36
    %v39 = vsub.f32 %v21, %v37
    %v40 = vsub.f32 %v22, %v38
    %v41 = vmul.f32 %v39, %v39
    %v42 = vmul.f32 %v40, %v40
    %v43 = vsel %vm23, %v41, 0.0
    %44 = vadd.xlane.f32.xlu0 %v43
    %v45 = vpop.xlane.xlu0 %44
    %v46 = vsel %vm23, %v42, 0.0
    %47 = vadd.xlane.f32.xlu0 %v46
    %v48 = vpop.xlane.xlu0 %47
    %v49 = vmul.f32 %v45, %v36
    %v50 = vmul.f32 %v48, %v36
    %v51 = vadd.f32 %v49, 1e-05
    %v52 = vadd.f32 %v50, 1e-05
    %v53 = vrsqrt.pop %v51
    %v54 = vmul.f32 %v53, %v51
    %v55 = vmul.f32 %v54, %v53
    %v56 = vmul.f32 0.5, %v55
    %v57 = vsub.f32 1.5, %v56
    %v58 = vmul.f32 %v53, %v57
    %vm59 = vweird.f32 %v51
    %vm60 = vweird.f32 %v53
    %vm61 = vmor %vm59, %vm60
    %v62 = vsel %vm61, %v53, %v58
    %v63 = vrsqrt.pop %v52
    %v64 = vmul.f32 %v63, %v52
    %v65 = vmul.f32 %v64, %v63
    %v66 = vmul.f32 0.5, %v65
    %v67 = vsub.f32 1.5, %v66
    %v68 = vmul.f32 %v63, %v67
    %vm69 = vweird.f32 %v52
    %vm70 = vweird.f32 %v63
    %vm71 = vmor %vm69, %vm70
    %v72 = vsel %vm71, %v63, %v68
    %v73 = vmul.f32 %v39, %v62
    %v74 = vmul.f32 %v40, %v72
    %v75 = vld [vmem:[%s1] sm:$0x1]
    %v77 = vperm.slane %v75, 0
    %v79 = vmul.f32 %v73, %v77
    %v80 = vmul.f32 %v74, %v77
    %v81 = vld [vmem:[%s2] sm:$0x1]
    %v83 = vperm.slane %v81, 0
    %v85 = vadd.f32 %v79, %v83
    %v86 = vadd.f32 %v80, %v83
    %v87 = vld [vmem:[%s3] sm:$0xff]
    %v88 = vld [vmem:[%s3 + $0x8] sm:$0xff]
    %v89 = vld [vmem:[%s3 + $0x10] sm:$0xff]
    %v90 = vld [vmem:[%s3 + $0x18] sm:$0xff]
    %v91 = vld [vmem:[%s4] sm:$0x1]
    %v93 = vperm.slane %v91, 0
    %v96 = vsel %vm23, %v85, 0
    %v99 = vsel %vm23, %v86, 0
    %101 = vmatpush.msra.mxu0 0.0
    %102 = vmatpush.msra.mxu0 0.0
    %103 = vmatpush.msra.mxu0 0.0
    %104 = vmatpush.msra.mxu0 0.0
    %105 = vmatpush.msra.mxu0 0.0
    %106 = vmatpush.msra.mxu0 0.0
    %107 = vmatpush.msra.mxu0 0.0
    %108 = vmatpush.msra.mxu0 0.0
    %109 = vmatpush.msra.mxu0 0.0
    %110 = vmatpush.msra.mxu0 0.0
    %111 = vmatpush.msra.mxu0 0.0
    %112 = vmatpush.msra.mxu0 0.0
    %113 = vmatpush.msra.mxu0 %v90
    %114 = vmatpush.msra.mxu0 %v89
    %115 = vmatpush.msra.mxu0 %v88
    %116 = vmatpush.msra.mxu0 %v87
    %117 = vmatmul.f32.gmra.mxu0 %v96
    %v118 = vpop.f32.mrf.mxu0
    %v119 = vadd.f32 %v93, %v118
    %120 = vmatmul.f32.gmra.mxu0 %v99
    %v121 = vpop.f32.mrf.mxu0
    %v122 = vadd.f32 %v93, %v121
    %123 = vdwg.mxu0
    %124 = vst [vmem:[#allocation2] sm:$0xff] %v119
    %125 = vst [vmem:[#allocation2 + $0x8] sm:$0xff] %v122
    // Predicated region
    $region22: #{decoder_forward.37} parent=1 // pred_check
      _
    $region23: #{decoder_forward.37} parent=1 // pred_check_branch
      %127 = sbr.rel (0) target = $region25
    $region24: #{decoder_forward.37} parent=1 // pred_region
      %129 = vsyncadd [#allocation3], 0
      %s130 = sshll.u32 [#allocation2], 4
      %s131 = int_to_ptr.vmem [resolvable:$true] %s130
      %s132 = sshll.u32 %s5, 4
      %s133 = int_to_ptr.hbm [resolvable:$true] %s132
      %138 = dma.vmem_to_hbm [thread:$0]  %s131, 256, %s133, [#allocation3], 128, 128, 8
    $region25: #{decoder_forward.37} parent=1 // pred_fallthru
      _
    // Predicated region
    $region26: #{decoder_forward.37} parent=1 // pred_check
      _
    $region27: #{decoder_forward.37} parent=1 // pred_check_branch
      %140 = sbr.rel (0) target = $region29
    $region28: #{decoder_forward.37} parent=1 // pred_region
      %142 = dma.done [#allocation3], 256
    $region29: #{decoder_forward.37} parent=1 // pred_fallthru
      _
    %143 = vsyncpa [#allocation3], 1

// kernel: decoder_forward.27
$region0: #{decoder_forward.27}
  #allocation0 [shape = 'u32[]', space=smem, size = 0x4, offset = 0x4, fixed_abs, tag = 'smem constant byte address 0x4 - core index']
  #allocation1 [shape = 'u32[72,128]{1,0:T(1,128)}', space=vmem, size = 0x9000, scoped, tag = 'internal scratch']
  %s0 = inlined_call_operand.vmem [shape: f32[16,2048], index: 0, kind: input, shape index: {}]
  %s1 = inlined_call_operand.vmem [shape: f32[2048,32], index: 1, kind: input, shape index: {}]
  %s2 = inlined_call_operand.vmem [shape: f32[1,32], index: 2, kind: input, shape index: {}]
  %s3 = inlined_call_operand.vmem [shape: f32[16,32], index: 3, kind: input, shape index: {}]
  %s4 = inlined_call_operand.vmem [shape: f32[1,32], index: 4, kind: input, shape index: {}]
  %s5 = inlined_call_operand.vmem [shape: f32[1,32], index: 5, kind: input, shape index: {}]
  %s6 = inlined_call_operand.vmem [shape: f32[16,32], index: 6, kind: output, shape index: {}]
  %s7 = sld [smem:[#allocation0]]
  $region34: #{decoder_forward.27} parent=0
    _
  %s9 = ssub.s32 1, %s7
  %s10 = scalar_select 0, %s9, %s7
  // Predicated region
  $region2: #{decoder_forward.27} parent=0 // pred_check
    _
  $region3: #{decoder_forward.27} parent=0 // pred_check_branch
    %12 = sbr.rel (0) target = $region5
  $region4: #{decoder_forward.27} parent=0 // pred_region
    _
  $region5: #{decoder_forward.27} parent=0 // pred_fallthru
    _
  // Predicated region
  $region6: #{decoder_forward.27} parent=0 // pred_check
    _
  $region7: #{decoder_forward.27} parent=0 // pred_check_branch
    %14 = sbr.rel (0) target = $region9
  $region8: #{decoder_forward.27} parent=0 // pred_region
    _
  $region9: #{decoder_forward.27} parent=0 // pred_fallthru
    _
  // Predicated region
  $region10: #{decoder_forward.27} parent=0 // pred_check
    _
  $region11: #{decoder_forward.27} parent=0 // pred_check_branch
    %16 = sbr.rel (0) target = $region13
  $region12: #{decoder_forward.27} parent=0 // pred_region
    _
  $region13: #{decoder_forward.27} parent=0 // pred_fallthru
    _
  // Predicated region
  $region14: #{decoder_forward.27} parent=0 // pred_check
    _
  $region15: #{decoder_forward.27} parent=0 // pred_check_branch
    %18 = sbr.rel (0) target = $region17
  $region16: #{decoder_forward.27} parent=0 // pred_region
    _
  $region17: #{decoder_forward.27} parent=0 // pred_fallthru
    _
  // Predicated region
  $region18: #{decoder_forward.27} parent=0 // pred_check
    _
  $region19: #{decoder_forward.27} parent=0 // pred_check_branch
    %20 = sbr.rel (0) target = $region21
  $region20: #{decoder_forward.27} parent=0 // pred_region
    _
  $region21: #{decoder_forward.27} parent=0 // pred_fallthru
    _
  // Predicated region
  $region22: #{decoder_forward.27} parent=0 // pred_check
    _
  $region23: #{decoder_forward.27} parent=0 // pred_check_branch
    %22 = sbr.rel (0) target = $region25
  $region24: #{decoder_forward.27} parent=0 // pred_region
    _
  $region25: #{decoder_forward.27} parent=0 // pred_fallthru
    _
  %v23 = vld [vmem:[%s0] sm:$0xff]
  %v24 = vld [vmem:[%s0 + $0x8] sm:$0xff]
  %v25 = vld [vmem:[%s0 + $0x10] sm:$0xff]
  %v26 = vld [vmem:[%s0 + $0x18] sm:$0xff]
  %v27 = vld [vmem:[%s0 + $0x20] sm:$0xff]
  %v28 = vld [vmem:[%s0 + $0x28] sm:$0xff]
  %v29 = vld [vmem:[%s0 + $0x30] sm:$0xff]
  %v30 = vld [vmem:[%s0 + $0x38] sm:$0xff]
  %v31 = vld [vmem:[%s0 + $0x40] sm:$0xff]
  %v32 = vld [vmem:[%s0 + $0x48] sm:$0xff]
  %v33 = vld [vmem:[%s0 + $0x50] sm:$0xff]
  %v34 = vld [vmem:[%s0 + $0x58] sm:$0xff]
  %v35 = vld [vmem:[%s0 + $0x60] sm:$0xff]
  %v36 = vld [vmem:[%s0 + $0x68] sm:$0xff]
  %v37 = vld [vmem:[%s0 + $0x70] sm:$0xff]
  %v38 = vld [vmem:[%s0 + $0x78] sm:$0xff]
  %v39 = vld [vmem:[%s0 + $0x80] sm:$0xff]
  %v40 = vld [vmem:[%s0 + $0x88] sm:$0xff]
  %v41 = vld [vmem:[%s0 + $0x90] sm:$0xff]
  %v42 = vld [vmem:[%s0 + $0x98] sm:$0xff]
  %v43 = vld [vmem:[%s0 + $0xa0] sm:$0xff]
  %v44 = vld [vmem:[%s0 + $0xa8] sm:$0xff]
  %v45 = vld [vmem:[%s0 + $0xb0] sm:$0xff]
  %v46 = vld [vmem:[%s0 + $0xb8] sm:$0xff]
  %v47 = vld [vmem:[%s0 + $0xc0] sm:$0xff]
  %v48 = vld [vmem:[%s0 + $0xc8] sm:$0xff]
  %v49 = vld [vmem:[%s0 + $0xd0] sm:$0xff]
  %v50 = vld [vmem:[%s0 + $0xd8] sm:$0xff]
  %v51 = vld [vmem:[%s0 + $0xe0] sm:$0xff]
  %v52 = vld [vmem:[%s0 + $0xe8] sm:$0xff]
  %v53 = vld [vmem:[%s0 + $0xf0] sm:$0xff]
  %v54 = vld [vmem:[%s0 + $0xf8] sm:$0xff]
  %v55 = vld [vmem:[%s1] sm:$0xff]
  %v56 = vld [vmem:[%s1 + $0x8] sm:$0xff]
  %v57 = vld [vmem:[%s1 + $0x10] sm:$0xff]
  %v58 = vld [vmem:[%s1 + $0x18] sm:$0xff]
  %v59 = vld [vmem:[%s1 + $0x20] sm:$0xff]
  %v60 = vld [vmem:[%s1 + $0x28] sm:$0xff]
  %v61 = vld [vmem:[%s1 + $0x30] sm:$0xff]
  %v62 = vld [vmem:[%s1 + $0x38] sm:$0xff]
  %v63 = vld [vmem:[%s1 + $0x40] sm:$0xff]
  %v64 = vld [vmem:[%s1 + $0x48] sm:$0xff]
  %v65 = vld [vmem:[%s1 + $0x50] sm:$0xff]
  %v66 = vld [vmem:[%s1 + $0x58] sm:$0xff]
  %v67 = vld [vmem:[%s1 + $0x60] sm:$0xff]
  %v68 = vld [vmem:[%s1 + $0x68] sm:$0xff]
  %v69 = vld [vmem:[%s1 + $0x70] sm:$0xff]
  %v70 = vld [vmem:[%s1 + $0x78] sm:$0xff]
  %v71 = vld [vmem:[%s1 + $0x80] sm:$0xff]
  %v72 = vld [vmem:[%s1 + $0x88] sm:$0xff]
  %v73 = vld [vmem:[%s1 + $0x90] sm:$0xff]
  %v74 = vld [vmem:[%s1 + $0x98] sm:$0xff]
  %v75 = vld [vmem:[%s1 + $0xa0] sm:$0xff]
  %v76 = vld [vmem:[%s1 + $0xa8] sm:$0xff]
  %v77 = vld [vmem:[%s1 + $0xb0] sm:$0xff]
  %v78 = vld [vmem:[%s1 + $0xb8] sm:$0xff]
  %v79 = vld [vmem:[%s1 + $0xc0] sm:$0xff]
  %v80 = vld [vmem:[%s1 + $0xc8] sm:$0xff]
  %v81 = vld [vmem:[%s1 + $0xd0] sm:$0xff]
  %v82 = vld [vmem:[%s1 + $0xd8] sm:$0xff]
  %v83 = vld [vmem:[%s1 + $0xe0] sm:$0xff]
  %v84 = vld [vmem:[%s1 + $0xe8] sm:$0xff]
  %v85 = vld [vmem:[%s1 + $0xf0] sm:$0xff]
  %v86 = vld [vmem:[%s1 + $0xf8] sm:$0xff]
  %v87 = vld [vmem:[%s1 + $0x100] sm:$0xff]
  %v88 = vld [vmem:[%s1 + $0x108] sm:$0xff]
  %v89 = vld [vmem:[%s1 + $0x110] sm:$0xff]
  %v90 = vld [vmem:[%s1 + $0x118] sm:$0xff]
  %v91 = vld [vmem:[%s1 + $0x120] sm:$0xff]
  %v92 = vld [vmem:[%s1 + $0x128] sm:$0xff]
  %v93 = vld [vmem:[%s1 + $0x130] sm:$0xff]
  %v94 = vld [vmem:[%s1 + $0x138] sm:$0xff]
  %v95 = vld [vmem:[%s1 + $0x140] sm:$0xff]
  %v96 = vld [vmem:[%s1 + $0x148] sm:$0xff]
  %v97 = vld [vmem:[%s1 + $0x150] sm:$0xff]
  %v98 = vld [vmem:[%s1 + $0x158] sm:$0xff]
  %v99 = vld [vmem:[%s1 + $0x160] sm:$0xff]
  %v100 = vld [vmem:[%s1 + $0x168] sm:$0xff]
  %v101 = vld [vmem:[%s1 + $0x170] sm:$0xff]
  %v102 = vld [vmem:[%s1 + $0x178] sm:$0xff]
  %v103 = vld [vmem:[%s1 + $0x180] sm:$0xff]
  %v104 = vld [vmem:[%s1 + $0x188] sm:$0xff]
  %v105 = vld [vmem:[%s1 + $0x190] sm:$0xff]
  %v106 = vld [vmem:[%s1 + $0x198] sm:$0xff]
  %v107 = vld [vmem:[%s1 + $0x1a0] sm:$0xff]
  %v108 = vld [vmem:[%s1 + $0x1a8] sm:$0xff]
  %v109 = vld [vmem:[%s1 + $0x1b0] sm:$0xff]
  %v110 = vld [vmem:[%s1 + $0x1b8] sm:$0xff]
  %v111 = vld [vmem:[%s1 + $0x1c0] sm:$0xff]
  %v112 = vld [vmem:[%s1 + $0x1c8] sm:$0xff]
  %v113 = vld [vmem:[%s1 + $0x1d0] sm:$0xff]
  %v114 = vld [vmem:[%s1 + $0x1d8] sm:$0xff]
  %v115 = vld [vmem:[%s1 + $0x1e0] sm:$0xff]
  %v116 = vld [vmem:[%s1 + $0x1e8] sm:$0xff]
  %v117 = vld [vmem:[%s1 + $0x1f0] sm:$0xff]
  %v118 = vld [vmem:[%s1 + $0x1f8] sm:$0xff]
  %v119 = vld [vmem:[%s1 + $0x200] sm:$0xff]
  %v120 = vld [vmem:[%s1 + $0x208] sm:$0xff]
  %v121 = vld [vmem:[%s1 + $0x210] sm:$0xff]
  %v122 = vld [vmem:[%s1 + $0x218] sm:$0xff]
  %v123 = vld [vmem:[%s1 + $0x220] sm:$0xff]
  %v124 = vld [vmem:[%s1 + $0x228] sm:$0xff]
  %v125 = vld [vmem:[%s1 + $0x230] sm:$0xff]
  %v126 = vld [vmem:[%s1 + $0x238] sm:$0xff]
  %v127 = vld [vmem:[%s1 + $0x240] sm:$0xff]
  %v128 = vld [vmem:[%s1 + $0x248] sm:$0xff]
  %v129 = vld [vmem:[%s1 + $0x250] sm:$0xff]
  %v130 = vld [vmem:[%s1 + $0x258] sm:$0xff]
  %v131 = vld [vmem:[%s1 + $0x260] sm:$0xff]
  %v132 = vld [vmem:[%s1 + $0x268] sm:$0xff]
  %v133 = vld [vmem:[%s1 + $0x270] sm:$0xff]
  %v134 = vld [vmem:[%s1 + $0x278] sm:$0xff]
  %v135 = vld [vmem:[%s1 + $0x280] sm:$0xff]
  %v136 = vld [vmem:[%s1 + $0x288] sm:$0xff]
  %v137 = vld [vmem:[%s1 + $0x290] sm:$0xff]
  %v138 = vld [vmem:[%s1 + $0x298] sm:$0xff]
  %v139 = vld [vmem:[%s1 + $0x2a0] sm:$0xff]
  %v140 = vld [vmem:[%s1 + $0x2a8] sm:$0xff]
  %v141 = vld [vmem:[%s1 + $0x2b0] sm:$0xff]
  %v142 = vld [vmem:[%s1 + $0x2b8] sm:$0xff]
  %v143 = vld [vmem:[%s1 + $0x2c0] sm:$0xff]
  %v144 = vld [vmem:[%s1 + $0x2c8] sm:$0xff]
  %v145 = vld [vmem:[%s1 + $0x2d0] sm:$0xff]
  %v146 = vld [vmem:[%s1 + $0x2d8] sm:$0xff]
  %v147 = vld [vmem:[%s1 + $0x2e0] sm:$0xff]
  %v148 = vld [vmem:[%s1 + $0x2e8] sm:$0xff]
  %v149 = vld [vmem:[%s1 + $0x2f0] sm:$0xff]
  %v150 = vld [vmem:[%s1 + $0x2f8] sm:$0xff]
  %v151 = vld [vmem:[%s1 + $0x300] sm:$0xff]
  %v152 = vld [vmem:[%s1 + $0x308] sm:$0xff]
  %v153 = vld [vmem:[%s1 + $0x310] sm:$0xff]
  %v154 = vld [vmem:[%s1 + $0x318] sm:$0xff]
  %v155 = vld [vmem:[%s1 + $0x320] sm:$0xff]
  %v156 = vld [vmem:[%s1 + $0x328] sm:$0xff]
  %v157 = vld [vmem:[%s1 + $0x330] sm:$0xff]
  %v158 = vld [vmem:[%s1 + $0x338] sm:$0xff]
  %v159 = vld [vmem:[%s1 + $0x340] sm:$0xff]
  %v160 = vld [vmem:[%s1 + $0x348] sm:$0xff]
  %v161 = vld [vmem:[%s1 + $0x350] sm:$0xff]
  %v162 = vld [vmem:[%s1 + $0x358] sm:$0xff]
  %v163 = vld [vmem:[%s1 + $0x360] sm:$0xff]
  %v164 = vld [vmem:[%s1 + $0x368] sm:$0xff]
  %v165 = vld [vmem:[%s1 + $0x370] sm:$0xff]
  %v166 = vld [vmem:[%s1 + $0x378] sm:$0xff]
  %v167 = vld [vmem:[%s1 + $0x380] sm:$0xff]
  %v168 = vld [vmem:[%s1 + $0x388] sm:$0xff]
  %v169 = vld [vmem:[%s1 + $0x390] sm:$0xff]
  %v170 = vld [vmem:[%s1 + $0x398] sm:$0xff]
  %v171 = vld [vmem:[%s1 + $0x3a0] sm:$0xff]
  %v172 = vld [vmem:[%s1 + $0x3a8] sm:$0xff]
  %v173 = vld [vmem:[%s1 + $0x3b0] sm:$0xff]
  %v174 = vld [vmem:[%s1 + $0x3b8] sm:$0xff]
  %v175 = vld [vmem:[%s1 + $0x3c0] sm:$0xff]
  %v176 = vld [vmem:[%s1 + $0x3c8] sm:$0xff]
  %v177 = vld [vmem:[%s1 + $0x3d0] sm:$0xff]
  %v178 = vld [vmem:[%s1 + $0x3d8] sm:$0xff]
  %v179 = vld [vmem:[%s1 + $0x3e0] sm:$0xff]
  %v180 = vld [vmem:[%s1 + $0x3e8] sm:$0xff]
  %v181 = vld [vmem:[%s1 + $0x3f0] sm:$0xff]
  %v182 = vld [vmem:[%s1 + $0x3f8] sm:$0xff]
  %v183 = vld [vmem:[%s1 + $0x400] sm:$0xff]
  %v184 = vld [vmem:[%s1 + $0x408] sm:$0xff]
  %v185 = vld [vmem:[%s1 + $0x410] sm:$0xff]
  %v186 = vld [vmem:[%s1 + $0x418] sm:$0xff]
  %v187 = vld [vmem:[%s1 + $0x420] sm:$0xff]
  %v188 = vld [vmem:[%s1 + $0x428] sm:$0xff]
  %v189 = vld [vmem:[%s1 + $0x430] sm:$0xff]
  %v190 = vld [vmem:[%s1 + $0x438] sm:$0xff]
  %v191 = vld [vmem:[%s1 + $0x440] sm:$0xff]
  %v192 = vld [vmem:[%s1 + $0x448] sm:$0xff]
  %v193 = vld [vmem:[%s1 + $0x450] sm:$0xff]
  %v194 = vld [vmem:[%s1 + $0x458] sm:$0xff]
  %v195 = vld [vmem:[%s1 + $0x460] sm:$0xff]
  %v196 = vld [vmem:[%s1 + $0x468] sm:$0xff]
  %v197 = vld [vmem:[%s1 + $0x470] sm:$0xff]
  %v198 = vld [vmem:[%s1 + $0x478] sm:$0xff]
  %v199 = vld [vmem:[%s1 + $0x480] sm:$0xff]
  %v200 = vld [vmem:[%s1 + $0x488] sm:$0xff]
  %v201 = vld [vmem:[%s1 + $0x490] sm:$0xff]
  %v202 = vld [vmem:[%s1 + $0x498] sm:$0xff]
  %v203 = vld [vmem:[%s1 + $0x4a0] sm:$0xff]
  %v204 = vld [vmem:[%s1 + $0x4a8] sm:$0xff]
  %v205 = vld [vmem:[%s1 + $0x4b0] sm:$0xff]
  %v206 = vld [vmem:[%s1 + $0x4b8] sm:$0xff]
  %v207 = vld [vmem:[%s1 + $0x4c0] sm:$0xff]
  %v208 = vld [vmem:[%s1 + $0x4c8] sm:$0xff]
  %v209 = vld [vmem:[%s1 + $0x4d0] sm:$0xff]
  %v210 = vld [vmem:[%s1 + $0x4d8] sm:$0xff]
  %v211 = vld [vmem:[%s1 + $0x4e0] sm:$0xff]
  %v212 = vld [vmem:[%s1 + $0x4e8] sm:$0xff]
  %v213 = vld [vmem:[%s1 + $0x4f0] sm:$0xff]
  %v214 = vld [vmem:[%s1 + $0x4f8] sm:$0xff]
  %v215 = vld [vmem:[%s1 + $0x500] sm:$0xff]
  %v216 = vld [vmem:[%s1 + $0x508] sm:$0xff]
  %v217 = vld [vmem:[%s1 + $0x510] sm:$0xff]
  %v218 = vld [vmem:[%s1 + $0x518] sm:$0xff]
  %v219 = vld [vmem:[%s1 + $0x520] sm:$0xff]
  %v220 = vld [vmem:[%s1 + $0x528] sm:$0xff]
  %v221 = vld [vmem:[%s1 + $0x530] sm:$0xff]
  %v222 = vld [vmem:[%s1 + $0x538] sm:$0xff]
  %v223 = vld [vmem:[%s1 + $0x540] sm:$0xff]
  %v224 = vld [vmem:[%s1 + $0x548] sm:$0xff]
  %v225 = vld [vmem:[%s1 + $0x550] sm:$0xff]
  %v226 = vld [vmem:[%s1 + $0x558] sm:$0xff]
  %v227 = vld [vmem:[%s1 + $0x560] sm:$0xff]
  %v228 = vld [vmem:[%s1 + $0x568] sm:$0xff]
  %v229 = vld [vmem:[%s1 + $0x570] sm:$0xff]
  %v230 = vld [vmem:[%s1 + $0x578] sm:$0xff]
  %v231 = vld [vmem:[%s1 + $0x580] sm:$0xff]
  %v232 = vld [vmem:[%s1 + $0x588] sm:$0xff]
  %v233 = vld [vmem:[%s1 + $0x590] sm:$0xff]
  %v234 = vld [vmem:[%s1 + $0x598] sm:$0xff]
  %v235 = vld [vmem:[%s1 + $0x5a0] sm:$0xff]
  %v236 = vld [vmem:[%s1 + $0x5a8] sm:$0xff]
  %v237 = vld [vmem:[%s1 + $0x5b0] sm:$0xff]
  %v238 = vld [vmem:[%s1 + $0x5b8] sm:$0xff]
  %v239 = vld [vmem:[%s1 + $0x5c0] sm:$0xff]
  %v240 = vld [vmem:[%s1 + $0x5c8] sm:$0xff]
  %v241 = vld [vmem:[%s1 + $0x5d0] sm:$0xff]
  %v242 = vld [vmem:[%s1 + $0x5d8] sm:$0xff]
  %v243 = vld [vmem:[%s1 + $0x5e0] sm:$0xff]
  %v244 = vld [vmem:[%s1 + $0x5e8] sm:$0xff]
  %v245 = vld [vmem:[%s1 + $0x5f0] sm:$0xff]
  %v246 = vld [vmem:[%s1 + $0x5f8] sm:$0xff]
  %v247 = vld [vmem:[%s1 + $0x600] sm:$0xff]
  %v248 = vld [vmem:[%s1 + $0x608] sm:$0xff]
  %v249 = vld [vmem:[%s1 + $0x610] sm:$0xff]
  %v250 = vld [vmem:[%s1 + $0x618] sm:$0xff]
  %v251 = vld [vmem:[%s1 + $0x620] sm:$0xff]
  %v252 = vld [vmem:[%s1 + $0x628] sm:$0xff]
  %v253 = vld [vmem:[%s1 + $0x630] sm:$0xff]
  %v254 = vld [vmem:[%s1 + $0x638] sm:$0xff]
  %v255 = vld [vmem:[%s1 + $0x640] sm:$0xff]
  %v256 = vld [vmem:[%s1 + $0x648] sm:$0xff]
  %v257 = vld [vmem:[%s1 + $0x650] sm:$0xff]
  %v258 = vld [vmem:[%s1 + $0x658] sm:$0xff]
  %v259 = vld [vmem:[%s1 + $0x660] sm:$0xff]
  %v260 = vld [vmem:[%s1 + $0x668] sm:$0xff]
  %v261 = vld [vmem:[%s1 + $0x670] sm:$0xff]
  %v262 = vld [vmem:[%s1 + $0x678] sm:$0xff]
  %v263 = vld [vmem:[%s1 + $0x680] sm:$0xff]
  %v264 = vld [vmem:[%s1 + $0x688] sm:$0xff]
  %v265 = vld [vmem:[%s1 + $0x690] sm:$0xff]
  %v266 = vld [vmem:[%s1 + $0x698] sm:$0xff]
  %v267 = vld [vmem:[%s1 + $0x6a0] sm:$0xff]
  %v268 = vld [vmem:[%s1 + $0x6a8] sm:$0xff]
  %v269 = vld [vmem:[%s1 + $0x6b0] sm:$0xff]
  %v270 = vld [vmem:[%s1 + $0x6b8] sm:$0xff]
  %v271 = vld [vmem:[%s1 + $0x6c0] sm:$0xff]
  %v272 = vld [vmem:[%s1 + $0x6c8] sm:$0xff]
  %v273 = vld [vmem:[%s1 + $0x6d0] sm:$0xff]
  %v274 = vld [vmem:[%s1 + $0x6d8] sm:$0xff]
  %v275 = vld [vmem:[%s1 + $0x6e0] sm:$0xff]
  %v276 = vld [vmem:[%s1 + $0x6e8] sm:$0xff]
  %v277 = vld [vmem:[%s1 + $0x6f0] sm:$0xff]
  %v278 = vld [vmem:[%s1 + $0x6f8] sm:$0xff]
  %v279 = vld [vmem:[%s1 + $0x700] sm:$0xff]
  %v280 = vld [vmem:[%s1 + $0x708] sm:$0xff]
  %v281 = vld [vmem:[%s1 + $0x710] sm:$0xff]
  %v282 = vld [vmem:[%s1 + $0x718] sm:$0xff]
  %v283 = vld [vmem:[%s1 + $0x720] sm:$0xff]
  %v284 = vld [vmem:[%s1 + $0x728] sm:$0xff]
  %v285 = vld [vmem:[%s1 + $0x730] sm:$0xff]
  %v286 = vld [vmem:[%s1 + $0x738] sm:$0xff]
  %v287 = vld [vmem:[%s1 + $0x740] sm:$0xff]
  %v288 = vld [vmem:[%s1 + $0x748] sm:$0xff]
  %v289 = vld [vmem:[%s1 + $0x750] sm:$0xff]
  %v290 = vld [vmem:[%s1 + $0x758] sm:$0xff]
  %v291 = vld [vmem:[%s1 + $0x760] sm:$0xff]
  %v292 = vld [vmem:[%s1 + $0x768] sm:$0xff]
  %v293 = vld [vmem:[%s1 + $0x770] sm:$0xff]
  %v294 = vld [vmem:[%s1 + $0x778] sm:$0xff]
  %v295 = vld [vmem:[%s1 + $0x780] sm:$0xff]
  %v296 = vld [vmem:[%s1 + $0x788] sm:$0xff]
  %v297 = vld [vmem:[%s1 + $0x790] sm:$0xff]
  %v298 = vld [vmem:[%s1 + $0x798] sm:$0xff]
  %v299 = vld [vmem:[%s1 + $0x7a0] sm:$0xff]
  %v300 = vld [vmem:[%s1 + $0x7a8] sm:$0xff]
  %v301 = vld [vmem:[%s1 + $0x7b0] sm:$0xff]
  %v302 = vld [vmem:[%s1 + $0x7b8] sm:$0xff]
  %v303 = vld [vmem:[%s1 + $0x7c0] sm:$0xff]
  %v304 = vld [vmem:[%s1 + $0x7c8] sm:$0xff]
  %v305 = vld [vmem:[%s1 + $0x7d0] sm:$0xff]
  %v306 = vld [vmem:[%s1 + $0x7d8] sm:$0xff]
  %v307 = vld [vmem:[%s1 + $0x7e0] sm:$0xff]
  %v308 = vld [vmem:[%s1 + $0x7e8] sm:$0xff]
  %v309 = vld [vmem:[%s1 + $0x7f0] sm:$0xff]
  %v310 = vld [vmem:[%s1 + $0x7f8] sm:$0xff]
  %v311 = vld [vmem:[%s2] sm:$0x1]
  %v313 = vperm.slane %v311, 0
  %315 = vmatpush.msra.mxu0 %v70
  %316 = vmatpush.msra.mxu0 %v69
  %317 = vmatpush.msra.mxu0 %v68
  %318 = vmatpush.msra.mxu0 %v67
  %319 = vmatpush.msra.mxu0 %v66
  %320 = vmatpush.msra.mxu0 %v65
  %321 = vmatpush.msra.mxu0 %v64
  %322 = vmatpush.msra.mxu0 %v63
  %323 = vmatpush.msra.mxu0 %v62
  %324 = vmatpush.msra.mxu0 %v61
  %325 = vmatpush.msra.mxu0 %v60
  %326 = vmatpush.msra.mxu0 %v59
  %327 = vmatpush.msra.mxu0 %v58
  %328 = vmatpush.msra.mxu0 %v57
  %329 = vmatpush.msra.mxu0 %v56
  %330 = vmatpush.msra.mxu0 %v55
  %331 = vmatmul.f32.gmra.mxu0 %v23
  %v332 = vpop.f32.mrf.mxu0
  %v333 = vadd.f32 %v313, %v332
  %334 = vmatmul.f32.gmra.mxu0 %v39
  %v335 = vpop.f32.mrf.mxu0
  %v336 = vadd.f32 %v313, %v335
  %337 = vdwg.mxu0
  %338 = vmatpush.msra.mxu0 %v86
  %339 = vmatpush.msra.mxu0 %v85
  %340 = vmatpush.msra.mxu0 %v84
  %341 = vmatpush.msra.mxu0 %v83
  %342 = vmatpush.msra.mxu0 %v82
  %343 = vmatpush.msra.mxu0 %v81
  %344 = vmatpush.msra.mxu0 %v80
  %345 = vmatpush.msra.mxu0 %v79
  %346 = vmatpush.msra.mxu0 %v78
  %347 = vmatpush.msra.mxu0 %v77
  %348 = vmatpush.msra.mxu0 %v76
  %349 = vmatpush.msra.mxu0 %v75
  %350 = vmatpush.msra.mxu0 %v74
  %351 = vmatpush.msra.mxu0 %v73
  %352 = vmatpush.msra.mxu0 %v72
  %353 = vmatpush.msra.mxu0 %v71
  %354 = vmatmul.f32.gmra.mxu0 %v24
  %v355 = vpop.f32.mrf.mxu0
  %v356 = vadd.f32 %v333, %v355
  %357 = vmatmul.f32.gmra.mxu0 %v40
  %v358 = vpop.f32.mrf.mxu0
  %v359 = vadd.f32 %v336, %v358
  %360 = vdwg.mxu0
  %361 = vmatpush.msra.mxu0 %v102
  %362 = vmatpush.msra.mxu0 %v101
  %363 = vmatpush.msra.mxu0 %v100
  %364 = vmatpush.msra.mxu0 %v99
  %365 = vmatpush.msra.mxu0 %v98
  %366 = vmatpush.msra.mxu0 %v97
  %367 = vmatpush.msra.mxu0 %v96
  %368 = vmatpush.msra.mxu0 %v95
  %369 = vmatpush.msra.mxu0 %v94
  %370 = vmatpush.msra.mxu0 %v93
  %371 = vmatpush.msra.mxu0 %v92
  %372 = vmatpush.msra.mxu0 %v91
  %373 = vmatpush.msra.mxu0 %v90
  %374 = vmatpush.msra.mxu0 %v89
  %375 = vmatpush.msra.mxu0 %v88
  %376 = vmatpush.msra.mxu0 %v87
  %377 = vmatmul.f32.gmra.mxu0 %v25
  %v378 = vpop.f32.mrf.mxu0
  %v379 = vadd.f32 %v356, %v378
  %380 = vmatmul.f32.gmra.mxu0 %v41
  %v381 = vpop.f32.mrf.mxu0
  %v382 = vadd.f32 %v359, %v381
  %383 = vdwg.mxu0
  %384 = vmatpush.msra.mxu0 %v118
  %385 = vmatpush.msra.mxu0 %v117
  %386 = vmatpush.msra.mxu0 %v116
  %387 = vmatpush.msra.mxu0 %v115
  %388 = vmatpush.msra.mxu0 %v114
  %389 = vmatpush.msra.mxu0 %v113
  %390 = vmatpush.msra.mxu0 %v112
  %391 = vmatpush.msra.mxu0 %v111
  %392 = vmatpush.msra.mxu0 %v110
  %393 = vmatpush.msra.mxu0 %v109
  %394 = vmatpush.msra.mxu0 %v108
  %395 = vmatpush.msra.mxu0 %v107
  %396 = vmatpush.msra.mxu0 %v106
  %397 = vmatpush.msra.mxu0 %v105
  %398 = vmatpush.msra.mxu0 %v104
  %399 = vmatpush.msra.mxu0 %v103
  %400 = vmatmul.f32.gmra.mxu0 %v26
  %v401 = vpop.f32.mrf.mxu0
  %v402 = vadd.f32 %v379, %v401
  %403 = vmatmul.f32.gmra.mxu0 %v42
  %v404 = vpop.f32.mrf.mxu0
  %v405 = vadd.f32 %v382, %v404
  %406 = vdwg.mxu0
  %407 = vmatpush.msra.mxu0 %v134
  %408 = vmatpush.msra.mxu0 %v133
  %409 = vmatpush.msra.mxu0 %v132
  %410 = vmatpush.msra.mxu0 %v131
  %411 = vmatpush.msra.mxu0 %v130
  %412 = vmatpush.msra.mxu0 %v129
  %413 = vmatpush.msra.mxu0 %v128
  %414 = vmatpush.msra.mxu0 %v127
  %415 = vmatpush.msra.mxu0 %v126
  %416 = vmatpush.msra.mxu0 %v125
  %417 = vmatpush.msra.mxu0 %v124
  %418 = vmatpush.msra.mxu0 %v123
  %419 = vmatpush.msra.mxu0 %v122
  %420 = vmatpush.msra.mxu0 %v121
  %421 = vmatpush.msra.mxu0 %v120
  %422 = vmatpush.msra.mxu0 %v119
  %423 = vmatmul.f32.gmra.mxu0 %v27
  %v424 = vpop.f32.mrf.mxu0
  %v425 = vadd.f32 %v402, %v424
  %426 = vmatmul.f32.gmra.mxu0 %v43
  %v427 = vpop.f32.mrf.mxu0
  %v428 = vadd.f32 %v405, %v427
  %429 = vdwg.mxu0
  %430 = vmatpush.msra.mxu0 %v150
  %431 = vmatpush.msra.mxu0 %v149
  %432 = vmatpush.msra.mxu0 %v148
  %433 = vmatpush.msra.mxu0 %v147
  %434 = vmatpush.msra.mxu0 %v146
  %435 = vmatpush.msra.mxu0 %v145
  %436 = vmatpush.msra.mxu0 %v144
  %437 = vmatpush.msra.mxu0 %v143
  %438 = vmatpush.msra.mxu0 %v142
  %439 = vmatpush.msra.mxu0 %v141
  %440 = vmatpush.msra.mxu0 %v140
  %441 = vmatpush.msra.mxu0 %v139
  %442 = vmatpush.msra.mxu0 %v138
  %443 = vmatpush.msra.mxu0 %v137
  %444 = vmatpush.msra.mxu0 %v136
  %445 = vmatpush.msra.mxu0 %v135
  %446 = vmatmul.f32.gmra.mxu0 %v28
  %v447 = vpop.f32.mrf.mxu0
  %v448 = vadd.f32 %v425, %v447
  %449 = vmatmul.f32.gmra.mxu0 %v44
  %v450 = vpop.f32.mrf.mxu0
  %v451 = vadd.f32 %v428, %v450
  %452 = vdwg.mxu0
  %453 = vmatpush.msra.mxu0 %v166
  %454 = vmatpush.msra.mxu0 %v165
  %455 = vmatpush.msra.mxu0 %v164
  %456 = vmatpush.msra.mxu0 %v163
  %457 = vmatpush.msra.mxu0 %v162
  %458 = vmatpush.msra.mxu0 %v161
  %459 = vmatpush.msra.mxu0 %v160
  %460 = vmatpush.msra.mxu0 %v159
  %461 = vmatpush.msra.mxu0 %v158
  %462 = vmatpush.msra.mxu0 %v157
  %463 = vmatpush.msra.mxu0 %v156
  %464 = vmatpush.msra.mxu0 %v155
  %465 = vmatpush.msra.mxu0 %v154
  %466 = vmatpush.msra.mxu0 %v153
  %467 = vmatpush.msra.mxu0 %v152
  %468 = vmatpush.msra.mxu0 %v151
  %469 = vmatmul.f32.gmra.mxu0 %v29
  %v470 = vpop.f32.mrf.mxu0
  %v471 = vadd.f32 %v448, %v470
  %472 = vmatmul.f32.gmra.mxu0 %v45
  %v473 = vpop.f32.mrf.mxu0
  %v474 = vadd.f32 %v451, %v473
  %475 = vdwg.mxu0
  %476 = vmatpush.msra.mxu0 %v182
  %477 = vmatpush.msra.mxu0 %v181
  %478 = vmatpush.msra.mxu0 %v180
  %479 = vmatpush.msra.mxu0 %v179
  %480 = vmatpush.msra.mxu0 %v178
  %481 = vmatpush.msra.mxu0 %v177
  %482 = vmatpush.msra.mxu0 %v176
  %483 = vmatpush.msra.mxu0 %v175
  %484 = vmatpush.msra.mxu0 %v174
  %485 = vmatpush.msra.mxu0 %v173
  %486 = vmatpush.msra.mxu0 %v172
  %487 = vmatpush.msra.mxu0 %v171
  %488 = vmatpush.msra.mxu0 %v170
  %489 = vmatpush.msra.mxu0 %v169
  %490 = vmatpush.msra.mxu0 %v168
  %491 = vmatpush.msra.mxu0 %v167
  %492 = vmatmul.f32.gmra.mxu0 %v30
  %v493 = vpop.f32.mrf.mxu0
  %v494 = vadd.f32 %v471, %v493
  %495 = vmatmul.f32.gmra.mxu0 %v46
  %v496 = vpop.f32.mrf.mxu0
  %v497 = vadd.f32 %v474, %v496
  %498 = vdwg.mxu0
  %499 = vmatpush.msra.mxu0 %v198
  %500 = vmatpush.msra.mxu0 %v197
  %501 = vmatpush.msra.mxu0 %v196
  %502 = vmatpush.msra.mxu0 %v195
  %503 = vmatpush.msra.mxu0 %v194
  %504 = vmatpush.msra.mxu0 %v193
  %505 = vmatpush.msra.mxu0 %v192
  %506 = vmatpush.msra.mxu0 %v191
  %507 = vmatpush.msra.mxu0 %v190
  %508 = vmatpush.msra.mxu0 %v189
  %509 = vmatpush.msra.mxu0 %v188
  %510 = vmatpush.msra.mxu0 %v187
  %511 = vmatpush.msra.mxu0 %v186
  %512 = vmatpush.msra.mxu0 %v185
  %513 = vmatpush.msra.mxu0 %v184
  %514 = vmatpush.msra.mxu0 %v183
  %515 = vmatmul.f32.gmra.mxu0 %v31
  %v516 = vpop.f32.mrf.mxu0
  %v517 = vadd.f32 %v494, %v516
  %518 = vmatmul.f32.gmra.mxu0 %v47
  %v519 = vpop.f32.mrf.mxu0
  %v520 = vadd.f32 %v497, %v519
  %521 = vdwg.mxu0
  %522 = vmatpush.msra.mxu0 %v214
  %523 = vmatpush.msra.mxu0 %v213
  %524 = vmatpush.msra.mxu0 %v212
  %525 = vmatpush.msra.mxu0 %v211
  %526 = vmatpush.msra.mxu0 %v210
  %527 = vmatpush.msra.mxu0 %v209
  %528 = vmatpush.msra.mxu0 %v208
  %529 = vmatpush.msra.mxu0 %v207
  %530 = vmatpush.msra.mxu0 %v206
  %531 = vmatpush.msra.mxu0 %v205
  %532 = vmatpush.msra.mxu0 %v204
  %533 = vmatpush.msra.mxu0 %v203
  %534 = vmatpush.msra.mxu0 %v202
  %535 = vmatpush.msra.mxu0 %v201
  %536 = vmatpush.msra.mxu0 %v200
  %537 = vmatpush.msra.mxu0 %v199
  %538 = vmatmul.f32.gmra.mxu0 %v32
  %v539 = vpop.f32.mrf.mxu0
  %v540 = vadd.f32 %v517, %v539
  %541 = vmatmul.f32.gmra.mxu0 %v48
  %v542 = vpop.f32.mrf.mxu0
  %v543 = vadd.f32 %v520, %v542
  %544 = vdwg.mxu0
  %545 = vmatpush.msra.mxu0 %v230
  %546 = vmatpush.msra.mxu0 %v229
  %547 = vmatpush.msra.mxu0 %v228
  %548 = vmatpush.msra.mxu0 %v227
  %549 = vmatpush.msra.mxu0 %v226
  %550 = vmatpush.msra.mxu0 %v225
  %551 = vmatpush.msra.mxu0 %v224
  %552 = vmatpush.msra.mxu0 %v223
  %553 = vmatpush.msra.mxu0 %v222
  %554 = vmatpush.msra.mxu0 %v221
  %555 = vmatpush.msra.mxu0 %v220
  %556 = vmatpush.msra.mxu0 %v219
  %557 = vmatpush.msra.mxu0 %v218
  %558 = vmatpush.msra.mxu0 %v217
  %559 = vmatpush.msra.mxu0 %v216
  %560 = vmatpush.msra.mxu0 %v215
  %561 = vmatmul.f32.gmra.mxu0 %v33
  %v562 = vpop.f32.mrf.mxu0
  %v563 = vadd.f32 %v540, %v562
  %564 = vmatmul.f32.gmra.mxu0 %v49
  %v565 = vpop.f32.mrf.mxu0
  %v566 = vadd.f32 %v543, %v565
  %567 = vdwg.mxu0
  %568 = vmatpush.msra.mxu0 %v246
  %569 = vmatpush.msra.mxu0 %v245
  %570 = vmatpush.msra.mxu0 %v244
  %571 = vmatpush.msra.mxu0 %v243
  %572 = vmatpush.msra.mxu0 %v242
  %573 = vmatpush.msra.mxu0 %v241
  %574 = vmatpush.msra.mxu0 %v240
  %575 = vmatpush.msra.mxu0 %v239
  %576 = vmatpush.msra.mxu0 %v238
  %577 = vmatpush.msra.mxu0 %v237
  %578 = vmatpush.msra.mxu0 %v236
  %579 = vmatpush.msra.mxu0 %v235
  %580 = vmatpush.msra.mxu0 %v234
  %581 = vmatpush.msra.mxu0 %v233
  %582 = vmatpush.msra.mxu0 %v232
  %583 = vmatpush.msra.mxu0 %v231
  %584 = vmatmul.f32.gmra.mxu0 %v34
  %v585 = vpop.f32.mrf.mxu0
  %v586 = vadd.f32 %v563, %v585
  %587 = vmatmul.f32.gmra.mxu0 %v50
  %v588 = vpop.f32.mrf.mxu0
  %v589 = vadd.f32 %v566, %v588
  %590 = vdwg.mxu0
  %591 = vmatpush.msra.mxu0 %v262
  %592 = vmatpush.msra.mxu0 %v261
  %593 = vmatpush.msra.mxu0 %v260
  %594 = vmatpush.msra.mxu0 %v259
  %595 = vmatpush.msra.mxu0 %v258
  %596 = vmatpush.msra.mxu0 %v257
  %597 = vmatpush.msra.mxu0 %v256
  %598 = vmatpush.msra.mxu0 %v255
  %599 = vmatpush.msra.mxu0 %v254
  %600 = vmatpush.msra.mxu0 %v253
  %601 = vmatpush.msra.mxu0 %v252
  %602 = vmatpush.msra.mxu0 %v251
  %603 = vmatpush.msra.mxu0 %v250
  %604 = vmatpush.msra.mxu0 %v249
  %605 = vmatpush.msra.mxu0 %v248
  %606 = vmatpush.msra.mxu0 %v247
  %607 = vmatmul.f32.gmra.mxu0 %v35
  %v608 = vpop.f32.mrf.mxu0
  %v609 = vadd.f32 %v586, %v608
  %610 = vmatmul.f32.gmra.mxu0 %v51
  %v611 = vpop.f32.mrf.mxu0
  %v612 = vadd.f32 %v589, %v611
  %613 = vdwg.mxu0
  %614 = vmatpush.msra.mxu0 %v278
  %615 = vmatpush.msra.mxu0 %v277
  %616 = vmatpush.msra.mxu0 %v276
  %617 = vmatpush.msra.mxu0 %v275
  %618 = vmatpush.msra.mxu0 %v274
  %619 = vmatpush.msra.mxu0 %v273
  %620 = vmatpush.msra.mxu0 %v272
  %621 = vmatpush.msra.mxu0 %v271
  %622 = vmatpush.msra.mxu0 %v270
  %623 = vmatpush.msra.mxu0 %v269
  %624 = vmatpush.msra.mxu0 %v268
  %625 = vmatpush.msra.mxu0 %v267
  %626 = vmatpush.msra.mxu0 %v266
  %627 = vmatpush.msra.mxu0 %v265
  %628 = vmatpush.msra.mxu0 %v264
  %629 = vmatpush.msra.mxu0 %v263
  %630 = vmatmul.f32.gmra.mxu0 %v36
  %v631 = vpop.f32.mrf.mxu0
  %v632 = vadd.f32 %v609, %v631
  %633 = vmatmul.f32.gmra.mxu0 %v52
  %v634 = vpop.f32.mrf.mxu0
  %v635 = vadd.f32 %v612, %v634
  %636 = vdwg.mxu0
  %637 = vmatpush.msra.mxu0 %v294
  %638 = vmatpush.msra.mxu0 %v293
  %639 = vmatpush.msra.mxu0 %v292
  %640 = vmatpush.msra.mxu0 %v291
  %641 = vmatpush.msra.mxu0 %v290
  %642 = vmatpush.msra.mxu0 %v289
  %643 = vmatpush.msra.mxu0 %v288
  %644 = vmatpush.msra.mxu0 %v287
  %645 = vmatpush.msra.mxu0 %v286
  %646 = vmatpush.msra.mxu0 %v285
  %647 = vmatpush.msra.mxu0 %v284
  %648 = vmatpush.msra.mxu0 %v283
  %649 = vmatpush.msra.mxu0 %v282
  %650 = vmatpush.msra.mxu0 %v281
  %651 = vmatpush.msra.mxu0 %v280
  %652 = vmatpush.msra.mxu0 %v279
  %653 = vmatmul.f32.gmra.mxu0 %v37
  %v654 = vpop.f32.mrf.mxu0
  %v655 = vadd.f32 %v632, %v654
  %656 = vmatmul.f32.gmra.mxu0 %v53
  %v657 = vpop.f32.mrf.mxu0
  %v658 = vadd.f32 %v635, %v657
  %659 = vdwg.mxu0
  %660 = vmatpush.msra.mxu0 %v310
  %661 = vmatpush.msra.mxu0 %v309
  %662 = vmatpush.msra.mxu0 %v308
  %663 = vmatpush.msra.mxu0 %v307
  %664 = vmatpush.msra.mxu0 %v306
  %665 = vmatpush.msra.mxu0 %v305
  %666 = vmatpush.msra.mxu0 %v304
  %667 = vmatpush.msra.mxu0 %v303
  %668 = vmatpush.msra.mxu0 %v302
  %669 = vmatpush.msra.mxu0 %v301
  %670 = vmatpush.msra.mxu0 %v300
  %671 = vmatpush.msra.mxu0 %v299
  %672 = vmatpush.msra.mxu0 %v298
  %673 = vmatpush.msra.mxu0 %v297
  %674 = vmatpush.msra.mxu0 %v296
  %675 = vmatpush.msra.mxu0 %v295
  %676 = vmatmul.f32.gmra.mxu0 %v38
  %v677 = vpop.f32.mrf.mxu0
  %v678 = vadd.f32 %v655, %v677
  %679 = vmatmul.f32.gmra.mxu0 %v54
  %v680 = vpop.f32.mrf.mxu0
  %v681 = vadd.f32 %v658, %v680
  %682 = vdwg.mxu0
  %v683 = vld [vmem:[%s3] sm:$0xff]
  %v684 = vld [vmem:[%s3 + $0x8] sm:$0xff]
  %v685 = vadd.f32 %v683, %v678
  %v686 = vadd.f32 %v684, %v681
  %vm687 = vcmask 261120
  %v688 = vsel %vm687, %v685, 0.0
  %689 = vadd.xlane.f32.xlu0 %v688
  %v690 = vpop.xlane.xlu0 %689
  %v691 = vsel %vm687, %v686, 0.0
  %692 = vadd.xlane.f32.xlu0 %v691
  %v693 = vpop.xlane.xlu0 %692
  %v694 = vrcp.pop 32.0
  %v695 = vmul.f32 32.0, %v694
  %v696 = vsub.f32 1.0, %v695
  %v697 = vmul.f32 %v694, %v696
  %v698 = vadd.f32 %v694, %v697
  %vm699 = vweird.f32 %v694
  %v700 = vsel %vm699, %v694, %v698
  %v701 = vmul.f32 %v690, %v700
  %v702 = vmul.f32 %v693, %v700
  %v703 = vsub.f32 %v685, %v701
  %v704 = vsub.f32 %v686, %v702
  %v705 = vmul.f32 %v703, %v703
  %v706 = vmul.f32 %v704, %v704
  %v707 = vsel %vm687, %v705, 0.0
  %708 = vadd.xlane.f32.xlu0 %v707
  %v709 = vpop.xlane.xlu0 %708
  %v710 = vsel %vm687, %v706, 0.0
  %711 = vadd.xlane.f32.xlu0 %v710
  %v712 = vpop.xlane.xlu0 %711
  %v713 = vmul.f32 %v709, %v700
  %v714 = vmul.f32 %v712, %v700
  %v715 = vadd.f32 %v713, 1e-05
  %v716 = vadd.f32 %v714, 1e-05
  %v717 = vrsqrt.pop %v715
  %v718 = vmul.f32 %v717, %v715
  %v719 = vmul.f32 %v718, %v717
  %v720 = vmul.f32 0.5, %v719
  %v721 = vsub.f32 1.5, %v720
  %v722 = vmul.f32 %v717, %v721
  %vm723 = vweird.f32 %v715
  %vm724 = vweird.f32 %v717
  %vm725 = vmor %vm723, %vm724
  %v726 = vsel %vm725, %v717, %v722
  %v727 = vrsqrt.pop %v716
  %v728 = vmul.f32 %v727, %v716
  %v729 = vmul.f32 %v728, %v727
  %v730 = vmul.f32 0.5, %v729
  %v731 = vsub.f32 1.5, %v730
  %v732 = vmul.f32 %v727, %v731
  %vm733 = vweird.f32 %v716
  %vm734 = vweird.f32 %v727
  %vm735 = vmor %vm733, %vm734
  %v736 = vsel %vm735, %v727, %v732
  %v737 = vmul.f32 %v703, %v726
  %v738 = vmul.f32 %v704, %v736
  %v739 = vld [vmem:[%s4] sm:$0x1]
  %v741 = vperm.slane %v739, 0
  %v743 = vmul.f32 %v737, %v741
  %v744 = vmul.f32 %v738, %v741
  %v745 = vld [vmem:[%s5] sm:$0x1]
  %v747 = vperm.slane %v745, 0
  %v749 = vadd.f32 %v743, %v747
  %v750 = vadd.f32 %v744, %v747
  %751 = vst.msk [vmem:[%s6] sm:$0xff] %vm687, %v749
  %752 = vst.msk [vmem:[%s6 + $0x8] sm:$0xff] %vm687, %v750
  // Predicated region
  $region26: #{decoder_forward.27} parent=0 // pred_check
    _
  $region27: #{decoder_forward.27} parent=0 // pred_check_branch
    %754 = sbr.rel (0) target = $region29
  $region28: #{decoder_forward.27} parent=0 // pred_region
    _
  $region29: #{decoder_forward.27} parent=0 // pred_fallthru
    _
  // Predicated region
  $region30: #{decoder_forward.27} parent=0 // pred_check
    _
  $region31: #{decoder_forward.27} parent=0 // pred_check_branch
    %756 = sbr.rel (0) target = $region33
  $region32: #{decoder_forward.27} parent=0 // pred_region
    _
  $region33: #{decoder_forward.27} parent=0 // pred_fallthru
    _

</llo_original>
